<compile_context>
chip_gen: v7x
topology: tpu7x:2x2x1
jax: 0.10.0
libtpu: 0.0.40
codegen_flags: <defaults>
</compile_context>

<pallas_src>
import math
from functools import partial

import jax
import jax.numpy as jnp
from jax import lax
from jax.experimental import pallas as pl
from jax.experimental.pallas import tpu as pltpu


LN_EPS = 1e-5
NEG_BIG = -1e30                      # large finite negative: no inf-inf NaNs
GELU_C = math.sqrt(2.0 / math.pi)

TILE_T = 128                         # attention q/kv token tile (tq == tk)
TILE_TOK = 256                       # token tile for QKV / FFN / LM-head kernels
TILE_FF = 512                        # FFN hidden-dim tile (streams W1/W2)
TILE_V = 512                         # vocab tile for the LM head


def _vmem_limit_bytes():
    """Generation-aware VMEM budget (≈48 MiB on v7x, ≈96 MiB on v5e/v6e)."""
    try:
        cap = int(pltpu.get_tpu_info().vmem_capacity_bytes)
    except Exception:
        cap = 64 * 1024 * 1024
    return min((cap * 3) // 4, 100 * 1024 * 1024)


def _gelu_tanh(x):
    return 0.5 * x * (1.0 + jnp.tanh(GELU_C * (x + 0.044715 * x * x * x)))


def _layernorm(x, scale, shift):
    mean = jnp.mean(x, axis=-1, keepdims=True)
    var = jnp.mean((x - mean) ** 2, axis=-1, keepdims=True)
    return (x - mean) * lax.rsqrt(var + LN_EPS) * scale + shift


# --------------------- kernel 1: LayerNorm1 + fused QKV ----------------------
# Emits head-major q / pre-transposed k / head-major v so the attention kernel
# indexes heads on a leading (non-lane) axis and never transposes K.

def _ln_qkv_kernel(x_ref, s_ref, b_ref, w_ref, q_ref, kt_ref, v_ref,
                   *, num_heads, head_dim):
    D = num_heads * head_dim
    x = x_ref[0].astype(jnp.float32)                       # (tq, D)
    xn = _layernorm(x, s_ref[0], b_ref[0])
    qkv = jnp.dot(xn.astype(jnp.bfloat16), w_ref[...],
                  preferred_element_type=jnp.float32)      # (tq, 3D) f32 acc
    scale = 1.0 / math.sqrt(head_dim)
    kt_all = qkv[:, D:2 * D].T                             # (D, tq): one transpose per tile
    # Small static loop only for output writes (amortized once per token tile).
    for h in range(num_heads):
        lo, hi = h * head_dim, (h + 1) * head_dim
        q_ref[0, h] = (qkv[:, lo:hi] * scale).astype(jnp.bfloat16)     # (tq, hd)
        kt_ref[0, h] = kt_all[lo:hi, :].astype(jnp.bfloat16)           # (hd, tq)
        v_ref[0, h] = qkv[:, 2 * D + lo:2 * D + hi].astype(jnp.bfloat16)


def _block_qkv(x, p, num_heads, tq):
    B, T, D = x.shape
    hd = D // num_heads
    kernel = partial(_ln_qkv_kernel, num_heads=num_heads, head_dim=hd)
    # TODO(synk): for emb_dim >= ~1024 stream the (D, 3D) QKV weight over an
    # extra column-tile grid axis instead of keeping it whole-block resident.
    return pl.pallas_call(
        kernel,
        out_shape=(jax.ShapeDtypeStruct((B, num_heads, T, hd), jnp.bfloat16),
                   jax.ShapeDtypeStruct((B, num_heads, hd, T), jnp.bfloat16),
                   jax.ShapeDtypeStruct((B, num_heads, T, hd), jnp.bfloat16)),
        grid_spec=pltpu.PrefetchScalarGridSpec(
            num_scalar_prefetch=0,
            grid=(B, T // tq),
            in_specs=[
                pl.BlockSpec((1, tq, D), lambda b, i: (b, i, 0)),
                pl.BlockSpec((1, D), lambda b, i: (0, 0)),
                pl.BlockSpec((1, D), lambda b, i: (0, 0)),
                pl.BlockSpec((D, 3 * D), lambda b, i: (0, 0)),
            ],
            out_specs=[
                pl.BlockSpec((1, num_heads, tq, hd), lambda b, i: (b, 0, i, 0)),
                pl.BlockSpec((1, num_heads, hd, tq), lambda b, i: (b, 0, 0, i)),
                pl.BlockSpec((1, num_heads, tq, hd), lambda b, i: (b, 0, i, 0)),
            ],
        ),
        compiler_params=pltpu.CompilerParams(
            dimension_semantics=("parallel", "parallel"),
            vmem_limit_bytes=_vmem_limit_bytes()),
    )(x, p["ln1_scale"], p["ln1_shift"], p["wqkv"])


# --------- kernel 2: flash attention + out-proj + residual (x1) --------------
# Grid = (batch, lower-triangular (q-tile, kv-tile) pairs); qi/ki come from
# scalar-prefetched tables, so above-diagonal kv tiles are never fetched.

def _flash_attn_kernel(qi_tbl_ref, ki_tbl_ref,
                       x_ref, q_ref, kt_ref, v_ref, wo_ref, bo_ref,
                       out_ref, m_ref, l_ref, acc_ref, ctx_ref,
                       *, num_heads, head_dim, tq):
    n = pl.program_id(1)
    qi = qi_tbl_ref[n]
    ki = ki_tbl_ref[n]

    @pl.when(ki == 0)
    def _init():
        m_ref[...] = jnp.full_like(m_ref, NEG_BIG)
        l_ref[...] = jnp.zeros_like(l_ref)
        acc_ref[...] = jnp.zeros_like(acc_ref)

    # Batched over heads: (H, tq, hd) x (H, hd, tk) -> (H, tq, tk) on the MXU.
    s = lax.dot_general(q_ref[0], kt_ref[0], (((2,), (1,)), ((0,), (0,))),
                        preferred_element_type=jnp.float32)

    def _update(scores):
        m_prev = m_ref[...]                                           # (H, tq, 1)
        m_new = jnp.maximum(m_prev, jnp.max(scores, axis=-1, keepdims=True))
        alpha = jnp.exp(m_prev - m_new)
        prob = jnp.exp(scores - m_new)                                # (H, tq, tk)
        l_ref[...] = alpha * l_ref[...] + jnp.sum(prob, axis=-1, keepdims=True)
        acc_ref[...] = alpha * acc_ref[...] + lax.dot_general(
            prob.astype(jnp.bfloat16), v_ref[0], (((2,), (1,)), ((0,), (0,))),
            preferred_element_type=jnp.float32)                       # (H, tq, hd)
        m_ref[...] = m_new

    # No-mask fast path: interior tiles (ki < qi) are fully below the diagonal.
    @pl.when(ki < qi)
    def _full_tile():
        _update(s)

    # Diagonal tile (ki == qi, tq == tk): apply the causal mask, then finalize.
    @pl.when(ki == qi)
    def _diag_and_finalize():
        row = lax.broadcasted_iota(jnp.int32, (tq, tq), 0)
        col = lax.broadcasted_iota(jnp.int32, (tq, tq), 1)
        _update(jnp.where((col > row)[None, :, :], NEG_BIG, s))

        inv_l = pl.reciprocal(l_ref[...], approx=True)                # (H, tq, 1)
        # Relayout heads -> feature dim once per q tile (amortized over kv tiles).
        for h in range(num_heads):
            lo, hi = h * head_dim, (h + 1) * head_dim
            ctx_ref[:, lo:hi] = acc_ref[h] * inv_l[h]
        attn = jnp.dot(ctx_ref[...].astype(jnp.bfloat16), wo_ref[...],
                       preferred_element_type=jnp.float32) + bo_ref[0]
        out_ref[0] = (x_ref[0].astype(jnp.float32) + attn).astype(out_ref.dtype)


def _block_attn(x, q, kt, v, p, num_heads, tq):
    B, T, D = x.shape
    hd = D // num_heads
    assert T % tq == 0
    nq = T // tq
    qi_list, ki_list = [], []
    for qi in range(nq):
        for ki in range(qi + 1):                 # lower-triangular pairs only
            qi_list.append(qi)
            ki_list.append(ki)
    qi_tbl = jnp.asarray(qi_list, dtype=jnp.int32)
    ki_tbl = jnp.asarray(ki_list, dtype=jnp.int32)
    npairs = len(qi_list)

    kernel = partial(_flash_attn_kernel, num_heads=num_heads, head_dim=hd, tq=tq)
    return pl.pallas_call(
        kernel,
        out_shape=jax.ShapeDtypeStruct((B, T, D), jnp.bfloat16),
        grid_spec=pltpu.PrefetchScalarGridSpec(
            num_scalar_prefetch=2,
            grid=(B, npairs),
            in_specs=[
                pl.BlockSpec((1, tq, D),
                             lambda b, n, qtab, ktab: (b, qtab[n], 0)),          # residual x
                pl.BlockSpec((1, num_heads, tq, hd),
                             lambda b, n, qtab, ktab: (b, 0, qtab[n], 0)),       # q (scaled)
                pl.BlockSpec((1, num_heads, hd, tq),
                             lambda b, n, qtab, ktab: (b, 0, 0, ktab[n])),       # k^T
                pl.BlockSpec((1, num_heads, tq, hd),
                             lambda b, n, qtab, ktab: (b, 0, ktab[n], 0)),       # v
                pl.BlockSpec((D, D), lambda b, n, qtab, ktab: (0, 0)),           # Wo
                pl.BlockSpec((1, D), lambda b, n, qtab, ktab: (0, 0)),           # bo
            ],
            out_specs=pl.BlockSpec((1, tq, D),
                                   lambda b, n, qtab, ktab: (b, qtab[n], 0)),
            scratch_shapes=[
                pltpu.VMEM((num_heads, tq, 1), jnp.float32),   # running max
                pltpu.VMEM((num_heads, tq, 1), jnp.float32),   # running sum
                pltpu.VMEM((num_heads, tq, hd), jnp.float32),  # head-major context acc
                pltpu.VMEM((tq, D), jnp.float32),              # (tq, D) context staging
            ],
        ),
        compiler_params=pltpu.CompilerParams(
            dimension_semantics=("parallel", "arbitrary"),
            vmem_limit_bytes=_vmem_limit_bytes()),
    )(qi_tbl, ki_tbl, x, q, kt, v, p["wo"], p["bo"])


# --------------- kernel 3: LayerNorm2 + FFN (hidden streamed) ----------------

def _ffn_kernel(x_ref, s_ref, b_ref, w1_ref, b1_ref, w2_ref, b2_ref,
                out_ref, xn_ref, acc_ref):
    j = pl.program_id(2)

    @pl.when(j == 0)
    def _init():
        x = x_ref[0].astype(jnp.float32)
        xn_ref[...] = _layernorm(x, s_ref[0], b_ref[0]).astype(jnp.bfloat16)
        acc_ref[...] = jnp.zeros_like(acc_ref)

    h = jnp.dot(xn_ref[...], w1_ref[...],
                preferred_element_type=jnp.float32) + b1_ref[0]        # (tq, th)
    acc_ref[...] += jnp.dot(_gelu_tanh(h).astype(jnp.bfloat16), w2_ref[...],
                            preferred_element_type=jnp.float32)        # (tq, D)

    @pl.when(j == pl.num_programs(2) - 1)
    def _finalize():
        out_ref[0] = (x_ref[0].astype(jnp.float32) + acc_ref[...]
                      + b2_ref[0]).astype(out_ref.dtype)


def _block_ffn(x1, p, tq, th):
    B, T, D = x1.shape
    DH = 4 * D
    th = min(th, DH)
    assert DH % th == 0 and T % tq == 0
    return pl.pallas_call(
        _ffn_kernel,
        out_shape=jax.ShapeDtypeStruct((B, T, D), jnp.bfloat16),
        grid_spec=pltpu.PrefetchScalarGridSpec(
            num_scalar_prefetch=0,
            grid=(B, T // tq, DH // th),
            in_specs=[
                pl.BlockSpec((1, tq, D), lambda b, i, j: (b, i, 0)),   # x1 (residual)
                pl.BlockSpec((1, D), lambda b, i, j: (0, 0)),          # ln2 scale
                pl.BlockSpec((1, D), lambda b, i, j: (0, 0)),          # ln2 shift
                pl.BlockSpec((D, th), lambda b, i, j: (0, j)),         # W1 column tile
                pl.BlockSpec((1, th), lambda b, i, j: (0, j)),         # b1 tile
                pl.BlockSpec((th, D), lambda b, i, j: (j, 0)),         # W2 row tile
                pl.BlockSpec((1, D), lambda b, i, j: (0, 0)),          # b2
            ],
            out_specs=pl.BlockSpec((1, tq, D), lambda b, i, j: (b, i, 0)),
            scratch_shapes=[
                pltpu.VMEM((tq, D), jnp.bfloat16),   # cached LN2(x1)
                pltpu.VMEM((tq, D), jnp.float32),    # FFN accumulator
            ],
        ),
        compiler_params=pltpu.CompilerParams(
            dimension_semantics=("parallel", "parallel", "arbitrary"),
            vmem_limit_bytes=_vmem_limit_bytes()),
    )(x1, p["ln2_scale"], p["ln2_shift"], p["w1"], p["b1"], p["w2"], p["b2"])


def transformer_block(x, p, num_heads, tq_attn=TILE_T, tq_tok=TILE_TOK, th_ff=TILE_FF):
    B, T, D = x.shape
    assert D % num_heads == 0, "emb_dim must be divisible by n_heads"
    tq_attn = min(tq_attn, T)
    tq_tok = min(tq_tok, T)
    assert T % tq_attn == 0 and T % tq_tok == 0
    q, kt, v = _block_qkv(x, p, num_heads, tq_tok)
    x1 = _block_attn(x, q, kt, v, p, num_heads, tq_attn)
    return _block_ffn(x1, p, tq_tok, th_ff)


# --------------------- kernel 4: final LayerNorm + LM head -------------------
# Vocab-tile axis outer / token-tile axis inner: each W_out column block is
# fetched once and reused across all token tiles.

def _final_norm_head_kernel(x_ref, s_ref, b_ref, w_ref, out_ref):
    xn = _layernorm(x_ref[0].astype(jnp.float32), s_ref[0], b_ref[0])
    out_ref[0] = jnp.dot(xn.astype(jnp.bfloat16), w_ref[...],
                         preferred_element_type=jnp.float32)


def lm_head(x, scale, shift, w_out, tq=TILE_TOK, tv=TILE_V):
    B, T, D = x.shape
    V = w_out.shape[1]
    tq = min(tq, T)
    tv = min(tv, V)
    assert T % tq == 0 and V % tv == 0
    return pl.pallas_call(
        _final_norm_head_kernel,
        out_shape=jax.ShapeDtypeStruct((B, T, V), jnp.float32),
        grid_spec=pltpu.PrefetchScalarGridSpec(
            num_scalar_prefetch=0,
            grid=(B, V // tv, T // tq),
            in_specs=[
                pl.BlockSpec((1, tq, D), lambda b, v, t: (b, t, 0)),
                pl.BlockSpec((1, D), lambda b, v, t: (0, 0)),
                pl.BlockSpec((1, D), lambda b, v, t: (0, 0)),
                pl.BlockSpec((D, tv), lambda b, v, t: (0, v)),
            ],
            out_specs=pl.BlockSpec((1, tq, tv), lambda b, v, t: (b, t, v)),
        ),
        compiler_params=pltpu.CompilerParams(
            dimension_semantics=("parallel", "parallel", "parallel"),
            vmem_limit_bytes=_vmem_limit_bytes()),
    )(x, scale, shift, w_out)


# ------------------------------- forward --------------------------------------

def prepare_pallas_params(params):
    """One-time bf16 cast of the matmul weights / embeddings (no per-forward casts)."""
    bf = lambda a: a.astype(jnp.bfloat16)
    out = {
        "tok_emb": bf(params["tok_emb"]),
        "pos_emb": bf(params["pos_emb"]),
        "final_scale": params["final_scale"],
        "final_shift": params["final_shift"],
        "w_out": bf(params["w_out"]),
        "blocks": [],
    }
    for p in params["blocks"]:
        out["blocks"].append({
            "ln1_scale": p["ln1_scale"], "ln1_shift": p["ln1_shift"],
            "wqkv": bf(p["wqkv"]),
            "wo": bf(p["wo"]), "bo": p["bo"],
            "ln2_scale": p["ln2_scale"], "ln2_shift": p["ln2_shift"],
            "w1": bf(p["w1"]), "b1": p["b1"],
            "w2": bf(p["w2"]), "b2": p["b2"],
        })
    return out


def gpt_forward(in_idx, pparams, cfg):
    B, T = in_idx.shape
    # TODO(synk): token/positional embedding lookup is a data-dependent gather;
    # kept as a plain JAX gather instead of a manual-DMA Pallas gather kernel.
    x = (jnp.take(pparams["tok_emb"], in_idx, axis=0)
         + pparams["pos_emb"][:T][None]).astype(jnp.bfloat16)
    # drop_emb / drop_shortcut / attention dropout: drop_rate = 0.0 -> identity.
    for blk in pparams["blocks"]:
        x = transformer_block(x, blk, cfg["n_heads"])
    return lm_head(x, pparams["final_scale"], pparams["final_shift"], pparams["w_out"])


# --------------------------- pure-JAX reference -------------------------------

def transformer_block_ref(x, p, num_heads):
    B, T, D = x.shape
    hd = D // num_heads

    def ln(v, s, b):
        m = v.mean(-1, keepdims=True)
        var = ((v - m) ** 2).mean(-1, keepdims=True)
        return (v - m) / jnp.sqrt(var + LN_EPS) * s[0] + b[0]

    xn = ln(x, p["ln1_scale"], p["ln1_shift"])
    qkv = xn @ p["wqkv"]
    q, k, v = qkv[..., :D], qkv[..., D:2 * D], qkv[..., 2 * D:]
    q = q.reshape(B, T, num_heads, hd).transpose(0, 2, 1, 3)
    k = k.reshape(B, T, num_heads, hd).transpose(0, 2, 1, 3)
    v = v.reshape(B, T, num_heads, hd).transpose(0, 2, 1, 3)
    scores = jnp.einsum("bhtd,bhsd->bhts", q, k)
    mask = jnp.triu(jnp.ones((T, T), dtype=bool), k=1)
    scores = jnp.where(mask, -jnp.inf, scores)
    attn = jax.nn.softmax(scores / math.sqrt(hd), axis=-1)
    ctx = jnp.einsum("bhts,bhsd->bhtd", attn, v).transpose(0, 2, 1, 3).reshape(B, T, D)
    x1 = x + (ctx @ p["wo"] + p["bo"][0])
    xn2 = ln(x1, p["ln2_scale"], p["ln2_shift"])
    h1 = xn2 @ p["w1"] + p["b1"][0]
    h1 = _gelu_tanh(h1)
    return x1 + (h1 @ p["w2"] + p["b2"][0])


def gpt_forward_ref(in_idx, params, cfg):
    T = in_idx.shape[1]
    x = jnp.take(params["tok_emb"], in_idx, axis=0) + params["pos_emb"][:T][None]
    for blk in params["blocks"]:
        x = transformer_block_ref(x, blk, cfg["n_heads"])
    m = x.mean(-1, keepdims=True)
    var = ((x - m) ** 2).mean(-1, keepdims=True)
    xn = (x - m) / jnp.sqrt(var + LN_EPS) * params["final_scale"][0] + params["final_shift"][0]
    return xn @ params["w_out"]


# ------------------------------- params init ----------------------------------

def init_params(key, cfg):
    D, V, C = cfg["emb_dim"], cfg["vocab_size"], cfg["context_length"]
    n_layers = cfg["n_layers"]
    keys = jax.random.split(key, 4 + n_layers)

    def nrm(k, shape, scale=0.02):
        return (scale * jax.random.normal(k, shape)).astype(jnp.float32)

    params = {
        "tok_emb": nrm(keys[0], (V, D), 1.0),
        "pos_emb": nrm(keys[1], (C, D), 1.0),
        "final_scale": jnp.ones((1, D), jnp.float32),
        "final_shift": jnp.zeros((1, D), jnp.float32),
        "w_out": nrm(keys[2], (D, V), 0.02),
        "blocks": [],
    }
    for i in range(n_layers):
        ks = jax.random.split(keys[4 + i], 12)
        params["blocks"].append({
            "ln1_scale": (1.0 + 0.1 * jax.random.normal(ks[0], (1, D))).astype(jnp.float32),
            "ln1_shift": nrm(ks[1], (1, D), 0.1),
            "wqkv": nrm(ks[2], (D, 3 * D)),
            "wo": nrm(ks[3], (D, D)),
            "bo": nrm(ks[4], (1, D)),
            "ln2_scale": (1.0 + 0.1 * jax.random.normal(ks[5], (1, D))).astype(jnp.float32),
            "ln2_shift": nrm(ks[6], (1, D), 0.1),
            "w1": nrm(ks[7], (D, 4 * D)),
            "b1": nrm(ks[8], (1, 4 * D)),
            "w2": nrm(ks[9], (4 * D, D)),
            "b2": nrm(ks[10], (1, D)),
        })
    return params


# ----------------------------------- main --------------------------------------

if __name__ == "__main__":
    cfg = dict(vocab_size=256, context_length=256, emb_dim=128,
               n_heads=4, n_layers=2, drop_rate=0.0, qkv_bias=False)
    B, T = 2, cfg["context_length"]

    key = jax.random.PRNGKey(0)
    k_params, k_idx = jax.random.split(key)
    params = init_params(k_params, cfg)
    pparams = prepare_pallas_params(params)          # one-time bf16 weight cast
    in_idx = jax.random.randint(k_idx, (B, T), 0, cfg["vocab_size"], dtype=jnp.int32)

    logits = gpt_forward(in_idx, pparams, cfg)
    logits = jax.block_until_ready(logits)

    ref = gpt_forward_ref(in_idx, params, cfg)
    assert logits.shape == (B, T, cfg["vocab_size"])
    assert bool(jnp.all(jnp.isfinite(logits)))
    max_err = float(jnp.max(jnp.abs(logits - ref)))
    assert bool(jnp.allclose(logits, ref, rtol=2e-2, atol=2e-2)), (
        f"mismatch vs reference (max abs err {max_err:.4e})")
    print("KERNEL_OK")
</pallas_src>

<mosaic_0001>
module attributes {stable_mosaic.version = 11 : i64} {
  func.func @_ln_qkv_kernel(%arg0: i32, %arg1: i32, %arg2: memref<1x256x128xbf16, #tpu.memory_space<vmem>>, %arg3: memref<1x128xf32, #tpu.memory_space<vmem>>, %arg4: memref<1x128xf32, #tpu.memory_space<vmem>>, %arg5: memref<128x384xbf16, #tpu.memory_space<vmem>>, %arg6: memref<1x4x256x32xbf16, #tpu.memory_space<vmem>>, %arg7: memref<1x4x32x256xbf16, #tpu.memory_space<vmem>>, %arg8: memref<1x4x256x32xbf16, #tpu.memory_space<vmem>>) attributes {dimension_semantics = [#tpu.dimension_semantics<parallel>, #tpu.dimension_semantics<parallel>], iteration_bounds = array<i64: 2, 1>, scalar_prefetch = 0 : i64, scratch_operands = 0 : i64, tpu.core_type = #tpu.core_type<tc>, window_params = [{transform_indices = @transform_0, window_bounds = array<i64: 1, 256, 128>}, {pipeline_mode = #tpu.pipeline_mode<synchronous>, transform_indices = @transform_1, window_bounds = array<i64: 1, 128>}, {pipeline_mode = #tpu.pipeline_mode<synchronous>, transform_indices = @transform_2, window_bounds = array<i64: 1, 128>}, {pipeline_mode = #tpu.pipeline_mode<synchronous>, transform_indices = @transform_3, window_bounds = array<i64: 128, 384>}, {transform_indices = @transform_4, window_bounds = array<i64: 1, 4, 256, 32>}, {transform_indices = @transform_5, window_bounds = array<i64: 1, 4, 32, 256>}, {transform_indices = @transform_6, window_bounds = array<i64: 1, 4, 256, 32>}]} {
    %c0 = arith.constant 0 : index
    %c0_0 = arith.constant 0 : index
    %c0_1 = arith.constant 0 : index
    %0 = vector.load %arg2[%c0, %c0_0, %c0_1] : memref<1x256x128xbf16, #tpu.memory_space<vmem>>, vector<1x256x128xbf16>
    %1 = vector.shape_cast %0 : vector<1x256x128xbf16> to vector<256x128xbf16>
    %2 = arith.extf %1 : vector<256x128xbf16> to vector<256x128xf32>
    %c0_2 = arith.constant 0 : index
    %c0_3 = arith.constant 0 : index
    %3 = vector.load %arg3[%c0_2, %c0_3] : memref<1x128xf32, #tpu.memory_space<vmem>>, vector<1x128xf32>
    %4 = vector.shape_cast %3 : vector<1x128xf32> to vector<128xf32>
    %c0_4 = arith.constant 0 : index
    %c0_5 = arith.constant 0 : index
    %5 = vector.load %arg4[%c0_4, %c0_5] : memref<1x128xf32, #tpu.memory_space<vmem>>, vector<1x128xf32>
    %6 = vector.shape_cast %5 : vector<1x128xf32> to vector<128xf32>
    %cst = arith.constant dense<0.000000e+00> : vector<256xf32>
    %7 = vector.multi_reduction <add>, %2, %cst [1] : vector<256x128xf32> to vector<256xf32>
    %8 = vector.shape_cast %7 : vector<256xf32> to vector<256x1xf32>
    %cst_6 = arith.constant 1.280000e+02 : f32
    %9 = vector.broadcast %cst_6 : f32 to vector<256x1xf32>
    %10 = arith.divf %8, %9 : vector<256x1xf32>
    %11 = vector.broadcast %10 : vector<256x1xf32> to vector<256x128xf32>
    %12 = arith.subf %2, %11 : vector<256x128xf32>
    %13 = arith.mulf %12, %12 : vector<256x128xf32>
    %cst_7 = arith.constant dense<0.000000e+00> : vector<256xf32>
    %14 = vector.multi_reduction <add>, %13, %cst_7 [1] : vector<256x128xf32> to vector<256xf32>
    %15 = vector.shape_cast %14 : vector<256xf32> to vector<256x1xf32>
    %cst_8 = arith.constant 1.280000e+02 : f32
    %16 = vector.broadcast %cst_8 : f32 to vector<256x1xf32>
    %17 = arith.divf %15, %16 : vector<256x1xf32>
    %18 = vector.broadcast %10 : vector<256x1xf32> to vector<256x128xf32>
    %19 = arith.subf %2, %18 : vector<256x128xf32>
    %cst_9 = arith.constant 9.99999974E-6 : f32
    %20 = vector.broadcast %cst_9 : f32 to vector<256x1xf32>
    %21 = arith.addf %17, %20 : vector<256x1xf32>
    %22 = math.rsqrt %21 : vector<256x1xf32>
    %23 = vector.broadcast %22 : vector<256x1xf32> to vector<256x128xf32>
    %24 = arith.mulf %19, %23 : vector<256x128xf32>
    %25 = vector.shape_cast %4 : vector<128xf32> to vector<1x128xf32>
    %26 = vector.broadcast %25 : vector<1x128xf32> to vector<256x128xf32>
    %27 = arith.mulf %24, %26 : vector<256x128xf32>
    %28 = vector.shape_cast %6 : vector<128xf32> to vector<1x128xf32>
    %29 = vector.broadcast %28 : vector<1x128xf32> to vector<256x128xf32>
    %30 = arith.addf %27, %29 : vector<256x128xf32>
    %31 = arith.truncf %30 : vector<256x128xf32> to vector<256x128xbf16>
    %c0_10 = arith.constant 0 : index
    %c0_11 = arith.constant 0 : index
    %32 = vector.load %arg5[%c0_10, %c0_11] : memref<128x384xbf16, #tpu.memory_space<vmem>>, vector<128x384xbf16>
    %cst_12 = arith.constant dense<0.000000e+00> : vector<256x384xf32>
    %33 = tpu.matmul %31, %32, %cst_12 {dimension_numbers = #tpu.dot_dimension_numbers<[1], [0], [0], [1], [0, 0, 1, 1], [], []>} : vector<256x128xbf16>, vector<128x384xbf16>, vector<256x384xf32> -> vector<256x384xf32>
    %34 = vector.extract_strided_slice %33 {offsets = [0, 128], sizes = [256, 128], strides = [1, 1]} : vector<256x384xf32> to vector<256x128xf32>
    %35 = tpu.transpose %34, [1, 0] : vector<256x128xf32> -> vector<128x256xf32>
    %36 = vector.extract_strided_slice %33 {offsets = [0, 0], sizes = [256, 32], strides = [1, 1]} : vector<256x384xf32> to vector<256x32xf32>
    %cst_13 = arith.constant 0.176776692 : f32
    %37 = vector.broadcast %cst_13 : f32 to vector<256x32xf32>
    %38 = arith.mulf %36, %37 : vector<256x32xf32>
    %39 = arith.truncf %38 : vector<256x32xf32> to vector<256x32xbf16>
    %c0_14 = arith.constant 0 : index
    %c0_15 = arith.constant 0 : index
    %c0_16 = arith.constant 0 : index
    %c0_17 = arith.constant 0 : index
    %40 = vector.load %arg6[%c0_14, %c0_15, %c0_16, %c0_17] : memref<1x4x256x32xbf16, #tpu.memory_space<vmem>>, vector<1x1x256x32xbf16>
    %41 = vector.shape_cast %40 : vector<1x1x256x32xbf16> to vector<256x32xbf16>
    %42 = vector.shape_cast %39 : vector<256x32xbf16> to vector<1x1x256x32xbf16>
    tpu.vector_store %arg6[%c0_14, %c0_15, %c0_16, %c0_17], %42 {strides = array<i32>} : memref<1x4x256x32xbf16, #tpu.memory_space<vmem>>, vector<1x1x256x32xbf16>,
    %43 = vector.extract_strided_slice %35 {offsets = [0, 0], sizes = [32, 256], strides = [1, 1]} : vector<128x256xf32> to vector<32x256xf32>
    %44 = arith.truncf %43 : vector<32x256xf32> to vector<32x256xbf16>
    %c0_18 = arith.constant 0 : index
    %c0_19 = arith.constant 0 : index
    %c0_20 = arith.constant 0 : index
    %c0_21 = arith.constant 0 : index
    %45 = vector.load %arg7[%c0_18, %c0_19, %c0_20, %c0_21] : memref<1x4x32x256xbf16, #tpu.memory_space<vmem>>, vector<1x1x32x256xbf16>
    %46 = vector.shape_cast %45 : vector<1x1x32x256xbf16> to vector<32x256xbf16>
    %47 = vector.shape_cast %44 : vector<32x256xbf16> to vector<1x1x32x256xbf16>
    tpu.vector_store %arg7[%c0_18, %c0_19, %c0_20, %c0_21], %47 {strides = array<i32>} : memref<1x4x32x256xbf16, #tpu.memory_space<vmem>>, vector<1x1x32x256xbf16>,
    %48 = vector.extract_strided_slice %33 {offsets = [0, 256], sizes = [256, 32], strides = [1, 1]} : vector<256x384xf32> to vector<256x32xf32>
    %49 = arith.truncf %48 : vector<256x32xf32> to vector<256x32xbf16>
    %c0_22 = arith.constant 0 : index
    %c0_23 = arith.constant 0 : index
    %c0_24 = arith.constant 0 : index
    %c0_25 = arith.constant 0 : index
    %50 = vector.load %arg8[%c0_22, %c0_23, %c0_24, %c0_25] : memref<1x4x256x32xbf16, #tpu.memory_space<vmem>>, vector<1x1x256x32xbf16>
    %51 = vector.shape_cast %50 : vector<1x1x256x32xbf16> to vector<256x32xbf16>
    %52 = vector.shape_cast %49 : vector<256x32xbf16> to vector<1x1x256x32xbf16>
    tpu.vector_store %arg8[%c0_22, %c0_23, %c0_24, %c0_25], %52 {strides = array<i32>} : memref<1x4x256x32xbf16, #tpu.memory_space<vmem>>, vector<1x1x256x32xbf16>,
    %53 = vector.extract_strided_slice %33 {offsets = [0, 32], sizes = [256, 32], strides = [1, 1]} : vector<256x384xf32> to vector<256x32xf32>
    %cst_26 = arith.constant 0.176776692 : f32
    %54 = vector.broadcast %cst_26 : f32 to vector<256x32xf32>
    %55 = arith.mulf %53, %54 : vector<256x32xf32>
    %56 = arith.truncf %55 : vector<256x32xf32> to vector<256x32xbf16>
    %c0_27 = arith.constant 0 : index
    %c1 = arith.constant 1 : index
    %c0_28 = arith.constant 0 : index
    %c0_29 = arith.constant 0 : index
    %57 = vector.load %arg6[%c0_27, %c1, %c0_28, %c0_29] : memref<1x4x256x32xbf16, #tpu.memory_space<vmem>>, vector<1x1x256x32xbf16>
    %58 = vector.shape_cast %57 : vector<1x1x256x32xbf16> to vector<256x32xbf16>
    %59 = vector.shape_cast %56 : vector<256x32xbf16> to vector<1x1x256x32xbf16>
    tpu.vector_store %arg6[%c0_27, %c1, %c0_28, %c0_29], %59 {strides = array<i32>} : memref<1x4x256x32xbf16, #tpu.memory_space<vmem>>, vector<1x1x256x32xbf16>,
    %60 = vector.extract_strided_slice %35 {offsets = [32, 0], sizes = [32, 256], strides = [1, 1]} : vector<128x256xf32> to vector<32x256xf32>
    %61 = arith.truncf %60 : vector<32x256xf32> to vector<32x256xbf16>
    %c0_30 = arith.constant 0 : index
    %c1_31 = arith.constant 1 : index
    %c0_32 = arith.constant 0 : index
    %c0_33 = arith.constant 0 : index
    %62 = vector.load %arg7[%c0_30, %c1_31, %c0_32, %c0_33] : memref<1x4x32x256xbf16, #tpu.memory_space<vmem>>, vector<1x1x32x256xbf16>
    %63 = vector.shape_cast %62 : vector<1x1x32x256xbf16> to vector<32x256xbf16>
    %64 = vector.shape_cast %61 : vector<32x256xbf16> to vector<1x1x32x256xbf16>
    tpu.vector_store %arg7[%c0_30, %c1_31, %c0_32, %c0_33], %64 {strides = array<i32>} : memref<1x4x32x256xbf16, #tpu.memory_space<vmem>>, vector<1x1x32x256xbf16>,
    %65 = vector.extract_strided_slice %33 {offsets = [0, 288], sizes = [256, 32], strides = [1, 1]} : vector<256x384xf32> to vector<256x32xf32>
    %66 = arith.truncf %65 : vector<256x32xf32> to vector<256x32xbf16>
    %c0_34 = arith.constant 0 : index
    %c1_35 = arith.constant 1 : index
    %c0_36 = arith.constant 0 : index
    %c0_37 = arith.constant 0 : index
    %67 = vector.load %arg8[%c0_34, %c1_35, %c0_36, %c0_37] : memref<1x4x256x32xbf16, #tpu.memory_space<vmem>>, vector<1x1x256x32xbf16>
    %68 = vector.shape_cast %67 : vector<1x1x256x32xbf16> to vector<256x32xbf16>
    %69 = vector.shape_cast %66 : vector<256x32xbf16> to vector<1x1x256x32xbf16>
    tpu.vector_store %arg8[%c0_34, %c1_35, %c0_36, %c0_37], %69 {strides = array<i32>} : memref<1x4x256x32xbf16, #tpu.memory_space<vmem>>, vector<1x1x256x32xbf16>,
    %70 = vector.extract_strided_slice %33 {offsets = [0, 64], sizes = [256, 32], strides = [1, 1]} : vector<256x384xf32> to vector<256x32xf32>
    %cst_38 = arith.constant 0.176776692 : f32
    %71 = vector.broadcast %cst_38 : f32 to vector<256x32xf32>
    %72 = arith.mulf %70, %71 : vector<256x32xf32>
    %73 = arith.truncf %72 : vector<256x32xf32> to vector<256x32xbf16>
    %c0_39 = arith.constant 0 : index
    %c2 = arith.constant 2 : index
    %c0_40 = arith.constant 0 : index
    %c0_41 = arith.constant 0 : index
    %74 = vector.load %arg6[%c0_39, %c2, %c0_40, %c0_41] : memref<1x4x256x32xbf16, #tpu.memory_space<vmem>>, vector<1x1x256x32xbf16>
    %75 = vector.shape_cast %74 : vector<1x1x256x32xbf16> to vector<256x32xbf16>
    %76 = vector.shape_cast %73 : vector<256x32xbf16> to vector<1x1x256x32xbf16>
    tpu.vector_store %arg6[%c0_39, %c2, %c0_40, %c0_41], %76 {strides = array<i32>} : memref<1x4x256x32xbf16, #tpu.memory_space<vmem>>, vector<1x1x256x32xbf16>,
    %77 = vector.extract_strided_slice %35 {offsets = [64, 0], sizes = [32, 256], strides = [1, 1]} : vector<128x256xf32> to vector<32x256xf32>
    %78 = arith.truncf %77 : vector<32x256xf32> to vector<32x256xbf16>
    %c0_42 = arith.constant 0 : index
    %c2_43 = arith.constant 2 : index
    %c0_44 = arith.constant 0 : index
    %c0_45 = arith.constant 0 : index
    %79 = vector.load %arg7[%c0_42, %c2_43, %c0_44, %c0_45] : memref<1x4x32x256xbf16, #tpu.memory_space<vmem>>, vector<1x1x32x256xbf16>
    %80 = vector.shape_cast %79 : vector<1x1x32x256xbf16> to vector<32x256xbf16>
    %81 = vector.shape_cast %78 : vector<32x256xbf16> to vector<1x1x32x256xbf16>
    tpu.vector_store %arg7[%c0_42, %c2_43, %c0_44, %c0_45], %81 {strides = array<i32>} : memref<1x4x32x256xbf16, #tpu.memory_space<vmem>>, vector<1x1x32x256xbf16>,
    %82 = vector.extract_strided_slice %33 {offsets = [0, 320], sizes = [256, 32], strides = [1, 1]} : vector<256x384xf32> to vector<256x32xf32>
    %83 = arith.truncf %82 : vector<256x32xf32> to vector<256x32xbf16>
    %c0_46 = arith.constant 0 : index
    %c2_47 = arith.constant 2 : index
    %c0_48 = arith.constant 0 : index
    %c0_49 = arith.constant 0 : index
    %84 = vector.load %arg8[%c0_46, %c2_47, %c0_48, %c0_49] : memref<1x4x256x32xbf16, #tpu.memory_space<vmem>>, vector<1x1x256x32xbf16>
    %85 = vector.shape_cast %84 : vector<1x1x256x32xbf16> to vector<256x32xbf16>
    %86 = vector.shape_cast %83 : vector<256x32xbf16> to vector<1x1x256x32xbf16>
    tpu.vector_store %arg8[%c0_46, %c2_47, %c0_48, %c0_49], %86 {strides = array<i32>} : memref<1x4x256x32xbf16, #tpu.memory_space<vmem>>, vector<1x1x256x32xbf16>,
    %87 = vector.extract_strided_slice %33 {offsets = [0, 96], sizes = [256, 32], strides = [1, 1]} : vector<256x384xf32> to vector<256x32xf32>
    %cst_50 = arith.constant 0.176776692 : f32
    %88 = vector.broadcast %cst_50 : f32 to vector<256x32xf32>
    %89 = arith.mulf %87, %88 : vector<256x32xf32>
    %90 = arith.truncf %89 : vector<256x32xf32> to vector<256x32xbf16>
    %c0_51 = arith.constant 0 : index
    %c3 = arith.constant 3 : index
    %c0_52 = arith.constant 0 : index
    %c0_53 = arith.constant 0 : index
    %91 = vector.load %arg6[%c0_51, %c3, %c0_52, %c0_53] : memref<1x4x256x32xbf16, #tpu.memory_space<vmem>>, vector<1x1x256x32xbf16>
    %92 = vector.shape_cast %91 : vector<1x1x256x32xbf16> to vector<256x32xbf16>
    %93 = vector.shape_cast %90 : vector<256x32xbf16> to vector<1x1x256x32xbf16>
    tpu.vector_store %arg6[%c0_51, %c3, %c0_52, %c0_53], %93 {strides = array<i32>} : memref<1x4x256x32xbf16, #tpu.memory_space<vmem>>, vector<1x1x256x32xbf16>,
    %94 = vector.extract_strided_slice %35 {offsets = [96, 0], sizes = [32, 256], strides = [1, 1]} : vector<128x256xf32> to vector<32x256xf32>
    %95 = arith.truncf %94 : vector<32x256xf32> to vector<32x256xbf16>
    %c0_54 = arith.constant 0 : index
    %c3_55 = arith.constant 3 : index
    %c0_56 = arith.constant 0 : index
    %c0_57 = arith.constant 0 : index
    %96 = vector.load %arg7[%c0_54, %c3_55, %c0_56, %c0_57] : memref<1x4x32x256xbf16, #tpu.memory_space<vmem>>, vector<1x1x32x256xbf16>
    %97 = vector.shape_cast %96 : vector<1x1x32x256xbf16> to vector<32x256xbf16>
    %98 = vector.shape_cast %95 : vector<32x256xbf16> to vector<1x1x32x256xbf16>
    tpu.vector_store %arg7[%c0_54, %c3_55, %c0_56, %c0_57], %98 {strides = array<i32>} : memref<1x4x32x256xbf16, #tpu.memory_space<vmem>>, vector<1x1x32x256xbf16>,
    %99 = vector.extract_strided_slice %33 {offsets = [0, 352], sizes = [256, 32], strides = [1, 1]} : vector<256x384xf32> to vector<256x32xf32>
    %100 = arith.truncf %99 : vector<256x32xf32> to vector<256x32xbf16>
    %c0_58 = arith.constant 0 : index
    %c3_59 = arith.constant 3 : index
    %c0_60 = arith.constant 0 : index
    %c0_61 = arith.constant 0 : index
    %101 = vector.load %arg8[%c0_58, %c3_59, %c0_60, %c0_61] : memref<1x4x256x32xbf16, #tpu.memory_space<vmem>>, vector<1x1x256x32xbf16>
    %102 = vector.shape_cast %101 : vector<1x1x256x32xbf16> to vector<256x32xbf16>
    %103 = vector.shape_cast %100 : vector<256x32xbf16> to vector<1x1x256x32xbf16>
    tpu.vector_store %arg8[%c0_58, %c3_59, %c0_60, %c0_61], %103 {strides = array<i32>} : memref<1x4x256x32xbf16, #tpu.memory_space<vmem>>, vector<1x1x256x32xbf16>,
    return
  }
  func.func @transform_0(%arg0: i32, %arg1: i32) -> (i32, i32, i32) {
    %c0_i32 = arith.constant 0 : i32
    %c0_i32_0 = arith.constant 0 : i32
    return %arg0, %arg1, %c0_i32 : i32, i32, i32
  }
  func.func @transform_1(%arg0: i32, %arg1: i32) -> (i32, i32) {
    %c0_i32 = arith.constant 0 : i32
    %c0_i32_0 = arith.constant 0 : i32
    %c0_i32_1 = arith.constant 0 : i32
    return %c0_i32, %c0_i32_0 : i32, i32
  }
  func.func @transform_2(%arg0: i32, %arg1: i32) -> (i32, i32) {
    %c0_i32 = arith.constant 0 : i32
    %c0_i32_0 = arith.constant 0 : i32
    %c0_i32_1 = arith.constant 0 : i32
    return %c0_i32, %c0_i32_0 : i32, i32
  }
  func.func @transform_3(%arg0: i32, %arg1: i32) -> (i32, i32) {
    %c0_i32 = arith.constant 0 : i32
    %c0_i32_0 = arith.constant 0 : i32
    %c0_i32_1 = arith.constant 0 : i32
    return %c0_i32, %c0_i32_0 : i32, i32
  }
  func.func @transform_4(%arg0: i32, %arg1: i32) -> (i32, i32, i32, i32) {
    %c0_i32 = arith.constant 0 : i32
    %c0_i32_0 = arith.constant 0 : i32
    %c0_i32_1 = arith.constant 0 : i32
    return %arg0, %c0_i32, %arg1, %c0_i32_0 : i32, i32, i32, i32
  }
  func.func @transform_5(%arg0: i32, %arg1: i32) -> (i32, i32, i32, i32) {
    %c0_i32 = arith.constant 0 : i32
    %c0_i32_0 = arith.constant 0 : i32
    %c0_i32_1 = arith.constant 0 : i32
    return %arg0, %c0_i32, %c0_i32_0, %arg1 : i32, i32, i32, i32
  }
  func.func @transform_6(%arg0: i32, %arg1: i32) -> (i32, i32, i32, i32) {
    %c0_i32 = arith.constant 0 : i32
    %c0_i32_0 = arith.constant 0 : i32
    %c0_i32_1 = arith.constant 0 : i32
    return %arg0, %c0_i32, %arg1, %c0_i32_0 : i32, i32, i32, i32
  }
}

</mosaic_0001>

<llo_original>
// kernel: tpu_custom_call.1
$region0: #{tpu_custom_call.1}
  #allocation0 [shape = 'u32[]', space=smem, size = 0x4, offset = 0x4, fixed_abs, tag = 'smem constant byte address 0x4 - core index']
  #allocation1 [shape = 'u32[144,128]{1,0:T(1,128)}', space=vmem, size = 0x12000, scoped, tag = 'internal scratch']
  %s0 = inlined_call_operand.hbm [shape: bf16[2,256,128], index: 0, kind: input, shape index: {}]
  %s1 = inlined_call_operand.vmem [shape: f32[1,128], index: 1, kind: input, shape index: {}]
  %s2 = inlined_call_operand.vmem [shape: f32[1,128], index: 2, kind: input, shape index: {}]
  %s3 = inlined_call_operand.hbm [shape: bf16[128,384], index: 3, kind: input, shape index: {}]
  %s4 = inlined_call_operand.vmem [shape: bf16[2,4,256,32], index: 4, kind: output, shape index: {0}]
  %s5 = inlined_call_operand.hbm [shape: bf16[2,4,32,256], index: 5, kind: output, shape index: {1}]
  %s6 = inlined_call_operand.vmem [shape: bf16[2,4,256,32], index: 6, kind: output, shape index: {2}]
  %7 = xla_tuple %s4, %s5, %s6
  %s8 = sld [smem:[#allocation0]]
  $region73: #{tpu_custom_call.1} parent=0
    _
  %s10 = ssub.s32 1, %s8
  %s11 = scalar_select 0, %s10, %s8
  $region1: #{tpu_custom_call.1} parent=0
    #allocation2 [shape = 'u8[131072]{0}', space=vmem, size = 0x20000, scoped, tag = 'input window, operand 0']
    #allocation3 [shape = 's32[2]{0}', space=sflag, size = 0x8, scoped, tag = 'scoped memory for tpu_custom_call.1']
    #allocation4 [shape = 's32[2]{0}', space=sflag, size = 0x8, scoped, tag = 'scoped memory for tpu_custom_call.1']
    #allocation5 [shape = 'u8[98304]{0}', space=vmem, size = 0x18000, scoped, tag = 'input window, operand 3, single buffered']
    #allocation6 [shape = 's32[1]{0}', space=sflag, size = 0x4, scoped, tag = 'scoped memory for tpu_custom_call.1']
    #allocation7 [shape = 'u8[131072]{0}', space=vmem, size = 0x20000, scoped, tag = 'output window, operand 1']
    %12 = vsyncpa [#allocation3], 0
    %s13 = scalar_lea.sflag [#allocation3], 1
    %14 = vsyncpa %s13, 0
    %15 = vsyncpa [#allocation6], 0
    %16 = vsyncpa [#allocation4], 0
    %s17 = scalar_lea.sflag [#allocation4], 1
    %18 = vsyncpa %s17, 0
    loop: start=0, step=1, limit=4
    $region2: #{tpu_custom_call.1} parent=1 // loop_pre_header
      _
    $region3: #{tpu_custom_call.1} parent=1 // loop_header
      %s20 = sphi 0, %s24
      %p21 = scmp.ge.s32.totalorder %s20, 4
      %s27 = sphi 0, %s39
      %s28 = sphi 0, %s35
      %s29 = sphi 0, %s27
      %s30 = sphi 0, %s28
      %s31 = sphi 0, %s29
      %s32 = sphi 0, %s30
      %s44 = sphi 0, %s46
      %s47 = sphi 0, %s44
      %s48 = sphi 0, %s47
      %s64 = sphi 0, %s48
      %s68 = sphi 0, %s68
      %s70 = sphi 0, %s68
      %s71 = sphi 0, %s70
      %s85 = sphi 0, %s71
      %s89 = sphi 0, %s89
      %s91 = sphi 0, %s89
      %s92 = sphi 0, %s91
      %s106 = sphi 0, %s92
      %s110 = sphi 0, %s110
      %s112 = sphi 0, %s110
      %s113 = sphi 0, %s112
      %s127 = sphi 0, %s113
      %s135 = sphi 0, %s137
      %s138 = sphi 0, %s135
      %s139 = sphi 0, %s138
      %s155 = sphi 0, %s139
      %s163 = sphi 0, %s165
      %s166 = sphi 0, %s163
      %s167 = sphi 0, %s166
      %s183 = sphi 0, %s167
      %s191 = sphi 0, %s193
      %s194 = sphi 0, %s191
      %s195 = sphi 0, %s194
      %s211 = sphi 0, %s195
    $region4: #{tpu_custom_call.1} parent=1 // loop_header_branch
      %23 = sbr.rel (%p21) target = $region8
    $region5: #{tpu_custom_call.1} parent=1 // loop_body
      %s25 = ssub.s32 %s20, 1
      %s26 = ssub.s32 %s20, 2
      %s33 = sadd.s32 1, %s28
      %p34 = scmp.ge.s32.totalorder %s33, 1
      %s35 = scalar_select %p34, 0, %s33
      %s36 = sadd.s32 1, %s27
      %s37 = scalar_select %p34, %s36, %s27
      %p38 = scmp.ge.s32.totalorder %s37, 2
      %s39 = scalar_select %p38, 0, %s37
      %s40 = ssub.s32 %s27, %s39
      %s41 = ssub.s32 %s28, %s35
      %s42 = sor.u32 %s40, %s41
      %p43 = scmp.eq.s32.totalorder %s42, 0
      %s45 = sadd.s32 %s44, 1
      %s46 = scalar_select %p43, %s44, %s45
      %p49 = pneg %p43
      %p50 = scmp.eq.s32.totalorder %s20, 1
      %p51 = por %p49, %p50
      %p52 = scmp.ne.s32.totalorder %s44, %s47
      %p53 = scmp.eq.s32.totalorder %s20, 0
      %p54 = por %p52, %p53
      %p55 = scmp.ne.s32.totalorder %s44, %s47
      %p56 = scmp.eq.s32.totalorder %s25, 1
      %p57 = por %p55, %p56
      %p58 = scmp.ne.s32.totalorder %s47, %s48
      %p59 = scmp.eq.s32.totalorder %s25, 0
      %p60 = por %p58, %p59
      %p61 = scmp.ne.s32.totalorder %s47, %s48
      %p62 = scmp.eq.s32.totalorder %s26, 1
      %p63 = por %p61, %p62
      %p65 = scmp.ne.s32.totalorder %s48, %s64
      %p66 = scmp.eq.s32.totalorder %s26, 0
      %p67 = por %p65, %p66
      %s69 = sadd.s32 %s68, 1
      %p72 = scmp.eq.s32.totalorder %s20, 1
      %p73 = scmp.ne.s32.totalorder %s68, %s70
      %p74 = scmp.eq.s32.totalorder %s20, 0
      %p75 = por %p73, %p74
      %p76 = scmp.ne.s32.totalorder %s68, %s70
      %p77 = scmp.eq.s32.totalorder %s25, 1
      %p78 = por %p76, %p77
      %p79 = scmp.ne.s32.totalorder %s70, %s71
      %p80 = scmp.eq.s32.totalorder %s25, 0
      %p81 = por %p79, %p80
      %p82 = scmp.ne.s32.totalorder %s70, %s71
      %p83 = scmp.eq.s32.totalorder %s26, 1
      %p84 = por %p82, %p83
      %p86 = scmp.ne.s32.totalorder %s71, %s85
      %p87 = scmp.eq.s32.totalorder %s26, 0
      %p88 = por %p86, %p87
      %s90 = sadd.s32 %s89, 1
      %p93 = scmp.eq.s32.totalorder %s20, 1
      %p94 = scmp.ne.s32.totalorder %s89, %s91
      %p95 = scmp.eq.s32.totalorder %s20, 0
      %p96 = por %p94, %p95
      %p97 = scmp.ne.s32.totalorder %s89, %s91
      %p98 = scmp.eq.s32.totalorder %s25, 1
      %p99 = por %p97, %p98
      %p100 = scmp.ne.s32.totalorder %s91, %s92
      %p101 = scmp.eq.s32.totalorder %s25, 0
      %p102 = por %p100, %p101
      %p103 = scmp.ne.s32.totalorder %s91, %s92
      %p104 = scmp.eq.s32.totalorder %s26, 1
      %p105 = por %p103, %p104
      %p107 = scmp.ne.s32.totalorder %s92, %s106
      %p108 = scmp.eq.s32.totalorder %s26, 0
      %p109 = por %p107, %p108
      %s111 = sadd.s32 %s110, 1
      %p114 = scmp.eq.s32.totalorder %s20, 1
      %p115 = scmp.ne.s32.totalorder %s110, %s112
      %p116 = scmp.eq.s32.totalorder %s20, 0
      %p117 = por %p115, %p116
      %p118 = scmp.ne.s32.totalorder %s110, %s112
      %p119 = scmp.eq.s32.totalorder %s25, 1
      %p120 = por %p118, %p119
      %p121 = scmp.ne.s32.totalorder %s112, %s113
      %p122 = scmp.eq.s32.totalorder %s25, 0
      %p123 = por %p121, %p122
      %p124 = scmp.ne.s32.totalorder %s112, %s113
      %p125 = scmp.eq.s32.totalorder %s26, 1
      %p126 = por %p124, %p125
      %p128 = scmp.ne.s32.totalorder %s113, %s127
      %p129 = scmp.eq.s32.totalorder %s26, 0
      %p130 = por %p128, %p129
      %s131 = ssub.s32 %s27, %s39
      %s132 = ssub.s32 %s28, %s35
      %s133 = sor.u32 %s131, %s132
      %p134 = scmp.eq.s32.totalorder %s133, 0
      %s136 = sadd.s32 %s135, 1
      %s137 = scalar_select %p134, %s135, %s136
      %p140 = pneg %p134
      %p141 = scmp.eq.s32.totalorder %s20, 1
      %p142 = por %p140, %p141
      %p143 = scmp.ne.s32.totalorder %s135, %s138
      %p144 = scmp.eq.s32.totalorder %s20, 0
      %p145 = por %p143, %p144
      %p146 = scmp.ne.s32.totalorder %s135, %s138
      %p147 = scmp.eq.s32.totalorder %s25, 1
      %p148 = por %p146, %p147
      %p149 = scmp.ne.s32.totalorder %s138, %s139
      %p150 = scmp.eq.s32.totalorder %s25, 0
      %p151 = por %p149, %p150
      %p152 = scmp.ne.s32.totalorder %s138, %s139
      %p153 = scmp.eq.s32.totalorder %s26, 1
      %p154 = por %p152, %p153
      %p156 = scmp.ne.s32.totalorder %s139, %s155
      %p157 = scmp.eq.s32.totalorder %s26, 0
      %p158 = por %p156, %p157
      %s159 = ssub.s32 %s27, %s39
      %s160 = ssub.s32 %s28, %s35
      %s161 = sor.u32 %s159, %s160
      %p162 = scmp.eq.s32.totalorder %s161, 0
      %s164 = sadd.s32 %s163, 1
      %s165 = scalar_select %p162, %s163, %s164
      %p168 = pneg %p162
      %p169 = scmp.eq.s32.totalorder %s20, 1
      %p170 = por %p168, %p169
      %p171 = scmp.ne.s32.totalorder %s163, %s166
      %p172 = scmp.eq.s32.totalorder %s20, 0
      %p173 = por %p171, %p172
      %p174 = scmp.ne.s32.totalorder %s163, %s166
      %p175 = scmp.eq.s32.totalorder %s25, 1
      %p176 = por %p174, %p175
      %p177 = scmp.ne.s32.totalorder %s166, %s167
      %p178 = scmp.eq.s32.totalorder %s25, 0
      %p179 = por %p177, %p178
      %p180 = scmp.ne.s32.totalorder %s166, %s167
      %p181 = scmp.eq.s32.totalorder %s26, 1
      %p182 = por %p180, %p181
      %p184 = scmp.ne.s32.totalorder %s167, %s183
      %p185 = scmp.eq.s32.totalorder %s26, 0
      %p186 = por %p184, %p185
      %s187 = ssub.s32 %s27, %s39
      %s188 = ssub.s32 %s28, %s35
      %s189 = sor.u32 %s187, %s188
      %p190 = scmp.eq.s32.totalorder %s189, 0
      %s192 = sadd.s32 %s191, 1
      %s193 = scalar_select %p190, %s191, %s192
      %p196 = pneg %p190
      %p197 = scmp.eq.s32.totalorder %s20, 1
      %p198 = por %p196, %p197
      %p199 = scmp.ne.s32.totalorder %s191, %s194
      %p200 = scmp.eq.s32.totalorder %s20, 0
      %p201 = por %p199, %p200
      %p202 = scmp.ne.s32.totalorder %s191, %s194
      %p203 = scmp.eq.s32.totalorder %s25, 1
      %p204 = por %p202, %p203
      %p205 = scmp.ne.s32.totalorder %s194, %s195
      %p206 = scmp.eq.s32.totalorder %s25, 0
      %p207 = por %p205, %p206
      %p208 = scmp.ne.s32.totalorder %s194, %s195
      %p209 = scmp.eq.s32.totalorder %s26, 1
      %p210 = por %p208, %p209
      %p212 = scmp.ne.s32.totalorder %s195, %s211
      %p213 = scmp.eq.s32.totalorder %s26, 0
      %p214 = por %p212, %p213
      %p215 = scmp.le.s32.totalorder 1, %s20
      %p216 = scmp.lt.s32.totalorder %s20, 3
      %p217 = pnand %p215, %p216
      %p218 = pneg %p217
      // Predicated region
      $region9: #{tpu_custom_call.1} parent=5 // pred_check
        _
      $region10: #{tpu_custom_call.1} parent=5 // pred_check_branch
        %220 = sbr.rel (%p217) target = $region12
      $region11: #{tpu_custom_call.1} parent=5 // pred_region
        %s221 = ssub.s32 %s20, 1
        // Predicated region
        $region13: #{tpu_custom_call.1} parent=11 // pred_check
          %p222 = pneg %p81
        $region14: #{tpu_custom_call.1} parent=11 // pred_check_branch
          %224 = sbr.rel (%p222) target = $region16
        $region15: #{tpu_custom_call.1} parent=11 // pred_region
          _
        $region16: #{tpu_custom_call.1} parent=11 // pred_fallthru
          _
        // Predicated region
        $region17: #{tpu_custom_call.1} parent=11 // pred_check
          %p225 = pneg %p102
        $region18: #{tpu_custom_call.1} parent=11 // pred_check_branch
          %227 = sbr.rel (%p225) target = $region20
        $region19: #{tpu_custom_call.1} parent=11 // pred_region
          _
        $region20: #{tpu_custom_call.1} parent=11 // pred_fallthru
          _
        // Predicated region
        $region21: #{tpu_custom_call.1} parent=11 // pred_check
          %p228 = pneg %p123
        $region22: #{tpu_custom_call.1} parent=11 // pred_check_branch
          %230 = sbr.rel (%p228) target = $region24
        $region23: #{tpu_custom_call.1} parent=11 // pred_region
          %s232 = ssub.s32 3072, 3072
          %233 = vsyncadd [#allocation6], %s232
          %s234 = sshll.u32 [#allocation5], 4
          %s235 = int_to_ptr.vmem [resolvable:$true] %s234
          %240 = dma.hbm_to_vmem [thread:$0]  %s3, 3072, %s235, [#allocation6], 192, 192, 12
        $region24: #{tpu_custom_call.1} parent=11 // pred_fallthru
          _
      $region12: #{tpu_custom_call.1} parent=5 // pred_fallthru
        _
      %p241 = scmp.lt.s32.totalorder %s20, 2
      // Predicated region
      $region25: #{tpu_custom_call.1} parent=5 // pred_check
        %p242 = pneg %p241
      $region26: #{tpu_custom_call.1} parent=5 // pred_check_branch
        %244 = sbr.rel (%p242) target = $region28
      $region27: #{tpu_custom_call.1} parent=5 // pred_region
        // Predicated region
        $region29: #{tpu_custom_call.1} parent=27 // pred_check
          %p245 = pneg %p54
        $region30: #{tpu_custom_call.1} parent=27 // pred_check_branch
          %247 = sbr.rel (%p245) target = $region32
        $region31: #{tpu_custom_call.1} parent=27 // pred_region
          %s248 = sand.u32 %s44, 1
          %s249 = scalar_lea.sflag [#allocation3], %s248
          %s250 = sand.u32 %s44, 1
          %s251 = smul.addr %s250, 128
          %s252 = scalar_lea.vmem [#allocation2], %s251
          %s253 = smul.u32 32, %s28
          %s255 = ssub.s32 2048, 2048
          %256 = vsyncadd %s249, %s255
          %s257 = smul.addr %s27, 32
          %s258 = sadd.s32 %s253, %s257
          %s259 = smul.addr %s258, 64
          %s260 = scalar_lea.hbm %s0, %s259
          %s261 = sshll.u32 %s252, 4
          %s262 = int_to_ptr.vmem [resolvable:$true] %s261
          %267 = dma.hbm_to_vmem [thread:$0]  %s260, 2048, %s262, %s249, 64, 64, 4
        $region32: #{tpu_custom_call.1} parent=27 // pred_fallthru
          _
      $region28: #{tpu_custom_call.1} parent=5 // pred_fallthru
        _
      %p268 = scmp.le.s32.totalorder 1, %s20
      %p269 = scmp.lt.s32.totalorder %s20, 3
      %p270 = pnand %p268, %p269
      %p271 = pneg %p270
      // Predicated region
      $region33: #{tpu_custom_call.1} parent=5 // pred_check
        _
      $region34: #{tpu_custom_call.1} parent=5 // pred_check_branch
        %273 = sbr.rel (%p270) target = $region36
      $region35: #{tpu_custom_call.1} parent=5 // pred_region
        %s274 = ssub.s32 %s20, 1
        %s275 = sand.u32 %s47, 1
        %s276 = scalar_lea.sflag [#allocation3], %s275
        %s277 = sand.u32 %s47, 1
        %s278 = smul.addr %s277, 128
        %s279 = scalar_lea.vmem [#allocation2], %s278
        // Predicated region
        $region37: #{tpu_custom_call.1} parent=35 // pred_check
          %p280 = pneg %p60
        $region38: #{tpu_custom_call.1} parent=35 // pred_check_branch
          %282 = sbr.rel (%p280) target = $region40
        $region39: #{tpu_custom_call.1} parent=35 // pred_region
          %283 = dma.done %s276, 2048
        $region40: #{tpu_custom_call.1} parent=35 // pred_fallthru
          _
        // Predicated region
        $region41: #{tpu_custom_call.1} parent=35 // pred_check
          %p284 = pneg %p123
        $region42: #{tpu_custom_call.1} parent=35 // pred_check_branch
          %286 = sbr.rel (%p284) target = $region44
        $region43: #{tpu_custom_call.1} parent=35 // pred_region
          %287 = dma.done [#allocation6], 3072
        $region44: #{tpu_custom_call.1} parent=35 // pred_fallthru
          _
        %s288 = sand.u32 %s47, 1
        %s289 = scalar_lea.sflag [#allocation3], %s288
        %s290 = sand.u32 %s47, 1
        %s291 = smul.addr %s290, 128
        %s292 = scalar_lea.vmem [#allocation2], %s291
        %p293 = pneg %p60
        %p294 = pneg %p57
        %p295 = pneg %p81
        %p296 = pneg %p78
        %p297 = pneg %p102
        %p298 = pneg %p99
        %p299 = pneg %p123
        %p300 = pneg %p120
        %p301 = pneg %p151
        %p302 = pneg %p148
        %s303 = smul.u32 32, %s30
        %p304 = scmp.lt.s32.totalorder %s29, 1
        %s305 = scalar_select %p304, %s29, 1
        %p306 = scmp.lt.s32.totalorder %s303, 31
        %s307 = scalar_select %p306, %s303, 31
        %s308 = smul.addr %s305, 128
        %s309 = sadd.s32 %s307, %s308
        %s310 = smul.addr %s309, 4
        %s311 = scalar_lea.vmem %s4, %s310
        %p312 = pneg %p179
        %p313 = pneg %p176
        %s314 = sand.u32 %s166, 1
        %s315 = scalar_lea.sflag [#allocation4], %s314
        %s316 = sand.u32 %s166, 1
        %s317 = smul.addr %s316, 128
        %s318 = scalar_lea.vmem [#allocation7], %s317
        %p319 = pneg %p207
        %p320 = pneg %p204
        %s321 = smul.u32 32, %s30
        %p322 = scmp.lt.s32.totalorder %s29, 1
        %s323 = scalar_select %p322, %s29, 1
        %p324 = scmp.lt.s32.totalorder %s321, 31
        %s325 = scalar_select %p324, %s321, 31
        %s326 = smul.addr %s323, 128
        %s327 = sadd.s32 %s325, %s326
        %s328 = smul.addr %s327, 4
        %s329 = scalar_lea.vmem %s6, %s328
        %s330 = smul.u32 32, %s30
        %s331 = smul.u32 32, %s30
        %p332 = scmp.lt.s32.totalorder %s29, 1
        %s333 = scalar_select %p332, %s29, 1
        %p334 = scmp.lt.s32.totalorder %s331, 31
        %s335 = scalar_select %p334, %s331, 31
        %s336 = smul.addr %s333, 128
        %s337 = sadd.s32 %s335, %s336
        %s338 = smul.addr %s337, 4
        %s339 = scalar_lea.vmem %s4, %s338
        %s340 = smul.u32 32, %s30
        %s341 = smul.u32 2, %s30
        %s342 = smul.u32 32, %s30
        %p343 = scmp.lt.s32.totalorder %s29, 1
        %s344 = scalar_select %p343, %s29, 1
        %p345 = scmp.lt.s32.totalorder %s342, 31
        %s346 = scalar_select %p345, %s342, 31
        %s347 = smul.addr %s344, 128
        %s348 = sadd.s32 %s346, %s347
        %s349 = smul.addr %s348, 4
        %s350 = scalar_lea.vmem %s6, %s349
        %s351 = smul.u32 32, %s30
        %v353 = vld [vmem:[%s279] sm:$0xf]
        %v354 = vld [vmem:[%s279 + $0x4] sm:$0xf]
        %v355 = vld [vmem:[%s279 + $0x8] sm:$0xf]
        %v356 = vld [vmem:[%s279 + $0xc] sm:$0xf]
        %v357 = vld [vmem:[%s279 + $0x10] sm:$0xf]
        %v358 = vld [vmem:[%s279 + $0x14] sm:$0xf]
        %v359 = vld [vmem:[%s279 + $0x18] sm:$0xf]
        %v360 = vld [vmem:[%s279 + $0x1c] sm:$0xf]
        %v361 = vld [vmem:[%s279 + $0x20] sm:$0xf]
        %v362 = vld [vmem:[%s279 + $0x24] sm:$0xf]
        %v363 = vld [vmem:[%s279 + $0x28] sm:$0xf]
        %v364 = vld [vmem:[%s279 + $0x2c] sm:$0xf]
        %v365 = vld [vmem:[%s279 + $0x30] sm:$0xf]
        %v366 = vld [vmem:[%s279 + $0x34] sm:$0xf]
        %v367 = vld [vmem:[%s279 + $0x38] sm:$0xf]
        %v368 = vld [vmem:[%s279 + $0x3c] sm:$0xf]
        %v369 = vld [vmem:[%s279 + $0x40] sm:$0xf]
        %v370 = vld [vmem:[%s279 + $0x44] sm:$0xf]
        %v371 = vld [vmem:[%s279 + $0x48] sm:$0xf]
        %v372 = vld [vmem:[%s279 + $0x4c] sm:$0xf]
        %v373 = vld [vmem:[%s279 + $0x50] sm:$0xf]
        %v374 = vld [vmem:[%s279 + $0x54] sm:$0xf]
        %v375 = vld [vmem:[%s279 + $0x58] sm:$0xf]
        %v376 = vld [vmem:[%s279 + $0x5c] sm:$0xf]
        %v377 = vld [vmem:[%s279 + $0x60] sm:$0xf]
        %v378 = vld [vmem:[%s279 + $0x64] sm:$0xf]
        %v379 = vld [vmem:[%s279 + $0x68] sm:$0xf]
        %v380 = vld [vmem:[%s279 + $0x6c] sm:$0xf]
        %v381 = vld [vmem:[%s279 + $0x70] sm:$0xf]
        %v382 = vld [vmem:[%s279 + $0x74] sm:$0xf]
        %v383 = vld [vmem:[%s279 + $0x78] sm:$0xf]
        %v384 = vld [vmem:[%s279 + $0x7c] sm:$0xf]
        %v385 = vunpack.c.l.bf16 %v353
        %v386 = vunpack.c.l.bf16 %v354
        %v387 = vunpack.c.l.bf16 %v355
        %v388 = vunpack.c.l.bf16 %v356
        %v389 = vunpack.c.l.bf16 %v357
        %v390 = vunpack.c.l.bf16 %v358
        %v391 = vunpack.c.l.bf16 %v359
        %v392 = vunpack.c.l.bf16 %v360
        %v393 = vunpack.c.l.bf16 %v361
        %v394 = vunpack.c.l.bf16 %v362
        %v395 = vunpack.c.l.bf16 %v363
        %v396 = vunpack.c.l.bf16 %v364
        %v397 = vunpack.c.l.bf16 %v365
        %v398 = vunpack.c.l.bf16 %v366
        %v399 = vunpack.c.l.bf16 %v367
        %v400 = vunpack.c.l.bf16 %v368
        %v401 = vunpack.c.l.bf16 %v369
        %v402 = vunpack.c.l.bf16 %v370
        %v403 = vunpack.c.l.bf16 %v371
        %v404 = vunpack.c.l.bf16 %v372
        %v405 = vunpack.c.l.bf16 %v373
        %v406 = vunpack.c.l.bf16 %v374
        %v407 = vunpack.c.l.bf16 %v375
        %v408 = vunpack.c.l.bf16 %v376
        %v409 = vunpack.c.l.bf16 %v377
        %v410 = vunpack.c.l.bf16 %v378
        %v411 = vunpack.c.l.bf16 %v379
        %v412 = vunpack.c.l.bf16 %v380
        %v413 = vunpack.c.l.bf16 %v381
        %v414 = vunpack.c.l.bf16 %v382
        %v415 = vunpack.c.l.bf16 %v383
        %v416 = vunpack.c.l.bf16 %v384
        %v417 = vld [vmem:[%s1] sm:$0x1]
        %v418 = vld [vmem:[%s2] sm:$0x1]
        %419 = vadd.xlane.f32.xlu0 %v385
        %v420 = vpop.xlane.xlu0 %419
        %421 = vadd.xlane.f32.xlu0 %v386
        %v422 = vpop.xlane.xlu0 %421
        %423 = vadd.xlane.f32.xlu0 %v387
        %v424 = vpop.xlane.xlu0 %423
        %425 = vadd.xlane.f32.xlu0 %v388
        %v426 = vpop.xlane.xlu0 %425
        %427 = vadd.xlane.f32.xlu0 %v389
        %v428 = vpop.xlane.xlu0 %427
        %429 = vadd.xlane.f32.xlu0 %v390
        %v430 = vpop.xlane.xlu0 %429
        %431 = vadd.xlane.f32.xlu0 %v391
        %v432 = vpop.xlane.xlu0 %431
        %433 = vadd.xlane.f32.xlu0 %v392
        %v434 = vpop.xlane.xlu0 %433
        %435 = vadd.xlane.f32.xlu0 %v393
        %v436 = vpop.xlane.xlu0 %435
        %437 = vadd.xlane.f32.xlu0 %v394
        %v438 = vpop.xlane.xlu0 %437
        %439 = vadd.xlane.f32.xlu0 %v395
        %v440 = vpop.xlane.xlu0 %439
        %441 = vadd.xlane.f32.xlu0 %v396
        %v442 = vpop.xlane.xlu0 %441
        %443 = vadd.xlane.f32.xlu0 %v397
        %v444 = vpop.xlane.xlu0 %443
        %445 = vadd.xlane.f32.xlu0 %v398
        %v446 = vpop.xlane.xlu0 %445
        %447 = vadd.xlane.f32.xlu0 %v399
        %v448 = vpop.xlane.xlu0 %447
        %449 = vadd.xlane.f32.xlu0 %v400
        %v450 = vpop.xlane.xlu0 %449
        %451 = vadd.xlane.f32.xlu0 %v401
        %v452 = vpop.xlane.xlu0 %451
        %453 = vadd.xlane.f32.xlu0 %v402
        %v454 = vpop.xlane.xlu0 %453
        %455 = vadd.xlane.f32.xlu0 %v403
        %v456 = vpop.xlane.xlu0 %455
        %457 = vadd.xlane.f32.xlu0 %v404
        %v458 = vpop.xlane.xlu0 %457
        %459 = vadd.xlane.f32.xlu0 %v405
        %v460 = vpop.xlane.xlu0 %459
        %461 = vadd.xlane.f32.xlu0 %v406
        %v462 = vpop.xlane.xlu0 %461
        %463 = vadd.xlane.f32.xlu0 %v407
        %v464 = vpop.xlane.xlu0 %463
        %465 = vadd.xlane.f32.xlu0 %v408
        %v466 = vpop.xlane.xlu0 %465
        %467 = vadd.xlane.f32.xlu0 %v409
        %v468 = vpop.xlane.xlu0 %467
        %469 = vadd.xlane.f32.xlu0 %v410
        %v470 = vpop.xlane.xlu0 %469
        %471 = vadd.xlane.f32.xlu0 %v411
        %v472 = vpop.xlane.xlu0 %471
        %473 = vadd.xlane.f32.xlu0 %v412
        %v474 = vpop.xlane.xlu0 %473
        %475 = vadd.xlane.f32.xlu0 %v413
        %v476 = vpop.xlane.xlu0 %475
        %477 = vadd.xlane.f32.xlu0 %v414
        %v478 = vpop.xlane.xlu0 %477
        %479 = vadd.xlane.f32.xlu0 %v415
        %v480 = vpop.xlane.xlu0 %479
        %481 = vadd.xlane.f32.xlu0 %v416
        %v482 = vpop.xlane.xlu0 %481
        %v483 = vrcp.pop 128.0
        %v484 = vmul.f32 %v420, %v483
        %v485 = vmul.f32 %v422, %v483
        %v486 = vmul.f32 %v424, %v483
        %v487 = vmul.f32 %v426, %v483
        %v488 = vmul.f32 %v428, %v483
        %v489 = vmul.f32 %v430, %v483
        %v490 = vmul.f32 %v432, %v483
        %v491 = vmul.f32 %v434, %v483
        %v492 = vmul.f32 %v436, %v483
        %v493 = vmul.f32 %v438, %v483
        %v494 = vmul.f32 %v440, %v483
        %v495 = vmul.f32 %v442, %v483
        %v496 = vmul.f32 %v444, %v483
        %v497 = vmul.f32 %v446, %v483
        %v498 = vmul.f32 %v448, %v483
        %v499 = vmul.f32 %v450, %v483
        %v500 = vmul.f32 %v452, %v483
        %v501 = vmul.f32 %v454, %v483
        %v502 = vmul.f32 %v456, %v483
        %v503 = vmul.f32 %v458, %v483
        %v504 = vmul.f32 %v460, %v483
        %v505 = vmul.f32 %v462, %v483
        %v506 = vmul.f32 %v464, %v483
        %v507 = vmul.f32 %v466, %v483
        %v508 = vmul.f32 %v468, %v483
        %v509 = vmul.f32 %v470, %v483
        %v510 = vmul.f32 %v472, %v483
        %v511 = vmul.f32 %v474, %v483
        %v512 = vmul.f32 %v476, %v483
        %v513 = vmul.f32 %v478, %v483
        %v514 = vmul.f32 %v480, %v483
        %v515 = vmul.f32 %v482, %v483
        %v516 = vsub.f32 %v385, %v484
        %v517 = vsub.f32 %v386, %v485
        %v518 = vsub.f32 %v387, %v486
        %v519 = vsub.f32 %v388, %v487
        %v520 = vsub.f32 %v389, %v488
        %v521 = vsub.f32 %v390, %v489
        %v522 = vsub.f32 %v391, %v490
        %v523 = vsub.f32 %v392, %v491
        %v524 = vsub.f32 %v393, %v492
        %v525 = vsub.f32 %v394, %v493
        %v526 = vsub.f32 %v395, %v494
        %v527 = vsub.f32 %v396, %v495
        %v528 = vsub.f32 %v397, %v496
        %v529 = vsub.f32 %v398, %v497
        %v530 = vsub.f32 %v399, %v498
        %v531 = vsub.f32 %v400, %v499
        %v532 = vsub.f32 %v401, %v500
        %v533 = vsub.f32 %v402, %v501
        %v534 = vsub.f32 %v403, %v502
        %v535 = vsub.f32 %v404, %v503
        %v536 = vsub.f32 %v405, %v504
        %v537 = vsub.f32 %v406, %v505
        %v538 = vsub.f32 %v407, %v506
        %v539 = vsub.f32 %v408, %v507
        %v540 = vsub.f32 %v409, %v508
        %v541 = vsub.f32 %v410, %v509
        %v542 = vsub.f32 %v411, %v510
        %v543 = vsub.f32 %v412, %v511
        %v544 = vsub.f32 %v413, %v512
        %v545 = vsub.f32 %v414, %v513
        %v546 = vsub.f32 %v415, %v514
        %v547 = vsub.f32 %v416, %v515
        %v548 = vmul.f32 %v516, %v516
        %v549 = vmul.f32 %v517, %v517
        %v550 = vmul.f32 %v518, %v518
        %v551 = vmul.f32 %v519, %v519
        %v552 = vmul.f32 %v520, %v520
        %v553 = vmul.f32 %v521, %v521
        %v554 = vmul.f32 %v522, %v522
        %v555 = vmul.f32 %v523, %v523
        %v556 = vmul.f32 %v524, %v524
        %v557 = vmul.f32 %v525, %v525
        %v558 = vmul.f32 %v526, %v526
        %v559 = vmul.f32 %v527, %v527
        %v560 = vmul.f32 %v528, %v528
        %v561 = vmul.f32 %v529, %v529
        %v562 = vmul.f32 %v530, %v530
        %v563 = vmul.f32 %v531, %v531
        %v564 = vmul.f32 %v532, %v532
        %v565 = vmul.f32 %v533, %v533
        %v566 = vmul.f32 %v534, %v534
        %v567 = vmul.f32 %v535, %v535
        %v568 = vmul.f32 %v536, %v536
        %v569 = vmul.f32 %v537, %v537
        %v570 = vmul.f32 %v538, %v538
        %v571 = vmul.f32 %v539, %v539
        %v572 = vmul.f32 %v540, %v540
        %v573 = vmul.f32 %v541, %v541
        %v574 = vmul.f32 %v542, %v542
        %v575 = vmul.f32 %v543, %v543
        %v576 = vmul.f32 %v544, %v544
        %v577 = vmul.f32 %v545, %v545
        %v578 = vmul.f32 %v546, %v546
        %v579 = vmul.f32 %v547, %v547
        %580 = vadd.xlane.f32.xlu0 %v548
        %v581 = vpop.xlane.xlu0 %580
        %582 = vadd.xlane.f32.xlu0 %v549
        %v583 = vpop.xlane.xlu0 %582
        %584 = vadd.xlane.f32.xlu0 %v550
        %v585 = vpop.xlane.xlu0 %584
        %586 = vadd.xlane.f32.xlu0 %v551
        %v587 = vpop.xlane.xlu0 %586
        %588 = vadd.xlane.f32.xlu0 %v552
        %v589 = vpop.xlane.xlu0 %588
        %590 = vadd.xlane.f32.xlu0 %v553
        %v591 = vpop.xlane.xlu0 %590
        %592 = vadd.xlane.f32.xlu0 %v554
        %v593 = vpop.xlane.xlu0 %592
        %594 = vadd.xlane.f32.xlu0 %v555
        %v595 = vpop.xlane.xlu0 %594
        %596 = vadd.xlane.f32.xlu0 %v556
        %v597 = vpop.xlane.xlu0 %596
        %598 = vadd.xlane.f32.xlu0 %v557
        %v599 = vpop.xlane.xlu0 %598
        %600 = vadd.xlane.f32.xlu0 %v558
        %v601 = vpop.xlane.xlu0 %600
        %602 = vadd.xlane.f32.xlu0 %v559
        %v603 = vpop.xlane.xlu0 %602
        %604 = vadd.xlane.f32.xlu0 %v560
        %v605 = vpop.xlane.xlu0 %604
        %606 = vadd.xlane.f32.xlu0 %v561
        %v607 = vpop.xlane.xlu0 %606
        %608 = vadd.xlane.f32.xlu0 %v562
        %v609 = vpop.xlane.xlu0 %608
        %610 = vadd.xlane.f32.xlu0 %v563
        %v611 = vpop.xlane.xlu0 %610
        %612 = vadd.xlane.f32.xlu0 %v564
        %v613 = vpop.xlane.xlu0 %612
        %614 = vadd.xlane.f32.xlu0 %v565
        %v615 = vpop.xlane.xlu0 %614
        %616 = vadd.xlane.f32.xlu0 %v566
        %v617 = vpop.xlane.xlu0 %616
        %618 = vadd.xlane.f32.xlu0 %v567
        %v619 = vpop.xlane.xlu0 %618
        %620 = vadd.xlane.f32.xlu0 %v568
        %v621 = vpop.xlane.xlu0 %620
        %622 = vadd.xlane.f32.xlu0 %v569
        %v623 = vpop.xlane.xlu0 %622
        %624 = vadd.xlane.f32.xlu0 %v570
        %v625 = vpop.xlane.xlu0 %624
        %626 = vadd.xlane.f32.xlu0 %v571
        %v627 = vpop.xlane.xlu0 %626
        %628 = vadd.xlane.f32.xlu0 %v572
        %v629 = vpop.xlane.xlu0 %628
        %630 = vadd.xlane.f32.xlu0 %v573
        %v631 = vpop.xlane.xlu0 %630
        %632 = vadd.xlane.f32.xlu0 %v574
        %v633 = vpop.xlane.xlu0 %632
        %634 = vadd.xlane.f32.xlu0 %v575
        %v635 = vpop.xlane.xlu0 %634
        %636 = vadd.xlane.f32.xlu0 %v576
        %v637 = vpop.xlane.xlu0 %636
        %638 = vadd.xlane.f32.xlu0 %v577
        %v639 = vpop.xlane.xlu0 %638
        %640 = vadd.xlane.f32.xlu0 %v578
        %v641 = vpop.xlane.xlu0 %640
        %642 = vadd.xlane.f32.xlu0 %v579
        %v643 = vpop.xlane.xlu0 %642
        %v644 = vmul.f32 %v581, %v483
        %v645 = vmul.f32 %v583, %v483
        %v646 = vmul.f32 %v585, %v483
        %v647 = vmul.f32 %v587, %v483
        %v648 = vmul.f32 %v589, %v483
        %v649 = vmul.f32 %v591, %v483
        %v650 = vmul.f32 %v593, %v483
        %v651 = vmul.f32 %v595, %v483
        %v652 = vmul.f32 %v597, %v483
        %v653 = vmul.f32 %v599, %v483
        %v654 = vmul.f32 %v601, %v483
        %v655 = vmul.f32 %v603, %v483
        %v656 = vmul.f32 %v605, %v483
        %v657 = vmul.f32 %v607, %v483
        %v658 = vmul.f32 %v609, %v483
        %v659 = vmul.f32 %v611, %v483
        %v660 = vmul.f32 %v613, %v483
        %v661 = vmul.f32 %v615, %v483
        %v662 = vmul.f32 %v617, %v483
        %v663 = vmul.f32 %v619, %v483
        %v664 = vmul.f32 %v621, %v483
        %v665 = vmul.f32 %v623, %v483
        %v666 = vmul.f32 %v625, %v483
        %v667 = vmul.f32 %v627, %v483
        %v668 = vmul.f32 %v629, %v483
        %v669 = vmul.f32 %v631, %v483
        %v670 = vmul.f32 %v633, %v483
        %v671 = vmul.f32 %v635, %v483
        %v672 = vmul.f32 %v637, %v483
        %v673 = vmul.f32 %v639, %v483
        %v674 = vmul.f32 %v641, %v483
        %v675 = vmul.f32 %v643, %v483
        %v676 = vadd.f32 %v644, 1e-05
        %v677 = vadd.f32 %v645, 1e-05
        %v678 = vadd.f32 %v646, 1e-05
        %v679 = vadd.f32 %v647, 1e-05
        %v680 = vadd.f32 %v648, 1e-05
        %v681 = vadd.f32 %v649, 1e-05
        %v682 = vadd.f32 %v650, 1e-05
        %v683 = vadd.f32 %v651, 1e-05
        %v684 = vadd.f32 %v652, 1e-05
        %v685 = vadd.f32 %v653, 1e-05
        %v686 = vadd.f32 %v654, 1e-05
        %v687 = vadd.f32 %v655, 1e-05
        %v688 = vadd.f32 %v656, 1e-05
        %v689 = vadd.f32 %v657, 1e-05
        %v690 = vadd.f32 %v658, 1e-05
        %v691 = vadd.f32 %v659, 1e-05
        %v692 = vadd.f32 %v660, 1e-05
        %v693 = vadd.f32 %v661, 1e-05
        %v694 = vadd.f32 %v662, 1e-05
        %v695 = vadd.f32 %v663, 1e-05
        %v696 = vadd.f32 %v664, 1e-05
        %v697 = vadd.f32 %v665, 1e-05
        %v698 = vadd.f32 %v666, 1e-05
        %v699 = vadd.f32 %v667, 1e-05
        %v700 = vadd.f32 %v668, 1e-05
        %v701 = vadd.f32 %v669, 1e-05
        %v702 = vadd.f32 %v670, 1e-05
        %v703 = vadd.f32 %v671, 1e-05
        %v704 = vadd.f32 %v672, 1e-05
        %v705 = vadd.f32 %v673, 1e-05
        %v706 = vadd.f32 %v674, 1e-05
        %v707 = vadd.f32 %v675, 1e-05
        %v708 = vrsqrt.pop %v676
        %v709 = vrsqrt.pop %v677
        %v710 = vrsqrt.pop %v678
        %v711 = vrsqrt.pop %v679
        %v712 = vrsqrt.pop %v680
        %v713 = vrsqrt.pop %v681
        %v714 = vrsqrt.pop %v682
        %v715 = vrsqrt.pop %v683
        %v716 = vrsqrt.pop %v684
        %v717 = vrsqrt.pop %v685
        %v718 = vrsqrt.pop %v686
        %v719 = vrsqrt.pop %v687
        %v720 = vrsqrt.pop %v688
        %v721 = vrsqrt.pop %v689
        %v722 = vrsqrt.pop %v690
        %v723 = vrsqrt.pop %v691
        %v724 = vrsqrt.pop %v692
        %v725 = vrsqrt.pop %v693
        %v726 = vrsqrt.pop %v694
        %v727 = vrsqrt.pop %v695
        %v728 = vrsqrt.pop %v696
        %v729 = vrsqrt.pop %v697
        %v730 = vrsqrt.pop %v698
        %v731 = vrsqrt.pop %v699
        %v732 = vrsqrt.pop %v700
        %v733 = vrsqrt.pop %v701
        %v734 = vrsqrt.pop %v702
        %v735 = vrsqrt.pop %v703
        %v736 = vrsqrt.pop %v704
        %v737 = vrsqrt.pop %v705
        %v738 = vrsqrt.pop %v706
        %v739 = vrsqrt.pop %v707
        %v740 = vmul.f32 %v516, %v708
        %v741 = vmul.f32 %v517, %v709
        %v742 = vmul.f32 %v518, %v710
        %v743 = vmul.f32 %v519, %v711
        %v744 = vmul.f32 %v520, %v712
        %v745 = vmul.f32 %v521, %v713
        %v746 = vmul.f32 %v522, %v714
        %v747 = vmul.f32 %v523, %v715
        %v748 = vmul.f32 %v524, %v716
        %v749 = vmul.f32 %v525, %v717
        %v750 = vmul.f32 %v526, %v718
        %v751 = vmul.f32 %v527, %v719
        %v752 = vmul.f32 %v528, %v720
        %v753 = vmul.f32 %v529, %v721
        %v754 = vmul.f32 %v530, %v722
        %v755 = vmul.f32 %v531, %v723
        %v756 = vmul.f32 %v532, %v724
        %v757 = vmul.f32 %v533, %v725
        %v758 = vmul.f32 %v534, %v726
        %v759 = vmul.f32 %v535, %v727
        %v760 = vmul.f32 %v536, %v728
        %v761 = vmul.f32 %v537, %v729
        %v762 = vmul.f32 %v538, %v730
        %v763 = vmul.f32 %v539, %v731
        %v764 = vmul.f32 %v540, %v732
        %v765 = vmul.f32 %v541, %v733
        %v766 = vmul.f32 %v542, %v734
        %v767 = vmul.f32 %v543, %v735
        %v768 = vmul.f32 %v544, %v736
        %v769 = vmul.f32 %v545, %v737
        %v770 = vmul.f32 %v546, %v738
        %v771 = vmul.f32 %v547, %v739
        %v773 = vlaneseq
        %v774 = vshrl.u32 %v773, 7
        %v775 = vsub.s32 0, %v774
        %v776 = vrot.slane %v417, %v775
        %v778 = vmul.f32 %v740, %v776
        %v779 = vmul.f32 %v741, %v776
        %v780 = vmul.f32 %v742, %v776
        %v781 = vmul.f32 %v743, %v776
        %v782 = vmul.f32 %v744, %v776
        %v783 = vmul.f32 %v745, %v776
        %v784 = vmul.f32 %v746, %v776
        %v785 = vmul.f32 %v747, %v776
        %v786 = vmul.f32 %v748, %v776
        %v787 = vmul.f32 %v749, %v776
        %v788 = vmul.f32 %v750, %v776
        %v789 = vmul.f32 %v751, %v776
        %v790 = vmul.f32 %v752, %v776
        %v791 = vmul.f32 %v753, %v776
        %v792 = vmul.f32 %v754, %v776
        %v793 = vmul.f32 %v755, %v776
        %v794 = vmul.f32 %v756, %v776
        %v795 = vmul.f32 %v757, %v776
        %v796 = vmul.f32 %v758, %v776
        %v797 = vmul.f32 %v759, %v776
        %v798 = vmul.f32 %v760, %v776
        %v799 = vmul.f32 %v761, %v776
        %v800 = vmul.f32 %v762, %v776
        %v801 = vmul.f32 %v763, %v776
        %v802 = vmul.f32 %v764, %v776
        %v803 = vmul.f32 %v765, %v776
        %v804 = vmul.f32 %v766, %v776
        %v805 = vmul.f32 %v767, %v776
        %v806 = vmul.f32 %v768, %v776
        %v807 = vmul.f32 %v769, %v776
        %v808 = vmul.f32 %v770, %v776
        %v809 = vmul.f32 %v771, %v776
        %v811 = vlaneseq
        %v812 = vshrl.u32 %v811, 7
        %v813 = vsub.s32 0, %v812
        %v814 = vrot.slane %v418, %v813
        %v816 = vadd.f32 %v778, %v814
        %v817 = vadd.f32 %v779, %v814
        %v818 = vadd.f32 %v780, %v814
        %v819 = vadd.f32 %v781, %v814
        %v820 = vadd.f32 %v782, %v814
        %v821 = vadd.f32 %v783, %v814
        %v822 = vadd.f32 %v784, %v814
        %v823 = vadd.f32 %v785, %v814
        %v824 = vadd.f32 %v786, %v814
        %v825 = vadd.f32 %v787, %v814
        %v826 = vadd.f32 %v788, %v814
        %v827 = vadd.f32 %v789, %v814
        %v828 = vadd.f32 %v790, %v814
        %v829 = vadd.f32 %v791, %v814
        %v830 = vadd.f32 %v792, %v814
        %v831 = vadd.f32 %v793, %v814
        %v832 = vadd.f32 %v794, %v814
        %v833 = vadd.f32 %v795, %v814
        %v834 = vadd.f32 %v796, %v814
        %v835 = vadd.f32 %v797, %v814
        %v836 = vadd.f32 %v798, %v814
        %v837 = vadd.f32 %v799, %v814
        %v838 = vadd.f32 %v800, %v814
        %v839 = vadd.f32 %v801, %v814
        %v840 = vadd.f32 %v802, %v814
        %v841 = vadd.f32 %v803, %v814
        %v842 = vadd.f32 %v804, %v814
        %v843 = vadd.f32 %v805, %v814
        %v844 = vadd.f32 %v806, %v814
        %v845 = vadd.f32 %v807, %v814
        %v846 = vadd.f32 %v808, %v814
        %v847 = vadd.f32 %v809, %v814
        %v848 = vpack.c.bf16 %v817, %v816
        %v849 = vpack.c.bf16 %v819, %v818
        %v850 = vpack.c.bf16 %v821, %v820
        %v851 = vpack.c.bf16 %v823, %v822
        %v852 = vpack.c.bf16 %v825, %v824
        %v853 = vpack.c.bf16 %v827, %v826
        %v854 = vpack.c.bf16 %v829, %v828
        %v855 = vpack.c.bf16 %v831, %v830
        %v856 = vpack.c.bf16 %v833, %v832
        %v857 = vpack.c.bf16 %v835, %v834
        %v858 = vpack.c.bf16 %v837, %v836
        %v859 = vpack.c.bf16 %v839, %v838
        %v860 = vpack.c.bf16 %v841, %v840
        %v861 = vpack.c.bf16 %v843, %v842
        %v862 = vpack.c.bf16 %v845, %v844
        %v863 = vpack.c.bf16 %v847, %v846
        %v864 = vld [vmem:[#allocation5] sm:$0xff]
        %v865 = vld [vmem:[#allocation5 + $0x8] sm:$0xf]
        %v866 = vld [vmem:[#allocation5 + $0xc] sm:$0xff]
        %v867 = vld [vmem:[#allocation5 + $0x14] sm:$0xf]
        %v868 = vld [vmem:[#allocation5 + $0x18] sm:$0xff]
        %v869 = vld [vmem:[#allocation5 + $0x20] sm:$0xf]
        %v870 = vld [vmem:[#allocation5 + $0x24] sm:$0xff]
        %v871 = vld [vmem:[#allocation5 + $0x2c] sm:$0xf]
        %v872 = vld [vmem:[#allocation5 + $0x30] sm:$0xff]
        %v873 = vld [vmem:[#allocation5 + $0x38] sm:$0xf]
        %v874 = vld [vmem:[#allocation5 + $0x3c] sm:$0xff]
        %v875 = vld [vmem:[#allocation5 + $0x44] sm:$0xf]
        %v876 = vld [vmem:[#allocation5 + $0x48] sm:$0xff]
        %v877 = vld [vmem:[#allocation5 + $0x50] sm:$0xf]
        %v878 = vld [vmem:[#allocation5 + $0x54] sm:$0xff]
        %v879 = vld [vmem:[#allocation5 + $0x5c] sm:$0xf]
        %v880 = vld [vmem:[#allocation5 + $0x60] sm:$0xff]
        %v881 = vld [vmem:[#allocation5 + $0x68] sm:$0xf]
        %v882 = vld [vmem:[#allocation5 + $0x6c] sm:$0xff]
        %v883 = vld [vmem:[#allocation5 + $0x74] sm:$0xf]
        %v884 = vld [vmem:[#allocation5 + $0x78] sm:$0xff]
        %v885 = vld [vmem:[#allocation5 + $0x80] sm:$0xf]
        %v886 = vld [vmem:[#allocation5 + $0x84] sm:$0xff]
        %v887 = vld [vmem:[#allocation5 + $0x8c] sm:$0xf]
        %v888 = vld [vmem:[#allocation5 + $0x90] sm:$0xff]
        %v889 = vld [vmem:[#allocation5 + $0x98] sm:$0xf]
        %v890 = vld [vmem:[#allocation5 + $0x9c] sm:$0xff]
        %v891 = vld [vmem:[#allocation5 + $0xa4] sm:$0xf]
        %v892 = vld [vmem:[#allocation5 + $0xa8] sm:$0xff]
        %v893 = vld [vmem:[#allocation5 + $0xb0] sm:$0xf]
        %v894 = vld [vmem:[#allocation5 + $0xb4] sm:$0xff]
        %v895 = vld [vmem:[#allocation5 + $0xbc] sm:$0xf]
        %v928 = vunpack.c.l.b16 %v864
        %v929 = vunpack.c.h.b16 %v864
        %v930 = vunpack.c.l.b16 %v865
        %v931 = vunpack.c.l.b16 %v866
        %v932 = vunpack.c.h.b16 %v866
        %v933 = vunpack.c.l.b16 %v867
        %v934 = vunpack.c.l.b16 %v868
        %v935 = vunpack.c.h.b16 %v868
        %v936 = vunpack.c.l.b16 %v869
        %v937 = vunpack.c.l.b16 %v870
        %v938 = vunpack.c.h.b16 %v870
        %v939 = vunpack.c.l.b16 %v871
        %v940 = vunpack.c.l.b16 %v872
        %v941 = vunpack.c.h.b16 %v872
        %v942 = vunpack.c.l.b16 %v873
        %v943 = vunpack.c.l.b16 %v874
        %v944 = vunpack.c.h.b16 %v874
        %v945 = vunpack.c.l.b16 %v875
        %v946 = vunpack.c.l.b16 %v876
        %v947 = vunpack.c.h.b16 %v876
        %v948 = vunpack.c.l.b16 %v877
        %v949 = vunpack.c.l.b16 %v878
        %v950 = vunpack.c.h.b16 %v878
        %v951 = vunpack.c.l.b16 %v879
        %v952 = vunpack.c.l.b16 %v880
        %v953 = vunpack.c.h.b16 %v880
        %v954 = vunpack.c.l.b16 %v881
        %v955 = vunpack.c.l.b16 %v882
        %v956 = vunpack.c.h.b16 %v882
        %v957 = vunpack.c.l.b16 %v883
        %v958 = vunpack.c.l.b16 %v884
        %v959 = vunpack.c.h.b16 %v884
        %v960 = vunpack.c.l.b16 %v885
        %v961 = vunpack.c.l.b16 %v886
        %v962 = vunpack.c.h.b16 %v886
        %v963 = vunpack.c.l.b16 %v887
        %v964 = vunpack.c.l.b16 %v888
        %v965 = vunpack.c.h.b16 %v888
        %v966 = vunpack.c.l.b16 %v889
        %v967 = vunpack.c.l.b16 %v890
        %v968 = vunpack.c.h.b16 %v890
        %v969 = vunpack.c.l.b16 %v891
        %v970 = vunpack.c.l.b16 %v892
        %v971 = vunpack.c.h.b16 %v892
        %v972 = vunpack.c.l.b16 %v893
        %v973 = vunpack.c.l.b16 %v894
        %v974 = vunpack.c.h.b16 %v894
        %v975 = vunpack.c.l.b16 %v895
        %v976 = vpack.c.b16 %v931, %v928
        %v977 = vpack.c.b16 %v932, %v929
        %v978 = vpack.c.b16 %v933, %v930
        %v979 = vpack.c.b16 %v937, %v934
        %v980 = vpack.c.b16 %v938, %v935
        %v981 = vpack.c.b16 %v939, %v936
        %v982 = vpack.c.b16 %v943, %v940
        %v983 = vpack.c.b16 %v944, %v941
        %v984 = vpack.c.b16 %v945, %v942
        %v985 = vpack.c.b16 %v949, %v946
        %v986 = vpack.c.b16 %v950, %v947
        %v987 = vpack.c.b16 %v951, %v948
        %v988 = vpack.c.b16 %v955, %v952
        %v989 = vpack.c.b16 %v956, %v953
        %v990 = vpack.c.b16 %v957, %v954
        %v991 = vpack.c.b16 %v961, %v958
        %v992 = vpack.c.b16 %v962, %v959
        %v993 = vpack.c.b16 %v963, %v960
        %v994 = vpack.c.b16 %v967, %v964
        %v995 = vpack.c.b16 %v968, %v965
        %v996 = vpack.c.b16 %v969, %v966
        %v997 = vpack.c.b16 %v973, %v970
        %v998 = vpack.c.b16 %v974, %v971
        %v999 = vpack.c.b16 %v975, %v972
        %1024 = vmatprep.subr.bf16.mxu0 %v977
        %1025 = vmatpush1.bf16.msra.mxu0 %v976
        %1026 = vmatprep.subr.bf16.mxu0 %v980
        %1027 = vmatpush1.bf16.msra.mxu0 %v979
        %1028 = vmatprep.subr.bf16.mxu0 %v983
        %1029 = vmatpush1.bf16.msra.mxu0 %v982
        %1030 = vmatprep.subr.bf16.mxu0 %v986
        %1031 = vmatpush1.bf16.msra.mxu0 %v985
        %1032 = vmatprep.subr.bf16.mxu0 %v989
        %1033 = vmatpush1.bf16.msra.mxu0 %v988
        %1034 = vmatprep.subr.bf16.mxu0 %v992
        %1035 = vmatpush1.bf16.msra.mxu0 %v991
        %1036 = vmatprep.subr.bf16.mxu0 %v995
        %1037 = vmatpush1.bf16.msra.mxu0 %v994
        %1038 = vmatprep.subr.bf16.mxu0 %v998
        %1039 = vmatpush1.bf16.msra.mxu0 %v997
        %1040 = vmatprep.subr.bf16.mxu0 0
        %1041 = vmatpush1.bf16.msra.mxu0 0
        %1042 = vmatprep.subr.bf16.mxu0 0
        %1043 = vmatpush1.bf16.msra.mxu0 0
        %1044 = vmatprep.subr.bf16.mxu0 0
        %1045 = vmatpush1.bf16.msra.mxu0 0
        %1046 = vmatprep.subr.bf16.mxu0 0
        %1047 = vmatpush1.bf16.msra.mxu0 0
        %1048 = vmatprep.subr.bf16.mxu0 0
        %1049 = vmatpush1.bf16.msra.mxu0 0
        %1050 = vmatprep.subr.bf16.mxu0 0
        %1051 = vmatpush1.bf16.msra.mxu0 0
        %1052 = vmatprep.subr.bf16.mxu0 0
        %1053 = vmatpush1.bf16.msra.mxu0 0
        %1054 = vmatprep.subr.bf16.mxu0 0
        %1055 = vmatpush1.bf16.msra.mxu0 0
        %1056 = vmatprep.mubr.bf16.mxu0 0
        %1057 = vmatmul.mubr.bf16.gmra.mrb[0].mxu0 %v848
        %v1058 = vpop.f32.mrb[0].mxu0
        %v1059 = vadd.f32 0.0, %v1058
        %v1060 = vpop.f32.mrb[0].mxu0
        %v1061 = vadd.f32 0.0, %v1060
        %v1062 = vpop.f32.mrb[0].mxu0
        %v1063 = vadd.f32 0.0, %v1062
        %v1064 = vpop.f32.mrb[0].mxu0
        %v1065 = vadd.f32 0.0, %v1064
        %1066 = vmatprep.mubr.bf16.mxu0 0
        %1067 = vmatmul.mubr.bf16.gmra.mrb[0].mxu0 %v849
        %v1068 = vpop.f32.mrb[0].mxu0
        %v1069 = vadd.f32 0.0, %v1068
        %v1070 = vpop.f32.mrb[0].mxu0
        %v1071 = vadd.f32 0.0, %v1070
        %v1072 = vpop.f32.mrb[0].mxu0
        %v1073 = vadd.f32 0.0, %v1072
        %v1074 = vpop.f32.mrb[0].mxu0
        %v1075 = vadd.f32 0.0, %v1074
        %1076 = vmatprep.mubr.bf16.mxu0 0
        %1077 = vmatmul.mubr.bf16.gmra.mrb[0].mxu0 %v850
        %v1078 = vpop.f32.mrb[0].mxu0
        %v1079 = vadd.f32 0.0, %v1078
        %v1080 = vpop.f32.mrb[0].mxu0
        %v1081 = vadd.f32 0.0, %v1080
        %v1082 = vpop.f32.mrb[0].mxu0
        %v1083 = vadd.f32 0.0, %v1082
        %v1084 = vpop.f32.mrb[0].mxu0
        %v1085 = vadd.f32 0.0, %v1084
        %1086 = vmatprep.mubr.bf16.mxu0 0
        %1087 = vmatmul.mubr.bf16.gmra.mrb[0].mxu0 %v851
        %v1088 = vpop.f32.mrb[0].mxu0
        %v1089 = vadd.f32 0.0, %v1088
        %v1090 = vpop.f32.mrb[0].mxu0
        %v1091 = vadd.f32 0.0, %v1090
        %v1092 = vpop.f32.mrb[0].mxu0
        %v1093 = vadd.f32 0.0, %v1092
        %v1094 = vpop.f32.mrb[0].mxu0
        %v1095 = vadd.f32 0.0, %v1094
        %1096 = vmatprep.mubr.bf16.mxu0 0
        %1097 = vmatmul.mubr.bf16.gmra.mrb[0].mxu0 %v852
        %v1098 = vpop.f32.mrb[0].mxu0
        %v1099 = vadd.f32 0.0, %v1098
        %v1100 = vpop.f32.mrb[0].mxu0
        %v1101 = vadd.f32 0.0, %v1100
        %v1102 = vpop.f32.mrb[0].mxu0
        %v1103 = vadd.f32 0.0, %v1102
        %v1104 = vpop.f32.mrb[0].mxu0
        %v1105 = vadd.f32 0.0, %v1104
        %1106 = vmatprep.mubr.bf16.mxu0 0
        %1107 = vmatmul.mubr.bf16.gmra.mrb[0].mxu0 %v853
        %v1108 = vpop.f32.mrb[0].mxu0
        %v1109 = vadd.f32 0.0, %v1108
        %v1110 = vpop.f32.mrb[0].mxu0
        %v1111 = vadd.f32 0.0, %v1110
        %v1112 = vpop.f32.mrb[0].mxu0
        %v1113 = vadd.f32 0.0, %v1112
        %v1114 = vpop.f32.mrb[0].mxu0
        %v1115 = vadd.f32 0.0, %v1114
        %1116 = vmatprep.mubr.bf16.mxu0 0
        %1117 = vmatmul.mubr.bf16.gmra.mrb[0].mxu0 %v854
        %v1118 = vpop.f32.mrb[0].mxu0
        %v1119 = vadd.f32 0.0, %v1118
        %v1120 = vpop.f32.mrb[0].mxu0
        %v1121 = vadd.f32 0.0, %v1120
        %v1122 = vpop.f32.mrb[0].mxu0
        %v1123 = vadd.f32 0.0, %v1122
        %v1124 = vpop.f32.mrb[0].mxu0
        %v1125 = vadd.f32 0.0, %v1124
        %1126 = vmatprep.mubr.bf16.mxu0 0
        %1127 = vmatmul.mubr.bf16.gmra.mrb[0].mxu0 %v855
        %v1128 = vpop.f32.mrb[0].mxu0
        %v1129 = vadd.f32 0.0, %v1128
        %v1130 = vpop.f32.mrb[0].mxu0
        %v1131 = vadd.f32 0.0, %v1130
        %v1132 = vpop.f32.mrb[0].mxu0
        %v1133 = vadd.f32 0.0, %v1132
        %v1134 = vpop.f32.mrb[0].mxu0
        %v1135 = vadd.f32 0.0, %v1134
        %1136 = vmatprep.mubr.bf16.mxu0 0
        %1137 = vmatmul.mubr.bf16.gmra.mrb[0].mxu0 %v856
        %v1138 = vpop.f32.mrb[0].mxu0
        %v1139 = vadd.f32 0.0, %v1138
        %v1140 = vpop.f32.mrb[0].mxu0
        %v1141 = vadd.f32 0.0, %v1140
        %v1142 = vpop.f32.mrb[0].mxu0
        %v1143 = vadd.f32 0.0, %v1142
        %v1144 = vpop.f32.mrb[0].mxu0
        %v1145 = vadd.f32 0.0, %v1144
        %1146 = vmatprep.mubr.bf16.mxu0 0
        %1147 = vmatmul.mubr.bf16.gmra.mrb[0].mxu0 %v857
        %v1148 = vpop.f32.mrb[0].mxu0
        %v1149 = vadd.f32 0.0, %v1148
        %v1150 = vpop.f32.mrb[0].mxu0
        %v1151 = vadd.f32 0.0, %v1150
        %v1152 = vpop.f32.mrb[0].mxu0
        %v1153 = vadd.f32 0.0, %v1152
        %v1154 = vpop.f32.mrb[0].mxu0
        %v1155 = vadd.f32 0.0, %v1154
        %1156 = vmatprep.mubr.bf16.mxu0 0
        %1157 = vmatmul.mubr.bf16.gmra.mrb[0].mxu0 %v858
        %v1158 = vpop.f32.mrb[0].mxu0
        %v1159 = vadd.f32 0.0, %v1158
        %v1160 = vpop.f32.mrb[0].mxu0
        %v1161 = vadd.f32 0.0, %v1160
        %v1162 = vpop.f32.mrb[0].mxu0
        %v1163 = vadd.f32 0.0, %v1162
        %v1164 = vpop.f32.mrb[0].mxu0
        %v1165 = vadd.f32 0.0, %v1164
        %1166 = vmatprep.mubr.bf16.mxu0 0
        %1167 = vmatmul.mubr.bf16.gmra.mrb[0].mxu0 %v859
        %v1168 = vpop.f32.mrb[0].mxu0
        %v1169 = vadd.f32 0.0, %v1168
        %v1170 = vpop.f32.mrb[0].mxu0
        %v1171 = vadd.f32 0.0, %v1170
        %v1172 = vpop.f32.mrb[0].mxu0
        %v1173 = vadd.f32 0.0, %v1172
        %v1174 = vpop.f32.mrb[0].mxu0
        %v1175 = vadd.f32 0.0, %v1174
        %1176 = vmatprep.mubr.bf16.mxu0 0
        %1177 = vmatmul.mubr.bf16.gmra.mrb[0].mxu0 %v860
        %v1178 = vpop.f32.mrb[0].mxu0
        %v1179 = vadd.f32 0.0, %v1178
        %v1180 = vpop.f32.mrb[0].mxu0
        %v1181 = vadd.f32 0.0, %v1180
        %v1182 = vpop.f32.mrb[0].mxu0
        %v1183 = vadd.f32 0.0, %v1182
        %v1184 = vpop.f32.mrb[0].mxu0
        %v1185 = vadd.f32 0.0, %v1184
        %1186 = vmatprep.mubr.bf16.mxu0 0
        %1187 = vmatmul.mubr.bf16.gmra.mrb[0].mxu0 %v861
        %v1188 = vpop.f32.mrb[0].mxu0
        %v1189 = vadd.f32 0.0, %v1188
        %v1190 = vpop.f32.mrb[0].mxu0
        %v1191 = vadd.f32 0.0, %v1190
        %v1192 = vpop.f32.mrb[0].mxu0
        %v1193 = vadd.f32 0.0, %v1192
        %v1194 = vpop.f32.mrb[0].mxu0
        %v1195 = vadd.f32 0.0, %v1194
        %1196 = vmatprep.mubr.bf16.mxu0 0
        %1197 = vmatmul.mubr.bf16.gmra.mrb[0].mxu0 %v862
        %v1198 = vpop.f32.mrb[0].mxu0
        %v1199 = vadd.f32 0.0, %v1198
        %v1200 = vpop.f32.mrb[0].mxu0
        %v1201 = vadd.f32 0.0, %v1200
        %v1202 = vpop.f32.mrb[0].mxu0
        %v1203 = vadd.f32 0.0, %v1202
        %v1204 = vpop.f32.mrb[0].mxu0
        %v1205 = vadd.f32 0.0, %v1204
        %1206 = vmatprep.mubr.bf16.mxu0 0
        %1207 = vmatmul.mubr.bf16.gmra.mrb[0].mxu0 %v863
        %v1208 = vpop.f32.mrb[0].mxu0
        %v1209 = vadd.f32 0.0, %v1208
        %v1210 = vpop.f32.mrb[0].mxu0
        %v1211 = vadd.f32 0.0, %v1210
        %v1212 = vpop.f32.mrb[0].mxu0
        %v1213 = vadd.f32 0.0, %v1212
        %v1214 = vpop.f32.mrb[0].mxu0
        %v1215 = vadd.f32 0.0, %v1214
        %1216 = vdwg.mxu0
        %1217 = vmatprep.subr.bf16.mxu0 0
        %1218 = vmatpush1.bf16.msra.mxu0 %v978
        %1219 = vmatprep.subr.bf16.mxu0 0
        %1220 = vmatpush1.bf16.msra.mxu0 %v981
        %1221 = vmatprep.subr.bf16.mxu0 0
        %1222 = vmatpush1.bf16.msra.mxu0 %v984
        %1223 = vmatprep.subr.bf16.mxu0 0
        %1224 = vmatpush1.bf16.msra.mxu0 %v987
        %1225 = vmatprep.subr.bf16.mxu0 0
        %1226 = vmatpush1.bf16.msra.mxu0 %v990
        %1227 = vmatprep.subr.bf16.mxu0 0
        %1228 = vmatpush1.bf16.msra.mxu0 %v993
        %1229 = vmatprep.subr.bf16.mxu0 0
        %1230 = vmatpush1.bf16.msra.mxu0 %v996
        %1231 = vmatprep.subr.bf16.mxu0 0
        %1232 = vmatpush1.bf16.msra.mxu0 %v999
        %1233 = vmatprep.subr.bf16.mxu0 0
        %1234 = vmatpush1.bf16.msra.mxu0 0
        %1235 = vmatprep.subr.bf16.mxu0 0
        %1236 = vmatpush1.bf16.msra.mxu0 0
        %1237 = vmatprep.subr.bf16.mxu0 0
        %1238 = vmatpush1.bf16.msra.mxu0 0
        %1239 = vmatprep.subr.bf16.mxu0 0
        %1240 = vmatpush1.bf16.msra.mxu0 0
        %1241 = vmatprep.subr.bf16.mxu0 0
        %1242 = vmatpush1.bf16.msra.mxu0 0
        %1243 = vmatprep.subr.bf16.mxu0 0
        %1244 = vmatpush1.bf16.msra.mxu0 0
        %1245 = vmatprep.subr.bf16.mxu0 0
        %1246 = vmatpush1.bf16.msra.mxu0 0
        %1247 = vmatprep.subr.bf16.mxu0 0
        %1248 = vmatpush1.bf16.msra.mxu0 0
        %1249 = vmatprep.mubr.bf16.mxu0 0
        %1250 = vmatmul.mubr.bf16.gmra.mrb[0].mxu0 %v848
        %v1251 = vpop.f32.mrb[0].mxu0
        %v1252 = vadd.f32 0.0, %v1251
        %v1253 = vpop.f32.mrb[0].mxu0
        %v1254 = vpop.f32.mrb[0].mxu0
        %v1255 = vadd.f32 0.0, %v1254
        %v1256 = vpop.f32.mrb[0].mxu0
        %1257 = vmatprep.mubr.bf16.mxu0 0
        %1258 = vmatmul.mubr.bf16.gmra.mrb[0].mxu0 %v849
        %v1259 = vpop.f32.mrb[0].mxu0
        %v1260 = vadd.f32 0.0, %v1259
        %v1261 = vpop.f32.mrb[0].mxu0
        %v1262 = vpop.f32.mrb[0].mxu0
        %v1263 = vadd.f32 0.0, %v1262
        %v1264 = vpop.f32.mrb[0].mxu0
        %1265 = vmatprep.mubr.bf16.mxu0 0
        %1266 = vmatmul.mubr.bf16.gmra.mrb[0].mxu0 %v850
        %v1267 = vpop.f32.mrb[0].mxu0
        %v1268 = vadd.f32 0.0, %v1267
        %v1269 = vpop.f32.mrb[0].mxu0
        %v1270 = vpop.f32.mrb[0].mxu0
        %v1271 = vadd.f32 0.0, %v1270
        %v1272 = vpop.f32.mrb[0].mxu0
        %1273 = vmatprep.mubr.bf16.mxu0 0
        %1274 = vmatmul.mubr.bf16.gmra.mrb[0].mxu0 %v851
        %v1275 = vpop.f32.mrb[0].mxu0
        %v1276 = vadd.f32 0.0, %v1275
        %v1277 = vpop.f32.mrb[0].mxu0
        %v1278 = vpop.f32.mrb[0].mxu0
        %v1279 = vadd.f32 0.0, %v1278
        %v1280 = vpop.f32.mrb[0].mxu0
        %1281 = vmatprep.mubr.bf16.mxu0 0
        %1282 = vmatmul.mubr.bf16.gmra.mrb[0].mxu0 %v852
        %v1283 = vpop.f32.mrb[0].mxu0
        %v1284 = vadd.f32 0.0, %v1283
        %v1285 = vpop.f32.mrb[0].mxu0
        %v1286 = vpop.f32.mrb[0].mxu0
        %v1287 = vadd.f32 0.0, %v1286
        %v1288 = vpop.f32.mrb[0].mxu0
        %1289 = vmatprep.mubr.bf16.mxu0 0
        %1290 = vmatmul.mubr.bf16.gmra.mrb[0].mxu0 %v853
        %v1291 = vpop.f32.mrb[0].mxu0
        %v1292 = vadd.f32 0.0, %v1291
        %v1293 = vpop.f32.mrb[0].mxu0
        %v1294 = vpop.f32.mrb[0].mxu0
        %v1295 = vadd.f32 0.0, %v1294
        %v1296 = vpop.f32.mrb[0].mxu0
        %1297 = vmatprep.mubr.bf16.mxu0 0
        %1298 = vmatmul.mubr.bf16.gmra.mrb[0].mxu0 %v854
        %v1299 = vpop.f32.mrb[0].mxu0
        %v1300 = vadd.f32 0.0, %v1299
        %v1301 = vpop.f32.mrb[0].mxu0
        %v1302 = vpop.f32.mrb[0].mxu0
        %v1303 = vadd.f32 0.0, %v1302
        %v1304 = vpop.f32.mrb[0].mxu0
        %1305 = vmatprep.mubr.bf16.mxu0 0
        %1306 = vmatmul.mubr.bf16.gmra.mrb[0].mxu0 %v855
        %v1307 = vpop.f32.mrb[0].mxu0
        %v1308 = vadd.f32 0.0, %v1307
        %v1309 = vpop.f32.mrb[0].mxu0
        %v1310 = vpop.f32.mrb[0].mxu0
        %v1311 = vadd.f32 0.0, %v1310
        %v1312 = vpop.f32.mrb[0].mxu0
        %1313 = vmatprep.mubr.bf16.mxu0 0
        %1314 = vmatmul.mubr.bf16.gmra.mrb[0].mxu0 %v856
        %v1315 = vpop.f32.mrb[0].mxu0
        %v1316 = vadd.f32 0.0, %v1315
        %v1317 = vpop.f32.mrb[0].mxu0
        %v1318 = vpop.f32.mrb[0].mxu0
        %v1319 = vadd.f32 0.0, %v1318
        %v1320 = vpop.f32.mrb[0].mxu0
        %1321 = vmatprep.mubr.bf16.mxu0 0
        %1322 = vmatmul.mubr.bf16.gmra.mrb[0].mxu0 %v857
        %v1323 = vpop.f32.mrb[0].mxu0
        %v1324 = vadd.f32 0.0, %v1323
        %v1325 = vpop.f32.mrb[0].mxu0
        %v1326 = vpop.f32.mrb[0].mxu0
        %v1327 = vadd.f32 0.0, %v1326
        %v1328 = vpop.f32.mrb[0].mxu0
        %1329 = vmatprep.mubr.bf16.mxu0 0
        %1330 = vmatmul.mubr.bf16.gmra.mrb[0].mxu0 %v858
        %v1331 = vpop.f32.mrb[0].mxu0
        %v1332 = vadd.f32 0.0, %v1331
        %v1333 = vpop.f32.mrb[0].mxu0
        %v1334 = vpop.f32.mrb[0].mxu0
        %v1335 = vadd.f32 0.0, %v1334
        %v1336 = vpop.f32.mrb[0].mxu0
        %1337 = vmatprep.mubr.bf16.mxu0 0
        %1338 = vmatmul.mubr.bf16.gmra.mrb[0].mxu0 %v859
        %v1339 = vpop.f32.mrb[0].mxu0
        %v1340 = vadd.f32 0.0, %v1339
        %v1341 = vpop.f32.mrb[0].mxu0
        %v1342 = vpop.f32.mrb[0].mxu0
        %v1343 = vadd.f32 0.0, %v1342
        %v1344 = vpop.f32.mrb[0].mxu0
        %1345 = vmatprep.mubr.bf16.mxu0 0
        %1346 = vmatmul.mubr.bf16.gmra.mrb[0].mxu0 %v860
        %v1347 = vpop.f32.mrb[0].mxu0
        %v1348 = vadd.f32 0.0, %v1347
        %v1349 = vpop.f32.mrb[0].mxu0
        %v1350 = vpop.f32.mrb[0].mxu0
        %v1351 = vadd.f32 0.0, %v1350
        %v1352 = vpop.f32.mrb[0].mxu0
        %1353 = vmatprep.mubr.bf16.mxu0 0
        %1354 = vmatmul.mubr.bf16.gmra.mrb[0].mxu0 %v861
        %v1355 = vpop.f32.mrb[0].mxu0
        %v1356 = vadd.f32 0.0, %v1355
        %v1357 = vpop.f32.mrb[0].mxu0
        %v1358 = vpop.f32.mrb[0].mxu0
        %v1359 = vadd.f32 0.0, %v1358
        %v1360 = vpop.f32.mrb[0].mxu0
        %1361 = vmatprep.mubr.bf16.mxu0 0
        %1362 = vmatmul.mubr.bf16.gmra.mrb[0].mxu0 %v862
        %v1363 = vpop.f32.mrb[0].mxu0
        %v1364 = vadd.f32 0.0, %v1363
        %v1365 = vpop.f32.mrb[0].mxu0
        %v1366 = vpop.f32.mrb[0].mxu0
        %v1367 = vadd.f32 0.0, %v1366
        %v1368 = vpop.f32.mrb[0].mxu0
        %1369 = vmatprep.mubr.bf16.mxu0 0
        %1370 = vmatmul.mubr.bf16.gmra.mrb[0].mxu0 %v863
        %v1371 = vpop.f32.mrb[0].mxu0
        %v1372 = vadd.f32 0.0, %v1371
        %v1373 = vpop.f32.mrb[0].mxu0
        %v1374 = vpop.f32.mrb[0].mxu0
        %v1375 = vadd.f32 0.0, %v1374
        %v1376 = vpop.f32.mrb[0].mxu0
        %1377 = vdwg.mxu0
        %1378 = vxpose.xlu0.b32.start [1/16] %v1061, 128
        %1379 = vxpose.xlu0.b32.cont [2/16] %v1065, 128
        %1380 = vxpose.xlu0.b32.cont [3/16] %v1071, 128
        %1381 = vxpose.xlu0.b32.cont [4/16] %v1075, 128
        %1382 = vxpose.xlu0.b32.cont [5/16] %v1081, 128
        %1383 = vxpose.xlu0.b32.cont [6/16] %v1085, 128
        %1384 = vxpose.xlu0.b32.cont [7/16] %v1091, 128
        %1385 = vxpose.xlu0.b32.cont [8/16] %v1095, 128
        %1386 = vxpose.xlu0.b32.cont [9/16] %v1101, 128
        %1387 = vxpose.xlu0.b32.cont [10/16] %v1105, 128
        %1388 = vxpose.xlu0.b32.cont [11/16] %v1111, 128
        %1389 = vxpose.xlu0.b32.cont [12/16] %v1115, 128
        %1390 = vxpose.xlu0.b32.cont [13/16] %v1121, 128
        %1391 = vxpose.xlu0.b32.cont [14/16] %v1125, 128
        %1392 = vxpose.xlu0.b32.cont [15/16] %v1131, 128
        %1393 = vxpose.xlu0.b32.end [16/16] %v1135, 128
        %v1394 = vpop.trf.xlu0
        %v1395 = vpop.trf.xlu0
        %v1396 = vpop.trf.xlu0
        %v1397 = vpop.trf.xlu0
        %v1398 = vpop.trf.xlu0
        %v1399 = vpop.trf.xlu0
        %v1400 = vpop.trf.xlu0
        %v1401 = vpop.trf.xlu0
        %v1402 = vpop.trf.xlu0
        %v1403 = vpop.trf.xlu0
        %v1404 = vpop.trf.xlu0
        %v1405 = vpop.trf.xlu0
        %v1406 = vpop.trf.xlu0
        %v1407 = vpop.trf.xlu0
        %v1408 = vpop.trf.xlu0
        %v1409 = vpop.trf.xlu0
        %1410 = vxpose.xlu0.b32.start [1/16] %v1141, 128
        %1411 = vxpose.xlu0.b32.cont [2/16] %v1145, 128
        %1412 = vxpose.xlu0.b32.cont [3/16] %v1151, 128
        %1413 = vxpose.xlu0.b32.cont [4/16] %v1155, 128
        %1414 = vxpose.xlu0.b32.cont [5/16] %v1161, 128
        %1415 = vxpose.xlu0.b32.cont [6/16] %v1165, 128
        %1416 = vxpose.xlu0.b32.cont [7/16] %v1171, 128
        %1417 = vxpose.xlu0.b32.cont [8/16] %v1175, 128
        %1418 = vxpose.xlu0.b32.cont [9/16] %v1181, 128
        %1419 = vxpose.xlu0.b32.cont [10/16] %v1185, 128
        %1420 = vxpose.xlu0.b32.cont [11/16] %v1191, 128
        %1421 = vxpose.xlu0.b32.cont [12/16] %v1195, 128
        %1422 = vxpose.xlu0.b32.cont [13/16] %v1201, 128
        %1423 = vxpose.xlu0.b32.cont [14/16] %v1205, 128
        %1424 = vxpose.xlu0.b32.cont [15/16] %v1211, 128
        %1425 = vxpose.xlu0.b32.end [16/16] %v1215, 128
        %v1426 = vpop.trf.xlu0
        %v1427 = vpop.trf.xlu0
        %v1428 = vpop.trf.xlu0
        %v1429 = vpop.trf.xlu0
        %v1430 = vpop.trf.xlu0
        %v1431 = vpop.trf.xlu0
        %v1432 = vpop.trf.xlu0
        %v1433 = vpop.trf.xlu0
        %v1434 = vpop.trf.xlu0
        %v1435 = vpop.trf.xlu0
        %v1436 = vpop.trf.xlu0
        %v1437 = vpop.trf.xlu0
        %v1438 = vpop.trf.xlu0
        %v1439 = vpop.trf.xlu0
        %v1440 = vpop.trf.xlu0
        %v1441 = vpop.trf.xlu0
        %v1442 = vmul.f32 %v1059, 0.17677669
        %v1443 = vmul.f32 %v1063, 0.17677669
        %v1444 = vmul.f32 %v1069, 0.17677669
        %v1445 = vmul.f32 %v1073, 0.17677669
        %v1446 = vmul.f32 %v1079, 0.17677669
        %v1447 = vmul.f32 %v1083, 0.17677669
        %v1448 = vmul.f32 %v1089, 0.17677669
        %v1449 = vmul.f32 %v1093, 0.17677669
        %v1450 = vmul.f32 %v1099, 0.17677669
        %v1451 = vmul.f32 %v1103, 0.17677669
        %v1452 = vmul.f32 %v1109, 0.17677669
        %v1453 = vmul.f32 %v1113, 0.17677669
        %v1454 = vmul.f32 %v1119, 0.17677669
        %v1455 = vmul.f32 %v1123, 0.17677669
        %v1456 = vmul.f32 %v1129, 0.17677669
        %v1457 = vmul.f32 %v1133, 0.17677669
        %v1458 = vmul.f32 %v1139, 0.17677669
        %v1459 = vmul.f32 %v1143, 0.17677669
        %v1460 = vmul.f32 %v1149, 0.17677669
        %v1461 = vmul.f32 %v1153, 0.17677669
        %v1462 = vmul.f32 %v1159, 0.17677669
        %v1463 = vmul.f32 %v1163, 0.17677669
        %v1464 = vmul.f32 %v1169, 0.17677669
        %v1465 = vmul.f32 %v1173, 0.17677669
        %v1466 = vmul.f32 %v1179, 0.17677669
        %v1467 = vmul.f32 %v1183, 0.17677669
        %v1468 = vmul.f32 %v1189, 0.17677669
        %v1469 = vmul.f32 %v1193, 0.17677669
        %v1470 = vmul.f32 %v1199, 0.17677669
        %v1471 = vmul.f32 %v1203, 0.17677669
        %v1472 = vmul.f32 %v1209, 0.17677669
        %v1473 = vmul.f32 %v1213, 0.17677669
        %v1474 = vpack.c.bf16 %v1443, %v1442
        %v1475 = vpack.c.bf16 %v1445, %v1444
        %v1476 = vpack.c.bf16 %v1447, %v1446
        %v1477 = vpack.c.bf16 %v1449, %v1448
        %v1478 = vpack.c.bf16 %v1451, %v1450
        %v1479 = vpack.c.bf16 %v1453, %v1452
        %v1480 = vpack.c.bf16 %v1455, %v1454
        %v1481 = vpack.c.bf16 %v1457, %v1456
        %v1482 = vpack.c.bf16 %v1459, %v1458
        %v1483 = vpack.c.bf16 %v1461, %v1460
        %v1484 = vpack.c.bf16 %v1463, %v1462
        %v1485 = vpack.c.bf16 %v1465, %v1464
        %v1486 = vpack.c.bf16 %v1467, %v1466
        %v1487 = vpack.c.bf16 %v1469, %v1468
        %v1488 = vpack.c.bf16 %v1471, %v1470
        %v1489 = vpack.c.bf16 %v1473, %v1472
        %v1506 = vunpack.c.l.b16 %v1474
        %v1507 = vunpack.c.h.b16 %v1474
        %v1508 = vunpack.c.l.b16 %v1475
        %v1509 = vunpack.c.h.b16 %v1475
        %v1510 = vunpack.c.l.b16 %v1476
        %v1511 = vunpack.c.h.b16 %v1476
        %v1512 = vunpack.c.l.b16 %v1477
        %v1513 = vunpack.c.h.b16 %v1477
        %v1514 = vunpack.c.l.b16 %v1478
        %v1515 = vunpack.c.h.b16 %v1478
        %v1516 = vunpack.c.l.b16 %v1479
        %v1517 = vunpack.c.h.b16 %v1479
        %v1518 = vunpack.c.l.b16 %v1480
        %v1519 = vunpack.c.h.b16 %v1480
        %v1520 = vunpack.c.l.b16 %v1481
        %v1521 = vunpack.c.h.b16 %v1481
        %v1522 = vunpack.c.l.b16 %v1482
        %v1523 = vunpack.c.h.b16 %v1482
        %v1524 = vunpack.c.l.b16 %v1483
        %v1525 = vunpack.c.h.b16 %v1483
        %v1526 = vunpack.c.l.b16 %v1484
        %v1527 = vunpack.c.h.b16 %v1484
        %v1528 = vunpack.c.l.b16 %v1485
        %v1529 = vunpack.c.h.b16 %v1485
        %v1530 = vunpack.c.l.b16 %v1486
        %v1531 = vunpack.c.h.b16 %v1486
        %v1532 = vunpack.c.l.b16 %v1487
        %v1533 = vunpack.c.h.b16 %v1487
        %v1534 = vunpack.c.l.b16 %v1488
        %v1535 = vunpack.c.h.b16 %v1488
        %v1536 = vunpack.c.l.b16 %v1489
        %v1537 = vunpack.c.h.b16 %v1489
        %v1538 = vpack.c.b16 %v1506, %v1506
        %v1539 = vpack.c.b16 %v1507, %v1507
        %v1540 = vpack.c.b16 %v1508, %v1508
        %v1541 = vpack.c.b16 %v1509, %v1509
        %v1542 = vpack.c.b16 %v1510, %v1510
        %v1543 = vpack.c.b16 %v1511, %v1511
        %v1544 = vpack.c.b16 %v1512, %v1512
        %v1545 = vpack.c.b16 %v1513, %v1513
        %v1546 = vpack.c.b16 %v1514, %v1514
        %v1547 = vpack.c.b16 %v1515, %v1515
        %v1548 = vpack.c.b16 %v1516, %v1516
        %v1549 = vpack.c.b16 %v1517, %v1517
        %v1550 = vpack.c.b16 %v1518, %v1518
        %v1551 = vpack.c.b16 %v1519, %v1519
        %v1552 = vpack.c.b16 %v1520, %v1520
        %v1553 = vpack.c.b16 %v1521, %v1521
        %v1554 = vpack.c.b16 %v1522, %v1522
        %v1555 = vpack.c.b16 %v1523, %v1523
        %v1556 = vpack.c.b16 %v1524, %v1524
        %v1557 = vpack.c.b16 %v1525, %v1525
        %v1558 = vpack.c.b16 %v1526, %v1526
        %v1559 = vpack.c.b16 %v1527, %v1527
        %v1560 = vpack.c.b16 %v1528, %v1528
        %v1561 = vpack.c.b16 %v1529, %v1529
        %v1562 = vpack.c.b16 %v1530, %v1530
        %v1563 = vpack.c.b16 %v1531, %v1531
        %v1564 = vpack.c.b16 %v1532, %v1532
        %v1565 = vpack.c.b16 %v1533, %v1533
        %v1566 = vpack.c.b16 %v1534, %v1534
        %v1567 = vpack.c.b16 %v1535, %v1535
        %v1568 = vpack.c.b16 %v1536, %v1536
        %v1569 = vpack.c.b16 %v1537, %v1537
        %vm1602 = vcmask 257024
        %1603 = vst.msk [vmem:[%s339] sm:$0xf] %vm1602, %v1538
        %1604 = vst.msk [vmem:[%s339 + $0x4] sm:$0xf] %vm1602, %v1539
        %1605 = vst.msk [vmem:[%s339 + $0x8] sm:$0xf] %vm1602, %v1540
        %1606 = vst.msk [vmem:[%s339 + $0xc] sm:$0xf] %vm1602, %v1541
        %1607 = vst.msk [vmem:[%s339 + $0x10] sm:$0xf] %vm1602, %v1542
        %1608 = vst.msk [vmem:[%s339 + $0x14] sm:$0xf] %vm1602, %v1543
        %1609 = vst.msk [vmem:[%s339 + $0x18] sm:$0xf] %vm1602, %v1544
        %1610 = vst.msk [vmem:[%s339 + $0x1c] sm:$0xf] %vm1602, %v1545
        %1611 = vst.msk [vmem:[%s339 + $0x20] sm:$0xf] %vm1602, %v1546
        %1612 = vst.msk [vmem:[%s339 + $0x24] sm:$0xf] %vm1602, %v1547
        %1613 = vst.msk [vmem:[%s339 + $0x28] sm:$0xf] %vm1602, %v1548
        %1614 = vst.msk [vmem:[%s339 + $0x2c] sm:$0xf] %vm1602, %v1549
        %1615 = vst.msk [vmem:[%s339 + $0x30] sm:$0xf] %vm1602, %v1550
        %1616 = vst.msk [vmem:[%s339 + $0x34] sm:$0xf] %vm1602, %v1551
        %1617 = vst.msk [vmem:[%s339 + $0x38] sm:$0xf] %vm1602, %v1552
        %1618 = vst.msk [vmem:[%s339 + $0x3c] sm:$0xf] %vm1602, %v1553
        %1619 = vst.msk [vmem:[%s339 + $0x40] sm:$0xf] %vm1602, %v1554
        %1620 = vst.msk [vmem:[%s339 + $0x44] sm:$0xf] %vm1602, %v1555
        %1621 = vst.msk [vmem:[%s339 + $0x48] sm:$0xf] %vm1602, %v1556
        %1622 = vst.msk [vmem:[%s339 + $0x4c] sm:$0xf] %vm1602, %v1557
        %1623 = vst.msk [vmem:[%s339 + $0x50] sm:$0xf] %vm1602, %v1558
        %1624 = vst.msk [vmem:[%s339 + $0x54] sm:$0xf] %vm1602, %v1559
        %1625 = vst.msk [vmem:[%s339 + $0x58] sm:$0xf] %vm1602, %v1560
        %1626 = vst.msk [vmem:[%s339 + $0x5c] sm:$0xf] %vm1602, %v1561
        %1627 = vst.msk [vmem:[%s339 + $0x60] sm:$0xf] %vm1602, %v1562
        %1628 = vst.msk [vmem:[%s339 + $0x64] sm:$0xf] %vm1602, %v1563
        %1629 = vst.msk [vmem:[%s339 + $0x68] sm:$0xf] %vm1602, %v1564
        %1630 = vst.msk [vmem:[%s339 + $0x6c] sm:$0xf] %vm1602, %v1565
        %1631 = vst.msk [vmem:[%s339 + $0x70] sm:$0xf] %vm1602, %v1566
        %1632 = vst.msk [vmem:[%s339 + $0x74] sm:$0xf] %vm1602, %v1567
        %1633 = vst.msk [vmem:[%s339 + $0x78] sm:$0xf] %vm1602, %v1568
        %1634 = vst.msk [vmem:[%s339 + $0x7c] sm:$0xf] %vm1602, %v1569
        %v1635 = vpack.c.bf16 %v1395, %v1394
        %v1636 = vpack.c.bf16 %v1427, %v1426
        %v1637 = vpack.c.bf16 %v1397, %v1396
        %v1638 = vpack.c.bf16 %v1429, %v1428
        %v1643 = vunpack.c.l.b16 %v1635
        %v1644 = vunpack.c.l.b16 %v1636
        %v1645 = vunpack.c.h.b16 %v1635
        %v1646 = vunpack.c.h.b16 %v1636
        %v1647 = vunpack.c.l.b16 %v1637
        %v1648 = vunpack.c.l.b16 %v1638
        %v1649 = vunpack.c.h.b16 %v1637
        %v1650 = vunpack.c.h.b16 %v1638
        %v1651 = vpack.c.b16 %v1644, %v1643
        %v1652 = vpack.c.b16 %v1646, %v1645
        %v1653 = vpack.c.b16 %v1648, %v1647
        %v1654 = vpack.c.b16 %v1650, %v1649
        %1659 = vst [vmem:[%s318] sm:$0xff] %v1651
        %1660 = vst [vmem:[%s318 + $0x8] sm:$0xff] %v1652
        %1661 = vst [vmem:[%s318 + $0x10] sm:$0xff] %v1653
        %1662 = vst [vmem:[%s318 + $0x18] sm:$0xff] %v1654
        %v1663 = vpack.c.bf16 %v1255, %v1252
        %v1664 = vpack.c.bf16 %v1263, %v1260
        %v1665 = vpack.c.bf16 %v1271, %v1268
        %v1666 = vpack.c.bf16 %v1279, %v1276
        %v1667 = vpack.c.bf16 %v1287, %v1284
        %v1668 = vpack.c.bf16 %v1295, %v1292
        %v1669 = vpack.c.bf16 %v1303, %v1300
        %v1670 = vpack.c.bf16 %v1311, %v1308
        %v1671 = vpack.c.bf16 %v1319, %v1316
        %v1672 = vpack.c.bf16 %v1327, %v1324
        %v1673 = vpack.c.bf16 %v1335, %v1332
        %v1674 = vpack.c.bf16 %v1343, %v1340
        %v1675 = vpack.c.bf16 %v1351, %v1348
        %v1676 = vpack.c.bf16 %v1359, %v1356
        %v1677 = vpack.c.bf16 %v1367, %v1364
        %v1678 = vpack.c.bf16 %v1375, %v1372
        %v1695 = vunpack.c.l.b16 %v1663
        %v1696 = vunpack.c.h.b16 %v1663
        %v1697 = vunpack.c.l.b16 %v1664
        %v1698 = vunpack.c.h.b16 %v1664
        %v1699 = vunpack.c.l.b16 %v1665
        %v1700 = vunpack.c.h.b16 %v1665
        %v1701 = vunpack.c.l.b16 %v1666
        %v1702 = vunpack.c.h.b16 %v1666
        %v1703 = vunpack.c.l.b16 %v1667
        %v1704 = vunpack.c.h.b16 %v1667
        %v1705 = vunpack.c.l.b16 %v1668
        %v1706 = vunpack.c.h.b16 %v1668
        %v1707 = vunpack.c.l.b16 %v1669
        %v1708 = vunpack.c.h.b16 %v1669
        %v1709 = vunpack.c.l.b16 %v1670
        %v1710 = vunpack.c.h.b16 %v1670
        %v1711 = vunpack.c.l.b16 %v1671
        %v1712 = vunpack.c.h.b16 %v1671
        %v1713 = vunpack.c.l.b16 %v1672
        %v1714 = vunpack.c.h.b16 %v1672
        %v1715 = vunpack.c.l.b16 %v1673
        %v1716 = vunpack.c.h.b16 %v1673
        %v1717 = vunpack.c.l.b16 %v1674
        %v1718 = vunpack.c.h.b16 %v1674
        %v1719 = vunpack.c.l.b16 %v1675
        %v1720 = vunpack.c.h.b16 %v1675
        %v1721 = vunpack.c.l.b16 %v1676
        %v1722 = vunpack.c.h.b16 %v1676
        %v1723 = vunpack.c.l.b16 %v1677
        %v1724 = vunpack.c.h.b16 %v1677
        %v1725 = vunpack.c.l.b16 %v1678
        %v1726 = vunpack.c.h.b16 %v1678
        %v1727 = vpack.c.b16 %v1695, %v1695
        %v1728 = vpack.c.b16 %v1696, %v1696
        %v1729 = vpack.c.b16 %v1697, %v1697
        %v1730 = vpack.c.b16 %v1698, %v1698
        %v1731 = vpack.c.b16 %v1699, %v1699
        %v1732 = vpack.c.b16 %v1700, %v1700
        %v1733 = vpack.c.b16 %v1701, %v1701
        %v1734 = vpack.c.b16 %v1702, %v1702
        %v1735 = vpack.c.b16 %v1703, %v1703
        %v1736 = vpack.c.b16 %v1704, %v1704
        %v1737 = vpack.c.b16 %v1705, %v1705
        %v1738 = vpack.c.b16 %v1706, %v1706
        %v1739 = vpack.c.b16 %v1707, %v1707
        %v1740 = vpack.c.b16 %v1708, %v1708
        %v1741 = vpack.c.b16 %v1709, %v1709
        %v1742 = vpack.c.b16 %v1710, %v1710
        %v1743 = vpack.c.b16 %v1711, %v1711
        %v1744 = vpack.c.b16 %v1712, %v1712
        %v1745 = vpack.c.b16 %v1713, %v1713
        %v1746 = vpack.c.b16 %v1714, %v1714
        %v1747 = vpack.c.b16 %v1715, %v1715
        %v1748 = vpack.c.b16 %v1716, %v1716
        %v1749 = vpack.c.b16 %v1717, %v1717
        %v1750 = vpack.c.b16 %v1718, %v1718
        %v1751 = vpack.c.b16 %v1719, %v1719
        %v1752 = vpack.c.b16 %v1720, %v1720
        %v1753 = vpack.c.b16 %v1721, %v1721
        %v1754 = vpack.c.b16 %v1722, %v1722
        %v1755 = vpack.c.b16 %v1723, %v1723
        %v1756 = vpack.c.b16 %v1724, %v1724
        %v1757 = vpack.c.b16 %v1725, %v1725
        %v1758 = vpack.c.b16 %v1726, %v1726
        %1791 = vst.msk [vmem:[%s350] sm:$0xf] %vm1602, %v1727
        %1792 = vst.msk [vmem:[%s350 + $0x4] sm:$0xf] %vm1602, %v1728
        %1793 = vst.msk [vmem:[%s350 + $0x8] sm:$0xf] %vm1602, %v1729
        %1794 = vst.msk [vmem:[%s350 + $0xc] sm:$0xf] %vm1602, %v1730
        %1795 = vst.msk [vmem:[%s350 + $0x10] sm:$0xf] %vm1602, %v1731
        %1796 = vst.msk [vmem:[%s350 + $0x14] sm:$0xf] %vm1602, %v1732
        %1797 = vst.msk [vmem:[%s350 + $0x18] sm:$0xf] %vm1602, %v1733
        %1798 = vst.msk [vmem:[%s350 + $0x1c] sm:$0xf] %vm1602, %v1734
        %1799 = vst.msk [vmem:[%s350 + $0x20] sm:$0xf] %vm1602, %v1735
        %1800 = vst.msk [vmem:[%s350 + $0x24] sm:$0xf] %vm1602, %v1736
        %1801 = vst.msk [vmem:[%s350 + $0x28] sm:$0xf] %vm1602, %v1737
        %1802 = vst.msk [vmem:[%s350 + $0x2c] sm:$0xf] %vm1602, %v1738
        %1803 = vst.msk [vmem:[%s350 + $0x30] sm:$0xf] %vm1602, %v1739
        %1804 = vst.msk [vmem:[%s350 + $0x34] sm:$0xf] %vm1602, %v1740
        %1805 = vst.msk [vmem:[%s350 + $0x38] sm:$0xf] %vm1602, %v1741
        %1806 = vst.msk [vmem:[%s350 + $0x3c] sm:$0xf] %vm1602, %v1742
        %1807 = vst.msk [vmem:[%s350 + $0x40] sm:$0xf] %vm1602, %v1743
        %1808 = vst.msk [vmem:[%s350 + $0x44] sm:$0xf] %vm1602, %v1744
        %1809 = vst.msk [vmem:[%s350 + $0x48] sm:$0xf] %vm1602, %v1745
        %1810 = vst.msk [vmem:[%s350 + $0x4c] sm:$0xf] %vm1602, %v1746
        %1811 = vst.msk [vmem:[%s350 + $0x50] sm:$0xf] %vm1602, %v1747
        %1812 = vst.msk [vmem:[%s350 + $0x54] sm:$0xf] %vm1602, %v1748
        %1813 = vst.msk [vmem:[%s350 + $0x58] sm:$0xf] %vm1602, %v1749
        %1814 = vst.msk [vmem:[%s350 + $0x5c] sm:$0xf] %vm1602, %v1750
        %1815 = vst.msk [vmem:[%s350 + $0x60] sm:$0xf] %vm1602, %v1751
        %1816 = vst.msk [vmem:[%s350 + $0x64] sm:$0xf] %vm1602, %v1752
        %1817 = vst.msk [vmem:[%s350 + $0x68] sm:$0xf] %vm1602, %v1753
        %1818 = vst.msk [vmem:[%s350 + $0x6c] sm:$0xf] %vm1602, %v1754
        %1819 = vst.msk [vmem:[%s350 + $0x70] sm:$0xf] %vm1602, %v1755
        %1820 = vst.msk [vmem:[%s350 + $0x74] sm:$0xf] %vm1602, %v1756
        %1821 = vst.msk [vmem:[%s350 + $0x78] sm:$0xf] %vm1602, %v1757
        %1822 = vst.msk [vmem:[%s350 + $0x7c] sm:$0xf] %vm1602, %v1758
        %1823 = vrot.lane.b32.xlu0 %v1538, 96
        %v1824 = vpop.permute.xlu0 %1823
        %1825 = vrot.lane.b32.xlu0 %v1539, 96
        %v1826 = vpop.permute.xlu0 %1825
        %1827 = vrot.lane.b32.xlu0 %v1540, 96
        %v1828 = vpop.permute.xlu0 %1827
        %1829 = vrot.lane.b32.xlu0 %v1541, 96
        %v1830 = vpop.permute.xlu0 %1829
        %1831 = vrot.lane.b32.xlu0 %v1542, 96
        %v1832 = vpop.permute.xlu0 %1831
        %1833 = vrot.lane.b32.xlu0 %v1543, 96
        %v1834 = vpop.permute.xlu0 %1833
        %1835 = vrot.lane.b32.xlu0 %v1544, 96
        %v1836 = vpop.permute.xlu0 %1835
        %1837 = vrot.lane.b32.xlu0 %v1545, 96
        %v1838 = vpop.permute.xlu0 %1837
        %1839 = vrot.lane.b32.xlu0 %v1546, 96
        %v1840 = vpop.permute.xlu0 %1839
        %1841 = vrot.lane.b32.xlu0 %v1547, 96
        %v1842 = vpop.permute.xlu0 %1841
        %1843 = vrot.lane.b32.xlu0 %v1548, 96
        %v1844 = vpop.permute.xlu0 %1843
        %1845 = vrot.lane.b32.xlu0 %v1549, 96
        %v1846 = vpop.permute.xlu0 %1845
        %1847 = vrot.lane.b32.xlu0 %v1550, 96
        %v1848 = vpop.permute.xlu0 %1847
        %1849 = vrot.lane.b32.xlu0 %v1551, 96
        %v1850 = vpop.permute.xlu0 %1849
        %1851 = vrot.lane.b32.xlu0 %v1552, 96
        %v1852 = vpop.permute.xlu0 %1851
        %1853 = vrot.lane.b32.xlu0 %v1553, 96
        %v1854 = vpop.permute.xlu0 %1853
        %1855 = vrot.lane.b32.xlu0 %v1554, 96
        %v1856 = vpop.permute.xlu0 %1855
        %1857 = vrot.lane.b32.xlu0 %v1555, 96
        %v1858 = vpop.permute.xlu0 %1857
        %1859 = vrot.lane.b32.xlu0 %v1556, 96
        %v1860 = vpop.permute.xlu0 %1859
        %1861 = vrot.lane.b32.xlu0 %v1557, 96
        %v1862 = vpop.permute.xlu0 %1861
        %1863 = vrot.lane.b32.xlu0 %v1558, 96
        %v1864 = vpop.permute.xlu0 %1863
        %1865 = vrot.lane.b32.xlu0 %v1559, 96
        %v1866 = vpop.permute.xlu0 %1865
        %1867 = vrot.lane.b32.xlu0 %v1560, 96
        %v1868 = vpop.permute.xlu0 %1867
        %1869 = vrot.lane.b32.xlu0 %v1561, 96
        %v1870 = vpop.permute.xlu0 %1869
        %1871 = vrot.lane.b32.xlu0 %v1562, 96
        %v1872 = vpop.permute.xlu0 %1871
        %1873 = vrot.lane.b32.xlu0 %v1563, 96
        %v1874 = vpop.permute.xlu0 %1873
        %1875 = vrot.lane.b32.xlu0 %v1564, 96
        %v1876 = vpop.permute.xlu0 %1875
        %1877 = vrot.lane.b32.xlu0 %v1565, 96
        %v1878 = vpop.permute.xlu0 %1877
        %1879 = vrot.lane.b32.xlu0 %v1566, 96
        %v1880 = vpop.permute.xlu0 %1879
        %1881 = vrot.lane.b32.xlu0 %v1567, 96
        %v1882 = vpop.permute.xlu0 %1881
        %1883 = vrot.lane.b32.xlu0 %v1568, 96
        %v1884 = vpop.permute.xlu0 %1883
        %1885 = vrot.lane.b32.xlu0 %v1569, 96
        %v1886 = vpop.permute.xlu0 %1885
        %s1919 = scalar_lea.vmem %s339, 128
        %1920 = vst.msk [vmem:[%s1919] sm:$0xf] %vm1602, %v1824
        %1921 = vst.msk [vmem:[%s1919 + $0x4] sm:$0xf] %vm1602, %v1826
        %1922 = vst.msk [vmem:[%s1919 + $0x8] sm:$0xf] %vm1602, %v1828
        %1923 = vst.msk [vmem:[%s1919 + $0xc] sm:$0xf] %vm1602, %v1830
        %1924 = vst.msk [vmem:[%s1919 + $0x10] sm:$0xf] %vm1602, %v1832
        %1925 = vst.msk [vmem:[%s1919 + $0x14] sm:$0xf] %vm1602, %v1834
        %1926 = vst.msk [vmem:[%s1919 + $0x18] sm:$0xf] %vm1602, %v1836
        %1927 = vst.msk [vmem:[%s1919 + $0x1c] sm:$0xf] %vm1602, %v1838
        %1928 = vst.msk [vmem:[%s1919 + $0x20] sm:$0xf] %vm1602, %v1840
        %1929 = vst.msk [vmem:[%s1919 + $0x24] sm:$0xf] %vm1602, %v1842
        %1930 = vst.msk [vmem:[%s1919 + $0x28] sm:$0xf] %vm1602, %v1844
        %1931 = vst.msk [vmem:[%s1919 + $0x2c] sm:$0xf] %vm1602, %v1846
        %1932 = vst.msk [vmem:[%s1919 + $0x30] sm:$0xf] %vm1602, %v1848
        %1933 = vst.msk [vmem:[%s1919 + $0x34] sm:$0xf] %vm1602, %v1850
        %1934 = vst.msk [vmem:[%s1919 + $0x38] sm:$0xf] %vm1602, %v1852
        %1935 = vst.msk [vmem:[%s1919 + $0x3c] sm:$0xf] %vm1602, %v1854
        %1936 = vst.msk [vmem:[%s1919 + $0x40] sm:$0xf] %vm1602, %v1856
        %1937 = vst.msk [vmem:[%s1919 + $0x44] sm:$0xf] %vm1602, %v1858
        %1938 = vst.msk [vmem:[%s1919 + $0x48] sm:$0xf] %vm1602, %v1860
        %1939 = vst.msk [vmem:[%s1919 + $0x4c] sm:$0xf] %vm1602, %v1862
        %1940 = vst.msk [vmem:[%s1919 + $0x50] sm:$0xf] %vm1602, %v1864
        %1941 = vst.msk [vmem:[%s1919 + $0x54] sm:$0xf] %vm1602, %v1866
        %1942 = vst.msk [vmem:[%s1919 + $0x58] sm:$0xf] %vm1602, %v1868
        %1943 = vst.msk [vmem:[%s1919 + $0x5c] sm:$0xf] %vm1602, %v1870
        %1944 = vst.msk [vmem:[%s1919 + $0x60] sm:$0xf] %vm1602, %v1872
        %1945 = vst.msk [vmem:[%s1919 + $0x64] sm:$0xf] %vm1602, %v1874
        %1946 = vst.msk [vmem:[%s1919 + $0x68] sm:$0xf] %vm1602, %v1876
        %1947 = vst.msk [vmem:[%s1919 + $0x6c] sm:$0xf] %vm1602, %v1878
        %1948 = vst.msk [vmem:[%s1919 + $0x70] sm:$0xf] %vm1602, %v1880
        %1949 = vst.msk [vmem:[%s1919 + $0x74] sm:$0xf] %vm1602, %v1882
        %1950 = vst.msk [vmem:[%s1919 + $0x78] sm:$0xf] %vm1602, %v1884
        %1951 = vst.msk [vmem:[%s1919 + $0x7c] sm:$0xf] %vm1602, %v1886
        %v1952 = vpack.c.bf16 %v1399, %v1398
        %v1953 = vpack.c.bf16 %v1431, %v1430
        %v1954 = vpack.c.bf16 %v1401, %v1400
        %v1955 = vpack.c.bf16 %v1433, %v1432
        %v1960 = vunpack.c.l.b16 %v1952
        %v1961 = vunpack.c.l.b16 %v1953
        %v1962 = vunpack.c.h.b16 %v1952
        %v1963 = vunpack.c.h.b16 %v1953
        %v1964 = vunpack.c.l.b16 %v1954
        %v1965 = vunpack.c.l.b16 %v1955
        %v1966 = vunpack.c.h.b16 %v1954
        %v1967 = vunpack.c.h.b16 %v1955
        %v1968 = vpack.c.b16 %v1961, %v1960
        %v1969 = vpack.c.b16 %v1963, %v1962
        %v1970 = vpack.c.b16 %v1965, %v1964
        %v1971 = vpack.c.b16 %v1967, %v1966
        %s1976 = scalar_lea.vmem %s318, 32 [#allocation7]
        %1977 = vst [vmem:[%s1976] sm:$0xff] %v1968
        %1978 = vst [vmem:[%s1976 + $0x8] sm:$0xff] %v1969
        %1979 = vst [vmem:[%s1976 + $0x10] sm:$0xff] %v1970
        %1980 = vst [vmem:[%s1976 + $0x18] sm:$0xff] %v1971
        %1981 = vrot.lane.b32.xlu0 %v1727, 96
        %v1982 = vpop.permute.xlu0 %1981
        %1983 = vrot.lane.b32.xlu0 %v1728, 96
        %v1984 = vpop.permute.xlu0 %1983
        %1985 = vrot.lane.b32.xlu0 %v1729, 96
        %v1986 = vpop.permute.xlu0 %1985
        %1987 = vrot.lane.b32.xlu0 %v1730, 96
        %v1988 = vpop.permute.xlu0 %1987
        %1989 = vrot.lane.b32.xlu0 %v1731, 96
        %v1990 = vpop.permute.xlu0 %1989
        %1991 = vrot.lane.b32.xlu0 %v1732, 96
        %v1992 = vpop.permute.xlu0 %1991
        %1993 = vrot.lane.b32.xlu0 %v1733, 96
        %v1994 = vpop.permute.xlu0 %1993
        %1995 = vrot.lane.b32.xlu0 %v1734, 96
        %v1996 = vpop.permute.xlu0 %1995
        %1997 = vrot.lane.b32.xlu0 %v1735, 96
        %v1998 = vpop.permute.xlu0 %1997
        %1999 = vrot.lane.b32.xlu0 %v1736, 96
        %v2000 = vpop.permute.xlu0 %1999
        %2001 = vrot.lane.b32.xlu0 %v1737, 96
        %v2002 = vpop.permute.xlu0 %2001
        %2003 = vrot.lane.b32.xlu0 %v1738, 96
        %v2004 = vpop.permute.xlu0 %2003
        %2005 = vrot.lane.b32.xlu0 %v1739, 96
        %v2006 = vpop.permute.xlu0 %2005
        %2007 = vrot.lane.b32.xlu0 %v1740, 96
        %v2008 = vpop.permute.xlu0 %2007
        %2009 = vrot.lane.b32.xlu0 %v1741, 96
        %v2010 = vpop.permute.xlu0 %2009
        %2011 = vrot.lane.b32.xlu0 %v1742, 96
        %v2012 = vpop.permute.xlu0 %2011
        %2013 = vrot.lane.b32.xlu0 %v1743, 96
        %v2014 = vpop.permute.xlu0 %2013
        %2015 = vrot.lane.b32.xlu0 %v1744, 96
        %v2016 = vpop.permute.xlu0 %2015
        %2017 = vrot.lane.b32.xlu0 %v1745, 96
        %v2018 = vpop.permute.xlu0 %2017
        %2019 = vrot.lane.b32.xlu0 %v1746, 96
        %v2020 = vpop.permute.xlu0 %2019
        %2021 = vrot.lane.b32.xlu0 %v1747, 96
        %v2022 = vpop.permute.xlu0 %2021
        %2023 = vrot.lane.b32.xlu0 %v1748, 96
        %v2024 = vpop.permute.xlu0 %2023
        %2025 = vrot.lane.b32.xlu0 %v1749, 96
        %v2026 = vpop.permute.xlu0 %2025
        %2027 = vrot.lane.b32.xlu0 %v1750, 96
        %v2028 = vpop.permute.xlu0 %2027
        %2029 = vrot.lane.b32.xlu0 %v1751, 96
        %v2030 = vpop.permute.xlu0 %2029
        %2031 = vrot.lane.b32.xlu0 %v1752, 96
        %v2032 = vpop.permute.xlu0 %2031
        %2033 = vrot.lane.b32.xlu0 %v1753, 96
        %v2034 = vpop.permute.xlu0 %2033
        %2035 = vrot.lane.b32.xlu0 %v1754, 96
        %v2036 = vpop.permute.xlu0 %2035
        %2037 = vrot.lane.b32.xlu0 %v1755, 96
        %v2038 = vpop.permute.xlu0 %2037
        %2039 = vrot.lane.b32.xlu0 %v1756, 96
        %v2040 = vpop.permute.xlu0 %2039
        %2041 = vrot.lane.b32.xlu0 %v1757, 96
        %v2042 = vpop.permute.xlu0 %2041
        %2043 = vrot.lane.b32.xlu0 %v1758, 96
        %v2044 = vpop.permute.xlu0 %2043
        %s2077 = scalar_lea.vmem %s350, 128
        %2078 = vst.msk [vmem:[%s2077] sm:$0xf] %vm1602, %v1982
        %2079 = vst.msk [vmem:[%s2077 + $0x4] sm:$0xf] %vm1602, %v1984
        %2080 = vst.msk [vmem:[%s2077 + $0x8] sm:$0xf] %vm1602, %v1986
        %2081 = vst.msk [vmem:[%s2077 + $0xc] sm:$0xf] %vm1602, %v1988
        %2082 = vst.msk [vmem:[%s2077 + $0x10] sm:$0xf] %vm1602, %v1990
        %2083 = vst.msk [vmem:[%s2077 + $0x14] sm:$0xf] %vm1602, %v1992
        %2084 = vst.msk [vmem:[%s2077 + $0x18] sm:$0xf] %vm1602, %v1994
        %2085 = vst.msk [vmem:[%s2077 + $0x1c] sm:$0xf] %vm1602, %v1996
        %2086 = vst.msk [vmem:[%s2077 + $0x20] sm:$0xf] %vm1602, %v1998
        %2087 = vst.msk [vmem:[%s2077 + $0x24] sm:$0xf] %vm1602, %v2000
        %2088 = vst.msk [vmem:[%s2077 + $0x28] sm:$0xf] %vm1602, %v2002
        %2089 = vst.msk [vmem:[%s2077 + $0x2c] sm:$0xf] %vm1602, %v2004
        %2090 = vst.msk [vmem:[%s2077 + $0x30] sm:$0xf] %vm1602, %v2006
        %2091 = vst.msk [vmem:[%s2077 + $0x34] sm:$0xf] %vm1602, %v2008
        %2092 = vst.msk [vmem:[%s2077 + $0x38] sm:$0xf] %vm1602, %v2010
        %2093 = vst.msk [vmem:[%s2077 + $0x3c] sm:$0xf] %vm1602, %v2012
        %2094 = vst.msk [vmem:[%s2077 + $0x40] sm:$0xf] %vm1602, %v2014
        %2095 = vst.msk [vmem:[%s2077 + $0x44] sm:$0xf] %vm1602, %v2016
        %2096 = vst.msk [vmem:[%s2077 + $0x48] sm:$0xf] %vm1602, %v2018
        %2097 = vst.msk [vmem:[%s2077 + $0x4c] sm:$0xf] %vm1602, %v2020
        %2098 = vst.msk [vmem:[%s2077 + $0x50] sm:$0xf] %vm1602, %v2022
        %2099 = vst.msk [vmem:[%s2077 + $0x54] sm:$0xf] %vm1602, %v2024
        %2100 = vst.msk [vmem:[%s2077 + $0x58] sm:$0xf] %vm1602, %v2026
        %2101 = vst.msk [vmem:[%s2077 + $0x5c] sm:$0xf] %vm1602, %v2028
        %2102 = vst.msk [vmem:[%s2077 + $0x60] sm:$0xf] %vm1602, %v2030
        %2103 = vst.msk [vmem:[%s2077 + $0x64] sm:$0xf] %vm1602, %v2032
        %2104 = vst.msk [vmem:[%s2077 + $0x68] sm:$0xf] %vm1602, %v2034
        %2105 = vst.msk [vmem:[%s2077 + $0x6c] sm:$0xf] %vm1602, %v2036
        %2106 = vst.msk [vmem:[%s2077 + $0x70] sm:$0xf] %vm1602, %v2038
        %2107 = vst.msk [vmem:[%s2077 + $0x74] sm:$0xf] %vm1602, %v2040
        %2108 = vst.msk [vmem:[%s2077 + $0x78] sm:$0xf] %vm1602, %v2042
        %2109 = vst.msk [vmem:[%s2077 + $0x7c] sm:$0xf] %vm1602, %v2044
        %2110 = vrot.lane.b32.xlu0 %v1538, 64
        %v2111 = vpop.permute.xlu0 %2110
        %2112 = vrot.lane.b32.xlu0 %v1539, 64
        %v2113 = vpop.permute.xlu0 %2112
        %2114 = vrot.lane.b32.xlu0 %v1540, 64
        %v2115 = vpop.permute.xlu0 %2114
        %2116 = vrot.lane.b32.xlu0 %v1541, 64
        %v2117 = vpop.permute.xlu0 %2116
        %2118 = vrot.lane.b32.xlu0 %v1542, 64
        %v2119 = vpop.permute.xlu0 %2118
        %2120 = vrot.lane.b32.xlu0 %v1543, 64
        %v2121 = vpop.permute.xlu0 %2120
        %2122 = vrot.lane.b32.xlu0 %v1544, 64
        %v2123 = vpop.permute.xlu0 %2122
        %2124 = vrot.lane.b32.xlu0 %v1545, 64
        %v2125 = vpop.permute.xlu0 %2124
        %2126 = vrot.lane.b32.xlu0 %v1546, 64
        %v2127 = vpop.permute.xlu0 %2126
        %2128 = vrot.lane.b32.xlu0 %v1547, 64
        %v2129 = vpop.permute.xlu0 %2128
        %2130 = vrot.lane.b32.xlu0 %v1548, 64
        %v2131 = vpop.permute.xlu0 %2130
        %2132 = vrot.lane.b32.xlu0 %v1549, 64
        %v2133 = vpop.permute.xlu0 %2132
        %2134 = vrot.lane.b32.xlu0 %v1550, 64
        %v2135 = vpop.permute.xlu0 %2134
        %2136 = vrot.lane.b32.xlu0 %v1551, 64
        %v2137 = vpop.permute.xlu0 %2136
        %2138 = vrot.lane.b32.xlu0 %v1552, 64
        %v2139 = vpop.permute.xlu0 %2138
        %2140 = vrot.lane.b32.xlu0 %v1553, 64
        %v2141 = vpop.permute.xlu0 %2140
        %2142 = vrot.lane.b32.xlu0 %v1554, 64
        %v2143 = vpop.permute.xlu0 %2142
        %2144 = vrot.lane.b32.xlu0 %v1555, 64
        %v2145 = vpop.permute.xlu0 %2144
        %2146 = vrot.lane.b32.xlu0 %v1556, 64
        %v2147 = vpop.permute.xlu0 %2146
        %2148 = vrot.lane.b32.xlu0 %v1557, 64
        %v2149 = vpop.permute.xlu0 %2148
        %2150 = vrot.lane.b32.xlu0 %v1558, 64
        %v2151 = vpop.permute.xlu0 %2150
        %2152 = vrot.lane.b32.xlu0 %v1559, 64
        %v2153 = vpop.permute.xlu0 %2152
        %2154 = vrot.lane.b32.xlu0 %v1560, 64
        %v2155 = vpop.permute.xlu0 %2154
        %2156 = vrot.lane.b32.xlu0 %v1561, 64
        %v2157 = vpop.permute.xlu0 %2156
        %2158 = vrot.lane.b32.xlu0 %v1562, 64
        %v2159 = vpop.permute.xlu0 %2158
        %2160 = vrot.lane.b32.xlu0 %v1563, 64
        %v2161 = vpop.permute.xlu0 %2160
        %2162 = vrot.lane.b32.xlu0 %v1564, 64
        %v2163 = vpop.permute.xlu0 %2162
        %2164 = vrot.lane.b32.xlu0 %v1565, 64
        %v2165 = vpop.permute.xlu0 %2164
        %2166 = vrot.lane.b32.xlu0 %v1566, 64
        %v2167 = vpop.permute.xlu0 %2166
        %2168 = vrot.lane.b32.xlu0 %v1567, 64
        %v2169 = vpop.permute.xlu0 %2168
        %2170 = vrot.lane.b32.xlu0 %v1568, 64
        %v2171 = vpop.permute.xlu0 %2170
        %2172 = vrot.lane.b32.xlu0 %v1569, 64
        %v2173 = vpop.permute.xlu0 %2172
        %s2206 = scalar_lea.vmem %s339, 256
        %2207 = vst.msk [vmem:[%s2206] sm:$0xf] %vm1602, %v2111
        %2208 = vst.msk [vmem:[%s2206 + $0x4] sm:$0xf] %vm1602, %v2113
        %2209 = vst.msk [vmem:[%s2206 + $0x8] sm:$0xf] %vm1602, %v2115
        %2210 = vst.msk [vmem:[%s2206 + $0xc] sm:$0xf] %vm1602, %v2117
        %2211 = vst.msk [vmem:[%s2206 + $0x10] sm:$0xf] %vm1602, %v2119
        %2212 = vst.msk [vmem:[%s2206 + $0x14] sm:$0xf] %vm1602, %v2121
        %2213 = vst.msk [vmem:[%s2206 + $0x18] sm:$0xf] %vm1602, %v2123
        %2214 = vst.msk [vmem:[%s2206 + $0x1c] sm:$0xf] %vm1602, %v2125
        %2215 = vst.msk [vmem:[%s2206 + $0x20] sm:$0xf] %vm1602, %v2127
        %2216 = vst.msk [vmem:[%s2206 + $0x24] sm:$0xf] %vm1602, %v2129
        %2217 = vst.msk [vmem:[%s2206 + $0x28] sm:$0xf] %vm1602, %v2131
        %2218 = vst.msk [vmem:[%s2206 + $0x2c] sm:$0xf] %vm1602, %v2133
        %2219 = vst.msk [vmem:[%s2206 + $0x30] sm:$0xf] %vm1602, %v2135
        %2220 = vst.msk [vmem:[%s2206 + $0x34] sm:$0xf] %vm1602, %v2137
        %2221 = vst.msk [vmem:[%s2206 + $0x38] sm:$0xf] %vm1602, %v2139
        %2222 = vst.msk [vmem:[%s2206 + $0x3c] sm:$0xf] %vm1602, %v2141
        %2223 = vst.msk [vmem:[%s2206 + $0x40] sm:$0xf] %vm1602, %v2143
        %2224 = vst.msk [vmem:[%s2206 + $0x44] sm:$0xf] %vm1602, %v2145
        %2225 = vst.msk [vmem:[%s2206 + $0x48] sm:$0xf] %vm1602, %v2147
        %2226 = vst.msk [vmem:[%s2206 + $0x4c] sm:$0xf] %vm1602, %v2149
        %2227 = vst.msk [vmem:[%s2206 + $0x50] sm:$0xf] %vm1602, %v2151
        %2228 = vst.msk [vmem:[%s2206 + $0x54] sm:$0xf] %vm1602, %v2153
        %2229 = vst.msk [vmem:[%s2206 + $0x58] sm:$0xf] %vm1602, %v2155
        %2230 = vst.msk [vmem:[%s2206 + $0x5c] sm:$0xf] %vm1602, %v2157
        %2231 = vst.msk [vmem:[%s2206 + $0x60] sm:$0xf] %vm1602, %v2159
        %2232 = vst.msk [vmem:[%s2206 + $0x64] sm:$0xf] %vm1602, %v2161
        %2233 = vst.msk [vmem:[%s2206 + $0x68] sm:$0xf] %vm1602, %v2163
        %2234 = vst.msk [vmem:[%s2206 + $0x6c] sm:$0xf] %vm1602, %v2165
        %2235 = vst.msk [vmem:[%s2206 + $0x70] sm:$0xf] %vm1602, %v2167
        %2236 = vst.msk [vmem:[%s2206 + $0x74] sm:$0xf] %vm1602, %v2169
        %2237 = vst.msk [vmem:[%s2206 + $0x78] sm:$0xf] %vm1602, %v2171
        %2238 = vst.msk [vmem:[%s2206 + $0x7c] sm:$0xf] %vm1602, %v2173
        %v2239 = vpack.c.bf16 %v1403, %v1402
        %v2240 = vpack.c.bf16 %v1435, %v1434
        %v2241 = vpack.c.bf16 %v1405, %v1404
        %v2242 = vpack.c.bf16 %v1437, %v1436
        %v2247 = vunpack.c.l.b16 %v2239
        %v2248 = vunpack.c.l.b16 %v2240
        %v2249 = vunpack.c.h.b16 %v2239
        %v2250 = vunpack.c.h.b16 %v2240
        %v2251 = vunpack.c.l.b16 %v2241
        %v2252 = vunpack.c.l.b16 %v2242
        %v2253 = vunpack.c.h.b16 %v2241
        %v2254 = vunpack.c.h.b16 %v2242
        %v2255 = vpack.c.b16 %v2248, %v2247
        %v2256 = vpack.c.b16 %v2250, %v2249
        %v2257 = vpack.c.b16 %v2252, %v2251
        %v2258 = vpack.c.b16 %v2254, %v2253
        %s2263 = scalar_lea.vmem %s318, 64 [#allocation7]
        %2264 = vst [vmem:[%s2263] sm:$0xff] %v2255
        %2265 = vst [vmem:[%s2263 + $0x8] sm:$0xff] %v2256
        %2266 = vst [vmem:[%s2263 + $0x10] sm:$0xff] %v2257
        %2267 = vst [vmem:[%s2263 + $0x18] sm:$0xff] %v2258
        %2268 = vrot.lane.b32.xlu0 %v1727, 64
        %v2269 = vpop.permute.xlu0 %2268
        %2270 = vrot.lane.b32.xlu0 %v1728, 64
        %v2271 = vpop.permute.xlu0 %2270
        %2272 = vrot.lane.b32.xlu0 %v1729, 64
        %v2273 = vpop.permute.xlu0 %2272
        %2274 = vrot.lane.b32.xlu0 %v1730, 64
        %v2275 = vpop.permute.xlu0 %2274
        %2276 = vrot.lane.b32.xlu0 %v1731, 64
        %v2277 = vpop.permute.xlu0 %2276
        %2278 = vrot.lane.b32.xlu0 %v1732, 64
        %v2279 = vpop.permute.xlu0 %2278
        %2280 = vrot.lane.b32.xlu0 %v1733, 64
        %v2281 = vpop.permute.xlu0 %2280
        %2282 = vrot.lane.b32.xlu0 %v1734, 64
        %v2283 = vpop.permute.xlu0 %2282
        %2284 = vrot.lane.b32.xlu0 %v1735, 64
        %v2285 = vpop.permute.xlu0 %2284
        %2286 = vrot.lane.b32.xlu0 %v1736, 64
        %v2287 = vpop.permute.xlu0 %2286
        %2288 = vrot.lane.b32.xlu0 %v1737, 64
        %v2289 = vpop.permute.xlu0 %2288
        %2290 = vrot.lane.b32.xlu0 %v1738, 64
        %v2291 = vpop.permute.xlu0 %2290
        %2292 = vrot.lane.b32.xlu0 %v1739, 64
        %v2293 = vpop.permute.xlu0 %2292
        %2294 = vrot.lane.b32.xlu0 %v1740, 64
        %v2295 = vpop.permute.xlu0 %2294
        %2296 = vrot.lane.b32.xlu0 %v1741, 64
        %v2297 = vpop.permute.xlu0 %2296
        %2298 = vrot.lane.b32.xlu0 %v1742, 64
        %v2299 = vpop.permute.xlu0 %2298
        %2300 = vrot.lane.b32.xlu0 %v1743, 64
        %v2301 = vpop.permute.xlu0 %2300
        %2302 = vrot.lane.b32.xlu0 %v1744, 64
        %v2303 = vpop.permute.xlu0 %2302
        %2304 = vrot.lane.b32.xlu0 %v1745, 64
        %v2305 = vpop.permute.xlu0 %2304
        %2306 = vrot.lane.b32.xlu0 %v1746, 64
        %v2307 = vpop.permute.xlu0 %2306
        %2308 = vrot.lane.b32.xlu0 %v1747, 64
        %v2309 = vpop.permute.xlu0 %2308
        %2310 = vrot.lane.b32.xlu0 %v1748, 64
        %v2311 = vpop.permute.xlu0 %2310
        %2312 = vrot.lane.b32.xlu0 %v1749, 64
        %v2313 = vpop.permute.xlu0 %2312
        %2314 = vrot.lane.b32.xlu0 %v1750, 64
        %v2315 = vpop.permute.xlu0 %2314
        %2316 = vrot.lane.b32.xlu0 %v1751, 64
        %v2317 = vpop.permute.xlu0 %2316
        %2318 = vrot.lane.b32.xlu0 %v1752, 64
        %v2319 = vpop.permute.xlu0 %2318
        %2320 = vrot.lane.b32.xlu0 %v1753, 64
        %v2321 = vpop.permute.xlu0 %2320
        %2322 = vrot.lane.b32.xlu0 %v1754, 64
        %v2323 = vpop.permute.xlu0 %2322
        %2324 = vrot.lane.b32.xlu0 %v1755, 64
        %v2325 = vpop.permute.xlu0 %2324
        %2326 = vrot.lane.b32.xlu0 %v1756, 64
        %v2327 = vpop.permute.xlu0 %2326
        %2328 = vrot.lane.b32.xlu0 %v1757, 64
        %v2329 = vpop.permute.xlu0 %2328
        %2330 = vrot.lane.b32.xlu0 %v1758, 64
        %v2331 = vpop.permute.xlu0 %2330
        %s2364 = scalar_lea.vmem %s350, 256
        %2365 = vst.msk [vmem:[%s2364] sm:$0xf] %vm1602, %v2269
        %2366 = vst.msk [vmem:[%s2364 + $0x4] sm:$0xf] %vm1602, %v2271
        %2367 = vst.msk [vmem:[%s2364 + $0x8] sm:$0xf] %vm1602, %v2273
        %2368 = vst.msk [vmem:[%s2364 + $0xc] sm:$0xf] %vm1602, %v2275
        %2369 = vst.msk [vmem:[%s2364 + $0x10] sm:$0xf] %vm1602, %v2277
        %2370 = vst.msk [vmem:[%s2364 + $0x14] sm:$0xf] %vm1602, %v2279
        %2371 = vst.msk [vmem:[%s2364 + $0x18] sm:$0xf] %vm1602, %v2281
        %2372 = vst.msk [vmem:[%s2364 + $0x1c] sm:$0xf] %vm1602, %v2283
        %2373 = vst.msk [vmem:[%s2364 + $0x20] sm:$0xf] %vm1602, %v2285
        %2374 = vst.msk [vmem:[%s2364 + $0x24] sm:$0xf] %vm1602, %v2287
        %2375 = vst.msk [vmem:[%s2364 + $0x28] sm:$0xf] %vm1602, %v2289
        %2376 = vst.msk [vmem:[%s2364 + $0x2c] sm:$0xf] %vm1602, %v2291
        %2377 = vst.msk [vmem:[%s2364 + $0x30] sm:$0xf] %vm1602, %v2293
        %2378 = vst.msk [vmem:[%s2364 + $0x34] sm:$0xf] %vm1602, %v2295
        %2379 = vst.msk [vmem:[%s2364 + $0x38] sm:$0xf] %vm1602, %v2297
        %2380 = vst.msk [vmem:[%s2364 + $0x3c] sm:$0xf] %vm1602, %v2299
        %2381 = vst.msk [vmem:[%s2364 + $0x40] sm:$0xf] %vm1602, %v2301
        %2382 = vst.msk [vmem:[%s2364 + $0x44] sm:$0xf] %vm1602, %v2303
        %2383 = vst.msk [vmem:[%s2364 + $0x48] sm:$0xf] %vm1602, %v2305
        %2384 = vst.msk [vmem:[%s2364 + $0x4c] sm:$0xf] %vm1602, %v2307
        %2385 = vst.msk [vmem:[%s2364 + $0x50] sm:$0xf] %vm1602, %v2309
        %2386 = vst.msk [vmem:[%s2364 + $0x54] sm:$0xf] %vm1602, %v2311
        %2387 = vst.msk [vmem:[%s2364 + $0x58] sm:$0xf] %vm1602, %v2313
        %2388 = vst.msk [vmem:[%s2364 + $0x5c] sm:$0xf] %vm1602, %v2315
        %2389 = vst.msk [vmem:[%s2364 + $0x60] sm:$0xf] %vm1602, %v2317
        %2390 = vst.msk [vmem:[%s2364 + $0x64] sm:$0xf] %vm1602, %v2319
        %2391 = vst.msk [vmem:[%s2364 + $0x68] sm:$0xf] %vm1602, %v2321
        %2392 = vst.msk [vmem:[%s2364 + $0x6c] sm:$0xf] %vm1602, %v2323
        %2393 = vst.msk [vmem:[%s2364 + $0x70] sm:$0xf] %vm1602, %v2325
        %2394 = vst.msk [vmem:[%s2364 + $0x74] sm:$0xf] %vm1602, %v2327
        %2395 = vst.msk [vmem:[%s2364 + $0x78] sm:$0xf] %vm1602, %v2329
        %2396 = vst.msk [vmem:[%s2364 + $0x7c] sm:$0xf] %vm1602, %v2331
        %2397 = vrot.lane.b32.xlu0 %v1538, 32
        %v2398 = vpop.permute.xlu0 %2397
        %2399 = vrot.lane.b32.xlu0 %v1539, 32
        %v2400 = vpop.permute.xlu0 %2399
        %2401 = vrot.lane.b32.xlu0 %v1540, 32
        %v2402 = vpop.permute.xlu0 %2401
        %2403 = vrot.lane.b32.xlu0 %v1541, 32
        %v2404 = vpop.permute.xlu0 %2403
        %2405 = vrot.lane.b32.xlu0 %v1542, 32
        %v2406 = vpop.permute.xlu0 %2405
        %2407 = vrot.lane.b32.xlu0 %v1543, 32
        %v2408 = vpop.permute.xlu0 %2407
        %2409 = vrot.lane.b32.xlu0 %v1544, 32
        %v2410 = vpop.permute.xlu0 %2409
        %2411 = vrot.lane.b32.xlu0 %v1545, 32
        %v2412 = vpop.permute.xlu0 %2411
        %2413 = vrot.lane.b32.xlu0 %v1546, 32
        %v2414 = vpop.permute.xlu0 %2413
        %2415 = vrot.lane.b32.xlu0 %v1547, 32
        %v2416 = vpop.permute.xlu0 %2415
        %2417 = vrot.lane.b32.xlu0 %v1548, 32
        %v2418 = vpop.permute.xlu0 %2417
        %2419 = vrot.lane.b32.xlu0 %v1549, 32
        %v2420 = vpop.permute.xlu0 %2419
        %2421 = vrot.lane.b32.xlu0 %v1550, 32
        %v2422 = vpop.permute.xlu0 %2421
        %2423 = vrot.lane.b32.xlu0 %v1551, 32
        %v2424 = vpop.permute.xlu0 %2423
        %2425 = vrot.lane.b32.xlu0 %v1552, 32
        %v2426 = vpop.permute.xlu0 %2425
        %2427 = vrot.lane.b32.xlu0 %v1553, 32
        %v2428 = vpop.permute.xlu0 %2427
        %2429 = vrot.lane.b32.xlu0 %v1554, 32
        %v2430 = vpop.permute.xlu0 %2429
        %2431 = vrot.lane.b32.xlu0 %v1555, 32
        %v2432 = vpop.permute.xlu0 %2431
        %2433 = vrot.lane.b32.xlu0 %v1556, 32
        %v2434 = vpop.permute.xlu0 %2433
        %2435 = vrot.lane.b32.xlu0 %v1557, 32
        %v2436 = vpop.permute.xlu0 %2435
        %2437 = vrot.lane.b32.xlu0 %v1558, 32
        %v2438 = vpop.permute.xlu0 %2437
        %2439 = vrot.lane.b32.xlu0 %v1559, 32
        %v2440 = vpop.permute.xlu0 %2439
        %2441 = vrot.lane.b32.xlu0 %v1560, 32
        %v2442 = vpop.permute.xlu0 %2441
        %2443 = vrot.lane.b32.xlu0 %v1561, 32
        %v2444 = vpop.permute.xlu0 %2443
        %2445 = vrot.lane.b32.xlu0 %v1562, 32
        %v2446 = vpop.permute.xlu0 %2445
        %2447 = vrot.lane.b32.xlu0 %v1563, 32
        %v2448 = vpop.permute.xlu0 %2447
        %2449 = vrot.lane.b32.xlu0 %v1564, 32
        %v2450 = vpop.permute.xlu0 %2449
        %2451 = vrot.lane.b32.xlu0 %v1565, 32
        %v2452 = vpop.permute.xlu0 %2451
        %2453 = vrot.lane.b32.xlu0 %v1566, 32
        %v2454 = vpop.permute.xlu0 %2453
        %2455 = vrot.lane.b32.xlu0 %v1567, 32
        %v2456 = vpop.permute.xlu0 %2455
        %2457 = vrot.lane.b32.xlu0 %v1568, 32
        %v2458 = vpop.permute.xlu0 %2457
        %2459 = vrot.lane.b32.xlu0 %v1569, 32
        %v2460 = vpop.permute.xlu0 %2459
        %s2493 = scalar_lea.vmem %s339, 384
        %2494 = vst.msk [vmem:[%s2493] sm:$0xf] %vm1602, %v2398
        %2495 = vst.msk [vmem:[%s2493 + $0x4] sm:$0xf] %vm1602, %v2400
        %2496 = vst.msk [vmem:[%s2493 + $0x8] sm:$0xf] %vm1602, %v2402
        %2497 = vst.msk [vmem:[%s2493 + $0xc] sm:$0xf] %vm1602, %v2404
        %2498 = vst.msk [vmem:[%s2493 + $0x10] sm:$0xf] %vm1602, %v2406
        %2499 = vst.msk [vmem:[%s2493 + $0x14] sm:$0xf] %vm1602, %v2408
        %2500 = vst.msk [vmem:[%s2493 + $0x18] sm:$0xf] %vm1602, %v2410
        %2501 = vst.msk [vmem:[%s2493 + $0x1c] sm:$0xf] %vm1602, %v2412
        %2502 = vst.msk [vmem:[%s2493 + $0x20] sm:$0xf] %vm1602, %v2414
        %2503 = vst.msk [vmem:[%s2493 + $0x24] sm:$0xf] %vm1602, %v2416
        %2504 = vst.msk [vmem:[%s2493 + $0x28] sm:$0xf] %vm1602, %v2418
        %2505 = vst.msk [vmem:[%s2493 + $0x2c] sm:$0xf] %vm1602, %v2420
        %2506 = vst.msk [vmem:[%s2493 + $0x30] sm:$0xf] %vm1602, %v2422
        %2507 = vst.msk [vmem:[%s2493 + $0x34] sm:$0xf] %vm1602, %v2424
        %2508 = vst.msk [vmem:[%s2493 + $0x38] sm:$0xf] %vm1602, %v2426
        %2509 = vst.msk [vmem:[%s2493 + $0x3c] sm:$0xf] %vm1602, %v2428
        %2510 = vst.msk [vmem:[%s2493 + $0x40] sm:$0xf] %vm1602, %v2430
        %2511 = vst.msk [vmem:[%s2493 + $0x44] sm:$0xf] %vm1602, %v2432
        %2512 = vst.msk [vmem:[%s2493 + $0x48] sm:$0xf] %vm1602, %v2434
        %2513 = vst.msk [vmem:[%s2493 + $0x4c] sm:$0xf] %vm1602, %v2436
        %2514 = vst.msk [vmem:[%s2493 + $0x50] sm:$0xf] %vm1602, %v2438
        %2515 = vst.msk [vmem:[%s2493 + $0x54] sm:$0xf] %vm1602, %v2440
        %2516 = vst.msk [vmem:[%s2493 + $0x58] sm:$0xf] %vm1602, %v2442
        %2517 = vst.msk [vmem:[%s2493 + $0x5c] sm:$0xf] %vm1602, %v2444
        %2518 = vst.msk [vmem:[%s2493 + $0x60] sm:$0xf] %vm1602, %v2446
        %2519 = vst.msk [vmem:[%s2493 + $0x64] sm:$0xf] %vm1602, %v2448
        %2520 = vst.msk [vmem:[%s2493 + $0x68] sm:$0xf] %vm1602, %v2450
        %2521 = vst.msk [vmem:[%s2493 + $0x6c] sm:$0xf] %vm1602, %v2452
        %2522 = vst.msk [vmem:[%s2493 + $0x70] sm:$0xf] %vm1602, %v2454
        %2523 = vst.msk [vmem:[%s2493 + $0x74] sm:$0xf] %vm1602, %v2456
        %2524 = vst.msk [vmem:[%s2493 + $0x78] sm:$0xf] %vm1602, %v2458
        %2525 = vst.msk [vmem:[%s2493 + $0x7c] sm:$0xf] %vm1602, %v2460
        %v2526 = vpack.c.bf16 %v1407, %v1406
        %v2527 = vpack.c.bf16 %v1439, %v1438
        %v2528 = vpack.c.bf16 %v1409, %v1408
        %v2529 = vpack.c.bf16 %v1441, %v1440
        %v2534 = vunpack.c.l.b16 %v2526
        %v2535 = vunpack.c.l.b16 %v2527
        %v2536 = vunpack.c.h.b16 %v2526
        %v2537 = vunpack.c.h.b16 %v2527
        %v2538 = vunpack.c.l.b16 %v2528
        %v2539 = vunpack.c.l.b16 %v2529
        %v2540 = vunpack.c.h.b16 %v2528
        %v2541 = vunpack.c.h.b16 %v2529
        %v2542 = vpack.c.b16 %v2535, %v2534
        %v2543 = vpack.c.b16 %v2537, %v2536
        %v2544 = vpack.c.b16 %v2539, %v2538
        %v2545 = vpack.c.b16 %v2541, %v2540
        %s2550 = scalar_lea.vmem %s318, 96 [#allocation7]
        %2551 = vst [vmem:[%s2550] sm:$0xff] %v2542
        %2552 = vst [vmem:[%s2550 + $0x8] sm:$0xff] %v2543
        %2553 = vst [vmem:[%s2550 + $0x10] sm:$0xff] %v2544
        %2554 = vst [vmem:[%s2550 + $0x18] sm:$0xff] %v2545
        %2555 = vrot.lane.b32.xlu0 %v1727, 32
        %v2556 = vpop.permute.xlu0 %2555
        %2557 = vrot.lane.b32.xlu0 %v1728, 32
        %v2558 = vpop.permute.xlu0 %2557
        %2559 = vrot.lane.b32.xlu0 %v1729, 32
        %v2560 = vpop.permute.xlu0 %2559
        %2561 = vrot.lane.b32.xlu0 %v1730, 32
        %v2562 = vpop.permute.xlu0 %2561
        %2563 = vrot.lane.b32.xlu0 %v1731, 32
        %v2564 = vpop.permute.xlu0 %2563
        %2565 = vrot.lane.b32.xlu0 %v1732, 32
        %v2566 = vpop.permute.xlu0 %2565
        %2567 = vrot.lane.b32.xlu0 %v1733, 32
        %v2568 = vpop.permute.xlu0 %2567
        %2569 = vrot.lane.b32.xlu0 %v1734, 32
        %v2570 = vpop.permute.xlu0 %2569
        %2571 = vrot.lane.b32.xlu0 %v1735, 32
        %v2572 = vpop.permute.xlu0 %2571
        %2573 = vrot.lane.b32.xlu0 %v1736, 32
        %v2574 = vpop.permute.xlu0 %2573
        %2575 = vrot.lane.b32.xlu0 %v1737, 32
        %v2576 = vpop.permute.xlu0 %2575
        %2577 = vrot.lane.b32.xlu0 %v1738, 32
        %v2578 = vpop.permute.xlu0 %2577
        %2579 = vrot.lane.b32.xlu0 %v1739, 32
        %v2580 = vpop.permute.xlu0 %2579
        %2581 = vrot.lane.b32.xlu0 %v1740, 32
        %v2582 = vpop.permute.xlu0 %2581
        %2583 = vrot.lane.b32.xlu0 %v1741, 32
        %v2584 = vpop.permute.xlu0 %2583
        %2585 = vrot.lane.b32.xlu0 %v1742, 32
        %v2586 = vpop.permute.xlu0 %2585
        %2587 = vrot.lane.b32.xlu0 %v1743, 32
        %v2588 = vpop.permute.xlu0 %2587
        %2589 = vrot.lane.b32.xlu0 %v1744, 32
        %v2590 = vpop.permute.xlu0 %2589
        %2591 = vrot.lane.b32.xlu0 %v1745, 32
        %v2592 = vpop.permute.xlu0 %2591
        %2593 = vrot.lane.b32.xlu0 %v1746, 32
        %v2594 = vpop.permute.xlu0 %2593
        %2595 = vrot.lane.b32.xlu0 %v1747, 32
        %v2596 = vpop.permute.xlu0 %2595
        %2597 = vrot.lane.b32.xlu0 %v1748, 32
        %v2598 = vpop.permute.xlu0 %2597
        %2599 = vrot.lane.b32.xlu0 %v1749, 32
        %v2600 = vpop.permute.xlu0 %2599
        %2601 = vrot.lane.b32.xlu0 %v1750, 32
        %v2602 = vpop.permute.xlu0 %2601
        %2603 = vrot.lane.b32.xlu0 %v1751, 32
        %v2604 = vpop.permute.xlu0 %2603
        %2605 = vrot.lane.b32.xlu0 %v1752, 32
        %v2606 = vpop.permute.xlu0 %2605
        %2607 = vrot.lane.b32.xlu0 %v1753, 32
        %v2608 = vpop.permute.xlu0 %2607
        %2609 = vrot.lane.b32.xlu0 %v1754, 32
        %v2610 = vpop.permute.xlu0 %2609
        %2611 = vrot.lane.b32.xlu0 %v1755, 32
        %v2612 = vpop.permute.xlu0 %2611
        %2613 = vrot.lane.b32.xlu0 %v1756, 32
        %v2614 = vpop.permute.xlu0 %2613
        %2615 = vrot.lane.b32.xlu0 %v1757, 32
        %v2616 = vpop.permute.xlu0 %2615
        %2617 = vrot.lane.b32.xlu0 %v1758, 32
        %v2618 = vpop.permute.xlu0 %2617
        %s2651 = scalar_lea.vmem %s350, 384
        %2652 = vst.msk [vmem:[%s2651] sm:$0xf] %vm1602, %v2556
        %2653 = vst.msk [vmem:[%s2651 + $0x4] sm:$0xf] %vm1602, %v2558
        %2654 = vst.msk [vmem:[%s2651 + $0x8] sm:$0xf] %vm1602, %v2560
        %2655 = vst.msk [vmem:[%s2651 + $0xc] sm:$0xf] %vm1602, %v2562
        %2656 = vst.msk [vmem:[%s2651 + $0x10] sm:$0xf] %vm1602, %v2564
        %2657 = vst.msk [vmem:[%s2651 + $0x14] sm:$0xf] %vm1602, %v2566
        %2658 = vst.msk [vmem:[%s2651 + $0x18] sm:$0xf] %vm1602, %v2568
        %2659 = vst.msk [vmem:[%s2651 + $0x1c] sm:$0xf] %vm1602, %v2570
        %2660 = vst.msk [vmem:[%s2651 + $0x20] sm:$0xf] %vm1602, %v2572
        %2661 = vst.msk [vmem:[%s2651 + $0x24] sm:$0xf] %vm1602, %v2574
        %2662 = vst.msk [vmem:[%s2651 + $0x28] sm:$0xf] %vm1602, %v2576
        %2663 = vst.msk [vmem:[%s2651 + $0x2c] sm:$0xf] %vm1602, %v2578
        %2664 = vst.msk [vmem:[%s2651 + $0x30] sm:$0xf] %vm1602, %v2580
        %2665 = vst.msk [vmem:[%s2651 + $0x34] sm:$0xf] %vm1602, %v2582
        %2666 = vst.msk [vmem:[%s2651 + $0x38] sm:$0xf] %vm1602, %v2584
        %2667 = vst.msk [vmem:[%s2651 + $0x3c] sm:$0xf] %vm1602, %v2586
        %2668 = vst.msk [vmem:[%s2651 + $0x40] sm:$0xf] %vm1602, %v2588
        %2669 = vst.msk [vmem:[%s2651 + $0x44] sm:$0xf] %vm1602, %v2590
        %2670 = vst.msk [vmem:[%s2651 + $0x48] sm:$0xf] %vm1602, %v2592
        %2671 = vst.msk [vmem:[%s2651 + $0x4c] sm:$0xf] %vm1602, %v2594
        %2672 = vst.msk [vmem:[%s2651 + $0x50] sm:$0xf] %vm1602, %v2596
        %2673 = vst.msk [vmem:[%s2651 + $0x54] sm:$0xf] %vm1602, %v2598
        %2674 = vst.msk [vmem:[%s2651 + $0x58] sm:$0xf] %vm1602, %v2600
        %2675 = vst.msk [vmem:[%s2651 + $0x5c] sm:$0xf] %vm1602, %v2602
        %2676 = vst.msk [vmem:[%s2651 + $0x60] sm:$0xf] %vm1602, %v2604
        %2677 = vst.msk [vmem:[%s2651 + $0x64] sm:$0xf] %vm1602, %v2606
        %2678 = vst.msk [vmem:[%s2651 + $0x68] sm:$0xf] %vm1602, %v2608
        %2679 = vst.msk [vmem:[%s2651 + $0x6c] sm:$0xf] %vm1602, %v2610
        %2680 = vst.msk [vmem:[%s2651 + $0x70] sm:$0xf] %vm1602, %v2612
        %2681 = vst.msk [vmem:[%s2651 + $0x74] sm:$0xf] %vm1602, %v2614
        %2682 = vst.msk [vmem:[%s2651 + $0x78] sm:$0xf] %vm1602, %v2616
        %2683 = vst.msk [vmem:[%s2651 + $0x7c] sm:$0xf] %vm1602, %v2618
        %s2684 = smul.u32 32, %s30
        %p2685 = scmp.lt.s32.totalorder %s29, 1
        %s2686 = scalar_select %p2685, %s29, 1
        %p2687 = scmp.lt.s32.totalorder %s2684, 31
        %s2688 = scalar_select %p2687, %s2684, 31
        %s2689 = smul.addr %s2686, 128
        %s2690 = sadd.s32 %s2688, %s2689
        %s2691 = smul.addr %s2690, 4
        %s2692 = scalar_lea.vmem %s4, %s2691
        %s2693 = sand.u32 %s166, 1
        %s2694 = scalar_lea.sflag [#allocation4], %s2693
        %s2695 = sand.u32 %s166, 1
        %s2696 = smul.addr %s2695, 128
        %s2697 = scalar_lea.vmem [#allocation7], %s2696
        %s2698 = smul.u32 32, %s30
        %p2699 = scmp.lt.s32.totalorder %s29, 1
        %s2700 = scalar_select %p2699, %s29, 1
        %p2701 = scmp.lt.s32.totalorder %s2698, 31
        %s2702 = scalar_select %p2701, %s2698, 31
        %s2703 = smul.addr %s2700, 128
        %s2704 = sadd.s32 %s2702, %s2703
        %s2705 = smul.addr %s2704, 4
        %s2706 = scalar_lea.vmem %s6, %s2705
        // Predicated region
        $region45: #{tpu_custom_call.1} parent=35 // pred_check
          %p2707 = pneg %p148
        $region46: #{tpu_custom_call.1} parent=35 // pred_check_branch
          %2709 = sbr.rel (%p2707) target = $region48
        $region47: #{tpu_custom_call.1} parent=35 // pred_region
          %s2710 = smul.u32 32, %s30
        $region48: #{tpu_custom_call.1} parent=35 // pred_fallthru
          _
        // Predicated region
        $region49: #{tpu_custom_call.1} parent=35 // pred_check
          %p2711 = pneg %p176
        $region50: #{tpu_custom_call.1} parent=35 // pred_check_branch
          %2713 = sbr.rel (%p2711) target = $region52
        $region51: #{tpu_custom_call.1} parent=35 // pred_region
          %s2714 = smul.u32 2, %s30
          %s2716 = ssub.s32 2048, 2048
          %2717 = vsyncadd %s2694, %s2716
          %s2718 = smul.addr %s29, 32
          %s2719 = sadd.s32 %s2714, %s2718
          %s2720 = smul.addr %s2719, 64
          %s2721 = scalar_lea.hbm %s5, %s2720
          %s2722 = sshll.u32 %s2697, 4
          %s2723 = int_to_ptr.vmem [resolvable:$true] %s2722
          %2728 = dma.vmem_to_hbm [thread:$0]  %s2723, 2048, %s2721, %s2694, 128, 128, 8
        $region52: #{tpu_custom_call.1} parent=35 // pred_fallthru
          _
        // Predicated region
        $region53: #{tpu_custom_call.1} parent=35 // pred_check
          %p2729 = pneg %p204
        $region54: #{tpu_custom_call.1} parent=35 // pred_check_branch
          %2731 = sbr.rel (%p2729) target = $region56
        $region55: #{tpu_custom_call.1} parent=35 // pred_region
          %s2732 = smul.u32 32, %s30
        $region56: #{tpu_custom_call.1} parent=35 // pred_fallthru
          _
      $region36: #{tpu_custom_call.1} parent=5 // pred_fallthru
        _
      %p2733 = scmp.le.s32.totalorder 2, %s20
      // Predicated region
      $region57: #{tpu_custom_call.1} parent=5 // pred_check
        %p2734 = pneg %p2733
      $region58: #{tpu_custom_call.1} parent=5 // pred_check_branch
        %2736 = sbr.rel (%p2734) target = $region60
      $region59: #{tpu_custom_call.1} parent=5 // pred_region
        %s2737 = ssub.s32 %s20, 2
        // Predicated region
        $region61: #{tpu_custom_call.1} parent=59 // pred_check
          %p2738 = pneg %p154
        $region62: #{tpu_custom_call.1} parent=59 // pred_check_branch
          %2740 = sbr.rel (%p2738) target = $region64
        $region63: #{tpu_custom_call.1} parent=59 // pred_region
          %s2741 = smul.u32 32, %s32
          %p2742 = scmp.lt.s32.totalorder %s31, 1
          %s2743 = scalar_select %p2742, %s31, 1
          %p2744 = scmp.lt.s32.totalorder %s2741, 31
          %s2745 = scalar_select %p2744, %s2741, 31
          %s2746 = smul.addr %s2743, 128
          %s2747 = sadd.s32 %s2745, %s2746
          %s2748 = smul.addr %s2747, 4
          %s2749 = scalar_lea.vmem %s4, %s2748
        $region64: #{tpu_custom_call.1} parent=59 // pred_fallthru
          _
        // Predicated region
        $region65: #{tpu_custom_call.1} parent=59 // pred_check
          %p2750 = pneg %p182
        $region66: #{tpu_custom_call.1} parent=59 // pred_check_branch
          %2752 = sbr.rel (%p2750) target = $region68
        $region67: #{tpu_custom_call.1} parent=59 // pred_region
          %s2753 = sand.u32 %s167, 1
          %s2754 = scalar_lea.sflag [#allocation4], %s2753
          %s2755 = sand.u32 %s167, 1
          %s2756 = smul.addr %s2755, 128
          %s2757 = scalar_lea.vmem [#allocation7], %s2756
          %2758 = dma.done %s2754, 2048
        $region68: #{tpu_custom_call.1} parent=59 // pred_fallthru
          _
        // Predicated region
        $region69: #{tpu_custom_call.1} parent=59 // pred_check
          %p2759 = pneg %p210
        $region70: #{tpu_custom_call.1} parent=59 // pred_check_branch
          %2761 = sbr.rel (%p2759) target = $region72
        $region71: #{tpu_custom_call.1} parent=59 // pred_region
          %s2762 = smul.u32 32, %s32
          %p2763 = scmp.lt.s32.totalorder %s31, 1
          %s2764 = scalar_select %p2763, %s31, 1
          %p2765 = scmp.lt.s32.totalorder %s2762, 31
          %s2766 = scalar_select %p2765, %s2762, 31
          %s2767 = smul.addr %s2764, 128
          %s2768 = sadd.s32 %s2766, %s2767
          %s2769 = smul.addr %s2768, 4
          %s2770 = scalar_lea.vmem %s6, %s2769
        $region72: #{tpu_custom_call.1} parent=59 // pred_fallthru
          _
      $region60: #{tpu_custom_call.1} parent=5 // pred_fallthru
        _
    $region6: #{tpu_custom_call.1} parent=1 // loop_footer
      %s24 = sadd.s32 1, %s20
    $region7: #{tpu_custom_call.1} parent=1 // loop_footer_branch
      %19 = sbr.rel target = $region3
    $region8: #{tpu_custom_call.1} parent=1 // loop_exit
      _
    %2771 = vsyncpa [#allocation3], 1
    %s2772 = scalar_lea.sflag [#allocation3], 1
    %2773 = vsyncpa %s2772, 1
    %2774 = vsyncpa [#allocation6], 1
    %2775 = vsyncpa [#allocation4], 1
    %s2776 = scalar_lea.sflag [#allocation4], 1
    %2777 = vsyncpa %s2776, 1

</llo_original>
